<compile_context>
chip_gen: v5e
topology: v5e:2x2
jax: 0.10.0
libtpu: 0.0.40
codegen_flags: <defaults>
</compile_context>

<pallas_src>
import functools

import jax
import jax.numpy as jnp
from jax.experimental import pallas as pl
from jax.experimental.pallas import tpu as pltpu


# ---------------------------------------------------------------------------
# Capability probes / per-generation tuning
# ---------------------------------------------------------------------------
def _vmem_limit_bytes():
    """Scoped-VMEM request sized per TPU generation, with headroom."""
    cap = 128 * 1024 * 1024
    try:
        cap = int(getattr(pltpu.get_tpu_info(), "vmem_capacity_bytes", cap) or cap)
    except Exception:
        pass
    # ~96 MiB on v5e/v6e (128 MiB physical), ~48 MiB on v7x (64 MiB physical).
    return int(min(96 * 1024 * 1024, (cap * 3) // 4))


def _probe_copy_kernel(x_ref, o_ref):
    o_ref[...] = x_ref[...]


@functools.lru_cache(maxsize=None)
def _single_buffer_supported():
    """pl.Buffered(1) single-buffers grid-invariant operands (weights/biases),
    halving their VMEM footprint.  Probed once; falls back cleanly if this JAX
    version does not accept pipeline_mode on BlockSpec."""
    try:
        fn = pl.pallas_call(
            _probe_copy_kernel,
            out_shape=jax.ShapeDtypeStruct((8, 128), jnp.float32),
            grid=(2,),
            in_specs=[pl.BlockSpec((8, 128), lambda i: (0, 0),
                                   pipeline_mode=pl.Buffered(1))],
            out_specs=pl.BlockSpec((8, 128), lambda i: (0, 0)),
        )
        out = jax.block_until_ready(fn(jnp.ones((8, 128), jnp.float32)))
        return bool(jnp.all(out == 1.0))
    except Exception:
        return False


def _const_spec(shape, index_map):
    """BlockSpec for a grid-invariant operand (single-buffered when possible)."""
    if _single_buffer_supported():
        return pl.BlockSpec(shape, index_map, pipeline_mode=pl.Buffered(1))
    return pl.BlockSpec(shape, index_map)


# ---------------------------------------------------------------------------
# Fused BasicBlock kernel.  One grid step == (one batch element, one row tile).
# ---------------------------------------------------------------------------
def _basic_block_kernel(*refs, tho, Wo, d, s, T, has_down):
    if has_down:
        x_ref, w1_ref, b1_ref, w2_ref, b2_ref, wl_ref, bl_ref, o_ref = refs[:8]
        scratch = refs[8:]
    else:
        x_ref, w1_ref, b1_ref, w2_ref, b2_ref, o_ref = refs[:6]
        wl_ref = bl_ref = None
        scratch = refs[6:]
    if s == 1:
        xpad_ref, mid_ref = scratch
    else:
        (mid_ref,) = scratch

    t = pl.program_id(1)
    Cin = w1_ref.shape[1] // 3
    Cout = o_ref.shape[-1]
    adt = mid_ref.dtype                       # activation compute dtype

    # ------------------------------------------------------------------ conv1
    if s == 1:
        # Stage the rows this tile needs (with a 2*d halo) into a zero-padded
        # per-tile VMEM scratch; only the thin rings/strips are ever zeroed.
        r0 = pl.multiple_of(t * tho, tho)     # first output row of this tile
        n1 = tho + 2 * d                      # conv1 rows this tile produces

        # left/right zero columns (conv1 W padding); cheap, megacore-safe.
        xpad_ref[:, 0:d, :] = jnp.zeros((tho + 4 * d, d, Cin), xpad_ref.dtype)
        xpad_ref[:, Wo + d:Wo + 2 * d, :] = jnp.zeros(
            (tho + 4 * d, d, Cin), xpad_ref.dtype)
        # interior rows (always inside the image).
        xpad_ref[2 * d:2 * d + tho, d:Wo + d, :] = x_ref[0, pl.ds(r0, tho), :, :]

        @pl.when(t > 0)
        def _():
            xpad_ref[0:2 * d, d:Wo + d, :] = x_ref[0, pl.ds(r0 - 2 * d, 2 * d), :, :]

        @pl.when(t == 0)
        def _():
            xpad_ref[0:2 * d, :, :] = jnp.zeros((2 * d, Wo + 2 * d, Cin),
                                                xpad_ref.dtype)

        @pl.when(t < T - 1)
        def _():
            xpad_ref[2 * d + tho:4 * d + tho, d:Wo + d, :] = (
                x_ref[0, pl.ds(r0 + tho, 2 * d), :, :])

        @pl.when(t == T - 1)
        def _():
            xpad_ref[2 * d + tho:4 * d + tho, :, :] = jnp.zeros(
                (2 * d, Wo + 2 * d, Cin), xpad_ref.dtype)

        row_off = 0

        def tap1(kh, kw):
            v = xpad_ref[kh * d:kh * d + n1, kw * d:kw * d + Wo, :]
            return v.reshape(n1 * Wo, Cin)
    else:
        # Downsampling path: x_ref is the polyphase-decomposed, zero-padded
        # input, so every strided tap is a contiguous static slice.  T == 1.
        n1 = tho
        row_off = d

        def tap1(kh, kw):
            ph_h, oh = (kh * d) % s, (kh * d) // s
            ph_w, ow = (kw * d) % s, (kw * d) // s
            v = x_ref[0, ph_h * s + ph_w, oh:oh + tho, ow:ow + Wo, :]
            return v.reshape(tho * Wo, Cin)

    # conv1 + bn1 (folded) + relu: three MXU matmuls, K = 3*Cin (taps packed
    # along the contraction dim -> fewer, deeper MXU passes, fewer VPU adds).
    acc1 = None
    for kh in range(3):
        a = jnp.concatenate([tap1(kh, 0), tap1(kh, 1), tap1(kh, 2)], axis=-1)
        p = jnp.dot(a, w1_ref[kh], preferred_element_type=jnp.float32)
        acc1 = p if acc1 is None else acc1 + p
    out1 = jnp.maximum(acc1 + b1_ref[...], 0.0)
    mid_ref[row_off:row_off + n1, d:Wo + d, :] = (
        out1.reshape(n1, Wo, Cout).astype(adt))

    # conv2 zero padding: thin column ring every tile; top/bottom d-row strips
    # only at the image border (they hold valid conv1 halo rows elsewhere).
    mid_ref[:, 0:d, :] = jnp.zeros((tho + 2 * d, d, Cout), adt)
    mid_ref[:, Wo + d:Wo + 2 * d, :] = jnp.zeros((tho + 2 * d, d, Cout), adt)

    @pl.when(t == 0)
    def _():
        mid_ref[0:d, :, :] = jnp.zeros((d, Wo + 2 * d, Cout), adt)

    @pl.when(t == T - 1)
    def _():
        mid_ref[tho + d:tho + 2 * d, :, :] = jnp.zeros((d, Wo + 2 * d, Cout), adt)

    # ------------------------------------------------------------------ conv2
    M2 = tho * Wo
    acc2 = None
    for kh in range(3):
        a = jnp.concatenate(
            [mid_ref[kh * d:kh * d + tho, kw * d:kw * d + Wo, :].reshape(M2, Cout)
             for kw in range(3)], axis=-1)
        p = jnp.dot(a, w2_ref[kh], preferred_element_type=jnp.float32)
        acc2 = p if acc2 is None else acc2 + p

    # -------------------------------------- shortcut (computed late) + output
    if has_down:
        if s == 1:
            sc_in = x_ref[0, pl.ds(r0, tho), :, :]
        else:
            ph, o = d % s, d // s
            sc_in = x_ref[0, ph * s + ph, o:o + tho, o:o + Wo, :]
        shortcut = jnp.dot(sc_in.reshape(M2, Cin), wl_ref[...],
                           preferred_element_type=jnp.float32) + bl_ref[...]
    else:
        # identity path (s == 1, Cin == Cout); f32 add, input already in
        # compute dtype (exact when compute_dtype == f32).
        shortcut = x_ref[0, pl.ds(r0, tho), :, :].reshape(M2, Cout)
        shortcut = shortcut.astype(jnp.float32)

    out2 = jnp.maximum(acc2 + b2_ref[...] + shortcut, 0.0)
    o_ref[0] = out2.reshape(tho, Wo, Cout).astype(o_ref.dtype)


# ---------------------------------------------------------------------------
# Host-side prep: BN folding, row-tile choice, polyphase split for stride > 1
# ---------------------------------------------------------------------------
def _fold_bn_packed(w_oihw, gamma, beta, mean, var, eps, cdt):
    """Fold eval-mode BN into the conv weight.

    3x3 conv -> (3, 3*Cin, Cout): each kernel row is one MXU matmul with
    K = 3*Cin (taps packed along the contraction dim).
    1x1 conv -> (Cin, Cout).  Bias is (1, Cout) f32.
    """
    Cout, Cin, KH, KW = w_oihw.shape
    scale = gamma / jnp.sqrt(var + eps)
    w = jnp.transpose(w_oihw, (2, 3, 1, 0)).reshape(KH * KW, Cin, Cout)
    w = w * scale[None, None, :]
    bias = (beta - mean * scale).reshape(1, Cout).astype(jnp.float32)
    if KH == 3 and KW == 3:
        w = w.reshape(3, 3 * Cin, Cout)
    else:
        w = w.reshape(KH * KW * Cin, Cout)
    return w.astype(cdt), bias


def _pick_row_tile(Ho, Wo, Cout, d, N):
    """Largest divisor of Ho that (a) keeps the per-tile (rows*Wo, Cout) f32
    temporaries around <= ~2 MiB, (b) gives >= ~4 total grid steps so both v7x
    TensorCores get work even at N=1, and (c) carries the 2*d halo."""
    budget = max(2 * d, (2 * 1024 * 1024) // max(1, Wo * Cout * 4))
    want_t = -(-4 // max(int(N), 1))                 # ceil(4 / N)
    target = max(2 * d, min(budget, -(-Ho // want_t)))
    best = Ho
    for cand in range(1, Ho + 1):
        if Ho % cand == 0 and 2 * d <= cand <= target:
            best = cand
    return best


def _make_phases(x_nhwc, d, s, Ho, Wo):
    """Zero-pad (conv padding d) and split into s*s stride-phases so every
    strided 3x3 tap becomes a contiguous static slice inside the kernel.
    Only used for stride > 1 blocks."""
    N, H, W, C = x_nhwc.shape
    Hq = Ho + (2 * d) // s
    Wq = Wo + (2 * d) // s
    Hp2, Wp2 = Hq * s, Wq * s
    pad_b = max(Hp2 - H - d, 0)
    pad_r = max(Wp2 - W - d, 0)
    xp = jnp.pad(x_nhwc, ((0, 0), (d, pad_b), (d, pad_r), (0, 0)))
    xp = xp[:, :Hp2, :Wp2, :]
    ph = xp.reshape(N, Hq, s, Wq, s, C)
    ph = jnp.transpose(ph, (0, 2, 4, 1, 3, 5))
    return ph.reshape(N, s * s, Hq, Wq, C)


# ---------------------------------------------------------------------------
# BasicBlock forward.  NHWC in / NHWC out, activations in compute_dtype.
# ---------------------------------------------------------------------------
def basic_block_forward(x_nhwc, params, *, stride, dilation=1, eps=1e-5,
                        compute_dtype=jnp.bfloat16, row_tile=None):
    """Fused ResNet BasicBlock (eval-mode BN).  x_nhwc: (N, H, W, Cin).

    Returns (N, Ho, Wo, Cout) in compute_dtype (bf16 by default; pass
    compute_dtype=jnp.float32 for an exact f32 datapath)."""
    N, H, W, Cin = x_nhwc.shape
    Cout = params["w1"].shape[0]
    d, s = int(dilation), int(stride)
    has_down = (s != 1) or (Cin != Cout)

    # 3x3/padding=dilation and 1x1/padding=0 both give this output size.
    Ho = (H - 1) // s + 1
    Wo = (W - 1) // s + 1

    x = x_nhwc.astype(compute_dtype)

    w1, b1 = _fold_bn_packed(params["w1"], params["g1"], params["b1"],
                             params["m1"], params["v1"], eps, compute_dtype)
    w2, b2 = _fold_bn_packed(params["w2"], params["g2"], params["b2"],
                             params["m2"], params["v2"], eps, compute_dtype)

    if s == 1:
        # Row-tiled path: no HBM pre-padding; the kernel stages a halo'd tile.
        if row_tile is not None:
            tho = int(row_tile)
            if (Ho % tho != 0) or (tho != Ho and tho < 2 * d):
                tho = Ho
        else:
            tho = _pick_row_tile(Ho, Wo, Cout, d, N)
        T = Ho // tho
        xin = x
        in0_spec = pl.BlockSpec((1, H, W, Cin), lambda n, t: (n, 0, 0, 0))
        scratch = [pltpu.VMEM((tho + 4 * d, W + 2 * d, Cin), compute_dtype),
                   pltpu.VMEM((tho + 2 * d, Wo + 2 * d, Cout), compute_dtype)]
    else:
        # Downsampling path: polyphase split in HBM, whole image per step.
        tho, T = Ho, 1
        xin = _make_phases(x, d, s, Ho, Wo)
        _, P, Hq, Wq, _ = xin.shape
        in0_spec = pl.BlockSpec((1, P, Hq, Wq, Cin),
                                lambda n, t: (n, 0, 0, 0, 0))
        scratch = [pltpu.VMEM((Ho + 2 * d, Wo + 2 * d, Cout), compute_dtype)]

    args = [xin, w1, b1, w2, b2]
    in_specs = [in0_spec,
                _const_spec((3, 3 * Cin, Cout), lambda n, t: (0, 0, 0)),
                _const_spec((1, Cout), lambda n, t: (0, 0)),
                _const_spec((3, 3 * Cout, Cout), lambda n, t: (0, 0, 0)),
                _const_spec((1, Cout), lambda n, t: (0, 0))]
    if has_down:
        wl, bl = _fold_bn_packed(params["wl"], params["gl"], params["bl"],
                                 params["ml"], params["vl"], eps, compute_dtype)
        args += [wl, bl]
        in_specs += [_const_spec((Cin, Cout), lambda n, t: (0, 0)),
                     _const_spec((1, Cout), lambda n, t: (0, 0))]

    kernel = functools.partial(_basic_block_kernel, tho=tho, Wo=Wo, d=d, s=s,
                               T=T, has_down=has_down)
    return pl.pallas_call(
        kernel,
        out_shape=jax.ShapeDtypeStruct((N, Ho, Wo, Cout), compute_dtype),
        grid=(N, T),
        in_specs=in_specs,
        out_specs=pl.BlockSpec((1, tho, Wo, Cout), lambda n, t: (n, t, 0, 0)),
        scratch_shapes=scratch,
        compiler_params=pltpu.CompilerParams(
            dimension_semantics=("parallel", "parallel"),
            vmem_limit_bytes=_vmem_limit_bytes()),
    )(*args)


def basic_block_forward_nchw(x_nchw, params, **kw):
    """PyTorch-layout convenience wrapper (NCHW in / NCHW out).  Prefer the
    NHWC entry point in a real pipeline to avoid the layout transposes."""
    x = jnp.transpose(x_nchw, (0, 2, 3, 1))
    out = basic_block_forward(x, params, **kw)
    return jnp.transpose(out, (0, 3, 1, 2)).astype(x_nchw.dtype)


# ---------------------------------------------------------------------------
# Pure-JAX reference (NHWC), for correctness self-check
# ---------------------------------------------------------------------------
def _ref_conv(x_nhwc, w_oihw, stride, dilation, pad):
    w_hwio = jnp.transpose(w_oihw, (2, 3, 1, 0))
    return jax.lax.conv_general_dilated(
        x_nhwc, w_hwio, (stride, stride), ((pad, pad), (pad, pad)),
        rhs_dilation=(dilation, dilation),
        dimension_numbers=("NHWC", "HWIO", "NHWC"))


def _ref_bn(y, g, b, m, v, eps=1e-5):
    return (y - m) / jnp.sqrt(v + eps) * g + b


def _reference_forward(x_nhwc, params, *, stride, dilation=1):
    in_ch = x_nhwc.shape[-1]
    out_ch = params["w1"].shape[0]
    x = x_nhwc.astype(jnp.float32)
    out = jnp.maximum(
        _ref_bn(_ref_conv(x, params["w1"], stride, dilation, dilation),
                params["g1"], params["b1"], params["m1"], params["v1"]), 0.0)
    out = _ref_bn(_ref_conv(out, params["w2"], 1, dilation, dilation),
                  params["g2"], params["b2"], params["m2"], params["v2"])
    if stride != 1 or in_ch != out_ch:
        sc = _ref_bn(_ref_conv(x, params["wl"], stride, 1, 0),
                     params["gl"], params["bl"], params["ml"], params["vl"])
    else:
        sc = x
    return jnp.maximum(out + sc, 0.0)


# ---------------------------------------------------------------------------
if __name__ == "__main__":
    def make_params(key, cin, cout):
        ks = jax.random.split(key, 6)

        def bn(k, c):
            k0, k1, k2, k3 = jax.random.split(k, 4)
            g = 1.0 + 0.1 * jax.random.normal(k0, (c,), jnp.float32)
            b = 0.1 * jax.random.normal(k1, (c,), jnp.float32)
            m = 0.1 * jax.random.normal(k2, (c,), jnp.float32)
            v = 0.5 + 0.5 * jnp.abs(jax.random.normal(k3, (c,), jnp.float32))
            return g, b, m, v

        p = {}
        p["w1"] = 0.1 * jax.random.normal(ks[0], (cout, cin, 3, 3), jnp.float32)
        p["w2"] = 0.1 * jax.random.normal(ks[1], (cout, cout, 3, 3), jnp.float32)
        p["wl"] = 0.1 * jax.random.normal(ks[2], (cout, cin, 1, 1), jnp.float32)
        p["g1"], p["b1"], p["m1"], p["v1"] = bn(ks[3], cout)
        p["g2"], p["b2"], p["m2"], p["v2"] = bn(ks[4], cout)
        p["gl"], p["bl"], p["ml"], p["vl"] = bn(ks[5], cout)
        return p

    key = jax.random.PRNGKey(0)
    k1, k2, k3, k4 = jax.random.split(key, 4)
    N, H, W = 2, 16, 16

    # Case A: identity shortcut (stride=1, 8->8), exact f32 datapath.
    # Exercises the row-tiled path (Ho=16 -> two 8-row tiles with halos).
    pA = make_params(k1, 8, 8)
    xA = jax.random.normal(k2, (N, H, W, 8), jnp.float32)
    outA = jax.block_until_ready(
        basic_block_forward(xA, pA, stride=1, dilation=1,
                            compute_dtype=jnp.float32))
    refA = jax.block_until_ready(_reference_forward(xA, pA, stride=1, dilation=1))
    assert outA.shape == (N, H, W, 8), outA.shape
    errA = float(jnp.max(jnp.abs(outA - refA)))
    assert errA < 1e-4, f"case A (stride-1 identity, f32) mismatch: {errA}"

    # Case B: 1x1-projection shortcut with dilation=2 (stride=1, 4->8), f32.
    # Exercises dilated halos across row tiles.
    pB = make_params(k3, 4, 8)
    xB = jax.random.normal(k4, (N, H, W, 4), jnp.float32)
    outB = jax.block_until_ready(
        basic_block_forward(xB, pB, stride=1, dilation=2,
                            compute_dtype=jnp.float32))
    refB = jax.block_until_ready(_reference_forward(xB, pB, stride=1, dilation=2))
    assert outB.shape == (N, H, W, 8), outB.shape
    errB = float(jnp.max(jnp.abs(outB - refB)))
    assert errB < 1e-4, f"case B (dilated, f32) mismatch: {errB}"

    # Case C: downsampling block (stride=2, 4->8), f32 (polyphase path).
    outC = jax.block_until_ready(
        basic_block_forward(xB, pB, stride=2, dilation=1,
                            compute_dtype=jnp.float32))
    refC = jax.block_until_ready(_reference_forward(xB, pB, stride=2, dilation=1))
    assert outC.shape == (N, H // 2, W // 2, 8), outC.shape
    errC = float(jnp.max(jnp.abs(outC - refC)))
    assert errC < 1e-4, f"case C (stride-2, f32) mismatch: {errC}"

    # Case D: default fast bf16 MXU datapath (f32 accumulation), looser tol.
    outD = jax.block_until_ready(basic_block_forward(xA, pA, stride=1, dilation=1))
    errD = float(jnp.max(jnp.abs(outD.astype(jnp.float32) - refA)))
    assert errD < 7.5e-2, f"case D (bf16) mismatch: {errD}"

    # Case E: NCHW convenience wrapper reproduces the PyTorch-layout module.
    xB_nchw = jnp.transpose(xB, (0, 3, 1, 2))
    outE = jax.block_until_ready(
        basic_block_forward_nchw(xB_nchw, pB, stride=2, dilation=1,
                                 compute_dtype=jnp.float32))
    errE = float(jnp.max(jnp.abs(outE - jnp.transpose(refC, (0, 3, 1, 2)))))
    assert errE < 1e-4, f"case E (NCHW wrapper) mismatch: {errE}"

    print("KERNEL_OK")
</pallas_src>

<mosaic_0001>
module attributes {stable_mosaic.version = 11 : i64} {
  func.func @_probe_copy_kernel(%arg0: i32, %arg1: memref<8x128xf32, #tpu.memory_space<vmem>>, %arg2: memref<8x128xf32, #tpu.memory_space<vmem>>) attributes {dimension_semantics = [#tpu.dimension_semantics<arbitrary>], iteration_bounds = array<i64: 2>, scalar_prefetch = 0 : i64, scratch_operands = 0 : i64, tpu.core_type = #tpu.core_type<tc>, window_params = [{pipeline_mode = #tpu.pipeline_mode<synchronous>, transform_indices = @transform_0, window_bounds = array<i64: 8, 128>}, {pipeline_mode = #tpu.pipeline_mode<synchronous>, transform_indices = @transform_1, window_bounds = array<i64: 8, 128>}]} {
    %c0 = arith.constant 0 : index
    %c0_0 = arith.constant 0 : index
    %0 = vector.load %arg1[%c0, %c0_0] : memref<8x128xf32, #tpu.memory_space<vmem>>, vector<8x128xf32>
    %c0_1 = arith.constant 0 : index
    %c0_2 = arith.constant 0 : index
    %1 = vector.load %arg2[%c0_1, %c0_2] : memref<8x128xf32, #tpu.memory_space<vmem>>, vector<8x128xf32>
    tpu.vector_store %arg2[%c0_1, %c0_2], %0 {strides = array<i32>} : memref<8x128xf32, #tpu.memory_space<vmem>>, vector<8x128xf32>,
    return
  }
  func.func @transform_0(%arg0: i32) -> (i32, i32) {
    %c0_i32 = arith.constant 0 : i32
    %c0_i32_0 = arith.constant 0 : i32
    %c0_i32_1 = arith.constant 0 : i32
    return %c0_i32, %c0_i32_0 : i32, i32
  }
  func.func @transform_1(%arg0: i32) -> (i32, i32) {
    %c0_i32 = arith.constant 0 : i32
    %c0_i32_0 = arith.constant 0 : i32
    %c0_i32_1 = arith.constant 0 : i32
    return %c0_i32, %c0_i32_0 : i32, i32
  }
}

module attributes {stable_mosaic.version = 11 : i64} {
  func.func @_basic_block_kernel(%arg0: i32, %arg1: i32, %arg2: memref<1x16x16x8xf32, #tpu.memory_space<vmem>>, %arg3: memref<3x24x8xf32, #tpu.memory_space<vmem>>, %arg4: memref<1x8xf32, #tpu.memory_space<vmem>>, %arg5: memref<3x24x8xf32, #tpu.memory_space<vmem>>, %arg6: memref<1x8xf32, #tpu.memory_space<vmem>>, %arg7: memref<1x8x16x8xf32, #tpu.memory_space<vmem>>, %arg8: memref<12x18x8xf32, #tpu.memory_space<vmem>>, %arg9: memref<10x18x8xf32, #tpu.memory_space<vmem>>) attributes {dimension_semantics = [#tpu.dimension_semantics<parallel>, #tpu.dimension_semantics<parallel>], iteration_bounds = array<i64: 2, 2>, scalar_prefetch = 0 : i64, scratch_operands = 2 : i64, tpu.core_type = #tpu.core_type<tc>, window_params = [{transform_indices = @transform_0, window_bounds = array<i64: 1, 16, 16, 8>}, {pipeline_mode = #tpu.pipeline_mode<synchronous>, transform_indices = @transform_1, window_bounds = array<i64: 3, 24, 8>}, {pipeline_mode = #tpu.pipeline_mode<synchronous>, transform_indices = @transform_2, window_bounds = array<i64: 1, 8>}, {pipeline_mode = #tpu.pipeline_mode<synchronous>, transform_indices = @transform_3, window_bounds = array<i64: 3, 24, 8>}, {pipeline_mode = #tpu.pipeline_mode<synchronous>, transform_indices = @transform_4, window_bounds = array<i64: 1, 8>}, {transform_indices = @transform_5, window_bounds = array<i64: 1, 8, 16, 8>}]} {
    %c8_i32 = arith.constant 8 : i32
    %0 = arith.muli %arg1, %c8_i32 : i32
    %1 = tpu.assume_multiple %0, 8 : i32
    %cst = arith.constant 0.000000e+00 : f32
    %2 = vector.broadcast %cst : f32 to vector<12x1x8xf32>
    %c0 = arith.constant 0 : index
    %c0_0 = arith.constant 0 : index
    %c0_1 = arith.constant 0 : index
    %3 = vector.load %arg8[%c0, %c0_0, %c0_1] : memref<12x18x8xf32, #tpu.memory_space<vmem>>, vector<12x1x8xf32>
    tpu.vector_store %arg8[%c0, %c0_0, %c0_1], %2 {strides = array<i32>} : memref<12x18x8xf32, #tpu.memory_space<vmem>>, vector<12x1x8xf32>,
    %cst_2 = arith.constant 0.000000e+00 : f32
    %4 = vector.broadcast %cst_2 : f32 to vector<12x1x8xf32>
    %c0_3 = arith.constant 0 : index
    %c17 = arith.constant 17 : index
    %c0_4 = arith.constant 0 : index
    %5 = vector.load %arg8[%c0_3, %c17, %c0_4] : memref<12x18x8xf32, #tpu.memory_space<vmem>>, vector<12x1x8xf32>
    tpu.vector_store %arg8[%c0_3, %c17, %c0_4], %4 {strides = array<i32>} : memref<12x18x8xf32, #tpu.memory_space<vmem>>, vector<12x1x8xf32>,
    %c0_5 = arith.constant 0 : index
    %6 = arith.index_cast %1 : i32 to index
    %c0_6 = arith.constant 0 : index
    %c0_7 = arith.constant 0 : index
    %7 = vector.load %arg2[%c0_5, %6, %c0_6, %c0_7] : memref<1x16x16x8xf32, #tpu.memory_space<vmem>>, vector<1x8x16x8xf32>
    %8 = vector.shape_cast %7 : vector<1x8x16x8xf32> to vector<8x16x8xf32>
    %c2 = arith.constant 2 : index
    %c1 = arith.constant 1 : index
    %c0_8 = arith.constant 0 : index
    %9 = vector.load %arg8[%c2, %c1, %c0_8] : memref<12x18x8xf32, #tpu.memory_space<vmem>>, vector<8x16x8xf32>
    tpu.vector_store %arg8[%c2, %c1, %c0_8], %8 {strides = array<i32>} : memref<12x18x8xf32, #tpu.memory_space<vmem>>, vector<8x16x8xf32>,
    %c0_i32 = arith.constant 0 : i32
    %10 = arith.cmpi sgt, %arg1, %c0_i32 : i32
    %11 = arith.extui %10 : i1 to i32
    %c0_i32_9 = arith.constant 0 : i32
    %12 = arith.cmpi ne, %11, %c0_i32_9 : i32
    scf.if %12 {
      %c2_i32 = arith.constant 2 : i32
      %117 = arith.subi %1, %c2_i32 : i32
      %c0_121 = arith.constant 0 : index
      %118 = arith.index_cast %117 : i32 to index
      %c0_122 = arith.constant 0 : index
      %c0_123 = arith.constant 0 : index
      %119 = vector.load %arg2[%c0_121, %118, %c0_122, %c0_123] : memref<1x16x16x8xf32, #tpu.memory_space<vmem>>, vector<1x2x16x8xf32>
      %120 = vector.shape_cast %119 : vector<1x2x16x8xf32> to vector<2x16x8xf32>
      %c0_124 = arith.constant 0 : index
      %c1_125 = arith.constant 1 : index
      %c0_126 = arith.constant 0 : index
      %121 = vector.load %arg8[%c0_124, %c1_125, %c0_126] : memref<12x18x8xf32, #tpu.memory_space<vmem>>, vector<2x16x8xf32>
      tpu.vector_store %arg8[%c0_124, %c1_125, %c0_126], %120 {strides = array<i32>} : memref<12x18x8xf32, #tpu.memory_space<vmem>>, vector<2x16x8xf32>,
    } else {
    }
    %c0_i32_10 = arith.constant 0 : i32
    %13 = arith.cmpi eq, %arg1, %c0_i32_10 : i32
    %14 = arith.extui %13 : i1 to i32
    %c0_i32_11 = arith.constant 0 : i32
    %15 = arith.cmpi ne, %14, %c0_i32_11 : i32
    scf.if %15 {
      %cst_121 = arith.constant 0.000000e+00 : f32
      %117 = vector.broadcast %cst_121 : f32 to vector<2x18x8xf32>
      %c0_122 = arith.constant 0 : index
      %c0_123 = arith.constant 0 : index
      %c0_124 = arith.constant 0 : index
      %118 = vector.load %arg8[%c0_122, %c0_123, %c0_124] : memref<12x18x8xf32, #tpu.memory_space<vmem>>, vector<2x18x8xf32>
      tpu.vector_store %arg8[%c0_122, %c0_123, %c0_124], %117 {strides = array<i32>} : memref<12x18x8xf32, #tpu.memory_space<vmem>>, vector<2x18x8xf32>,
    } else {
    }
    %c1_i32 = arith.constant 1 : i32
    %16 = arith.cmpi slt, %arg1, %c1_i32 : i32
    %17 = arith.extui %16 : i1 to i32
    %c0_i32_12 = arith.constant 0 : i32
    %18 = arith.cmpi ne, %17, %c0_i32_12 : i32
    scf.if %18 {
      %c8_i32_121 = arith.constant 8 : i32
      %117 = arith.addi %1, %c8_i32_121 : i32
      %c0_122 = arith.constant 0 : index
      %118 = arith.index_cast %117 : i32 to index
      %c0_123 = arith.constant 0 : index
      %c0_124 = arith.constant 0 : index
      %119 = vector.load %arg2[%c0_122, %118, %c0_123, %c0_124] : memref<1x16x16x8xf32, #tpu.memory_space<vmem>>, vector<1x2x16x8xf32>
      %120 = vector.shape_cast %119 : vector<1x2x16x8xf32> to vector<2x16x8xf32>
      %c10 = arith.constant 10 : index
      %c1_125 = arith.constant 1 : index
      %c0_126 = arith.constant 0 : index
      %121 = vector.load %arg8[%c10, %c1_125, %c0_126] : memref<12x18x8xf32, #tpu.memory_space<vmem>>, vector<2x16x8xf32>
      tpu.vector_store %arg8[%c10, %c1_125, %c0_126], %120 {strides = array<i32>} : memref<12x18x8xf32, #tpu.memory_space<vmem>>, vector<2x16x8xf32>,
    } else {
    }
    %c1_i32_13 = arith.constant 1 : i32
    %19 = arith.cmpi eq, %arg1, %c1_i32_13 : i32
    %20 = arith.extui %19 : i1 to i32
    %c0_i32_14 = arith.constant 0 : i32
    %21 = arith.cmpi ne, %20, %c0_i32_14 : i32
    scf.if %21 {
      %cst_121 = arith.constant 0.000000e+00 : f32
      %117 = vector.broadcast %cst_121 : f32 to vector<2x18x8xf32>
      %c10 = arith.constant 10 : index
      %c0_122 = arith.constant 0 : index
      %c0_123 = arith.constant 0 : index
      %118 = vector.load %arg8[%c10, %c0_122, %c0_123] : memref<12x18x8xf32, #tpu.memory_space<vmem>>, vector<2x18x8xf32>
      tpu.vector_store %arg8[%c10, %c0_122, %c0_123], %117 {strides = array<i32>} : memref<12x18x8xf32, #tpu.memory_space<vmem>>, vector<2x18x8xf32>,
    } else {
    }
    %c0_15 = arith.constant 0 : index
    %c0_16 = arith.constant 0 : index
    %c0_17 = arith.constant 0 : index
    %22 = vector.load %arg8[%c0_15, %c0_16, %c0_17] : memref<12x18x8xf32, #tpu.memory_space<vmem>>, vector<10x16x8xf32>
    %23 = vector.shape_cast %22 : vector<10x16x8xf32> to vector<160x8xf32>
    %c0_18 = arith.constant 0 : index
    %c1_19 = arith.constant 1 : index
    %c0_20 = arith.constant 0 : index
    %24 = vector.load %arg8[%c0_18, %c1_19, %c0_20] : memref<12x18x8xf32, #tpu.memory_space<vmem>>, vector<10x16x8xf32>
    %25 = vector.shape_cast %24 : vector<10x16x8xf32> to vector<160x8xf32>
    %c0_21 = arith.constant 0 : index
    %c2_22 = arith.constant 2 : index
    %c0_23 = arith.constant 0 : index
    %26 = vector.load %arg8[%c0_21, %c2_22, %c0_23] : memref<12x18x8xf32, #tpu.memory_space<vmem>>, vector<10x16x8xf32>
    %27 = vector.shape_cast %26 : vector<10x16x8xf32> to vector<160x8xf32>
    %28 = tpu.concatenate %23, %25, %27 in 1 : vector<160x8xf32>, vector<160x8xf32>, vector<160x8xf32> -> vector<160x24xf32>
    %c0_24 = arith.constant 0 : index
    %c0_25 = arith.constant 0 : index
    %c0_26 = arith.constant 0 : index
    %29 = vector.load %arg3[%c0_24, %c0_25, %c0_26] : memref<3x24x8xf32, #tpu.memory_space<vmem>>, vector<1x24x8xf32>
    %30 = vector.shape_cast %29 : vector<1x24x8xf32> to vector<24x8xf32>
    %cst_27 = arith.constant dense<0.000000e+00> : vector<160x8xf32>
    %31 = tpu.matmul %28, %30, %cst_27 {dimension_numbers = #tpu.dot_dimension_numbers<[1], [0], [0], [1], [0, 0, 1, 1], [], []>} : vector<160x24xf32>, vector<24x8xf32>, vector<160x8xf32> -> vector<160x8xf32>
    %c1_28 = arith.constant 1 : index
    %c0_29 = arith.constant 0 : index
    %c0_30 = arith.constant 0 : index
    %32 = vector.load %arg8[%c1_28, %c0_29, %c0_30] : memref<12x18x8xf32, #tpu.memory_space<vmem>>, vector<10x16x8xf32>
    %33 = vector.shape_cast %32 : vector<10x16x8xf32> to vector<160x8xf32>
    %c1_31 = arith.constant 1 : index
    %c1_32 = arith.constant 1 : index
    %c0_33 = arith.constant 0 : index
    %34 = vector.load %arg8[%c1_31, %c1_32, %c0_33] : memref<12x18x8xf32, #tpu.memory_space<vmem>>, vector<10x16x8xf32>
    %35 = vector.shape_cast %34 : vector<10x16x8xf32> to vector<160x8xf32>
    %c1_34 = arith.constant 1 : index
    %c2_35 = arith.constant 2 : index
    %c0_36 = arith.constant 0 : index
    %36 = vector.load %arg8[%c1_34, %c2_35, %c0_36] : memref<12x18x8xf32, #tpu.memory_space<vmem>>, vector<10x16x8xf32>
    %37 = vector.shape_cast %36 : vector<10x16x8xf32> to vector<160x8xf32>
    %38 = tpu.concatenate %33, %35, %37 in 1 : vector<160x8xf32>, vector<160x8xf32>, vector<160x8xf32> -> vector<160x24xf32>
    %c1_37 = arith.constant 1 : index
    %c0_38 = arith.constant 0 : index
    %c0_39 = arith.constant 0 : index
    %39 = vector.load %arg3[%c1_37, %c0_38, %c0_39] : memref<3x24x8xf32, #tpu.memory_space<vmem>>, vector<1x24x8xf32>
    %40 = vector.shape_cast %39 : vector<1x24x8xf32> to vector<24x8xf32>
    %cst_40 = arith.constant dense<0.000000e+00> : vector<160x8xf32>
    %41 = tpu.matmul %38, %40, %cst_40 {dimension_numbers = #tpu.dot_dimension_numbers<[1], [0], [0], [1], [0, 0, 1, 1], [], []>} : vector<160x24xf32>, vector<24x8xf32>, vector<160x8xf32> -> vector<160x8xf32>
    %42 = arith.addf %31, %41 : vector<160x8xf32>
    %c2_41 = arith.constant 2 : index
    %c0_42 = arith.constant 0 : index
    %c0_43 = arith.constant 0 : index
    %43 = vector.load %arg8[%c2_41, %c0_42, %c0_43] : memref<12x18x8xf32, #tpu.memory_space<vmem>>, vector<10x16x8xf32>
    %44 = vector.shape_cast %43 : vector<10x16x8xf32> to vector<160x8xf32>
    %c2_44 = arith.constant 2 : index
    %c1_45 = arith.constant 1 : index
    %c0_46 = arith.constant 0 : index
    %45 = vector.load %arg8[%c2_44, %c1_45, %c0_46] : memref<12x18x8xf32, #tpu.memory_space<vmem>>, vector<10x16x8xf32>
    %46 = vector.shape_cast %45 : vector<10x16x8xf32> to vector<160x8xf32>
    %c2_47 = arith.constant 2 : index
    %c2_48 = arith.constant 2 : index
    %c0_49 = arith.constant 0 : index
    %47 = vector.load %arg8[%c2_47, %c2_48, %c0_49] : memref<12x18x8xf32, #tpu.memory_space<vmem>>, vector<10x16x8xf32>
    %48 = vector.shape_cast %47 : vector<10x16x8xf32> to vector<160x8xf32>
    %49 = tpu.concatenate %44, %46, %48 in 1 : vector<160x8xf32>, vector<160x8xf32>, vector<160x8xf32> -> vector<160x24xf32>
    %c2_50 = arith.constant 2 : index
    %c0_51 = arith.constant 0 : index
    %c0_52 = arith.constant 0 : index
    %50 = vector.load %arg3[%c2_50, %c0_51, %c0_52] : memref<3x24x8xf32, #tpu.memory_space<vmem>>, vector<1x24x8xf32>
    %51 = vector.shape_cast %50 : vector<1x24x8xf32> to vector<24x8xf32>
    %cst_53 = arith.constant dense<0.000000e+00> : vector<160x8xf32>
    %52 = tpu.matmul %49, %51, %cst_53 {dimension_numbers = #tpu.dot_dimension_numbers<[1], [0], [0], [1], [0, 0, 1, 1], [], []>} : vector<160x24xf32>, vector<24x8xf32>, vector<160x8xf32> -> vector<160x8xf32>
    %53 = arith.addf %42, %52 : vector<160x8xf32>
    %c0_54 = arith.constant 0 : index
    %c0_55 = arith.constant 0 : index
    %54 = vector.load %arg4[%c0_54, %c0_55] : memref<1x8xf32, #tpu.memory_space<vmem>>, vector<1x8xf32>
    %55 = vector.broadcast %54 : vector<1x8xf32> to vector<160x8xf32>
    %56 = arith.addf %53, %55 : vector<160x8xf32>
    %cst_56 = arith.constant 0.000000e+00 : f32
    %57 = vector.broadcast %cst_56 : f32 to vector<160x8xf32>
    %58 = arith.maximumf %56, %57 : vector<160x8xf32>
    %59 = vector.shape_cast %58 : vector<160x8xf32> to vector<10x16x8xf32>
    %c0_57 = arith.constant 0 : index
    %c1_58 = arith.constant 1 : index
    %c0_59 = arith.constant 0 : index
    %60 = vector.load %arg9[%c0_57, %c1_58, %c0_59] : memref<10x18x8xf32, #tpu.memory_space<vmem>>, vector<10x16x8xf32>
    tpu.vector_store %arg9[%c0_57, %c1_58, %c0_59], %59 {strides = array<i32>} : memref<10x18x8xf32, #tpu.memory_space<vmem>>, vector<10x16x8xf32>,
    %cst_60 = arith.constant 0.000000e+00 : f32
    %61 = vector.broadcast %cst_60 : f32 to vector<10x1x8xf32>
    %c0_61 = arith.constant 0 : index
    %c0_62 = arith.constant 0 : index
    %c0_63 = arith.constant 0 : index
    %62 = vector.load %arg9[%c0_61, %c0_62, %c0_63] : memref<10x18x8xf32, #tpu.memory_space<vmem>>, vector<10x1x8xf32>
    tpu.vector_store %arg9[%c0_61, %c0_62, %c0_63], %61 {strides = array<i32>} : memref<10x18x8xf32, #tpu.memory_space<vmem>>, vector<10x1x8xf32>,
    %cst_64 = arith.constant 0.000000e+00 : f32
    %63 = vector.broadcast %cst_64 : f32 to vector<10x1x8xf32>
    %c0_65 = arith.constant 0 : index
    %c17_66 = arith.constant 17 : index
    %c0_67 = arith.constant 0 : index
    %64 = vector.load %arg9[%c0_65, %c17_66, %c0_67] : memref<10x18x8xf32, #tpu.memory_space<vmem>>, vector<10x1x8xf32>
    tpu.vector_store %arg9[%c0_65, %c17_66, %c0_67], %63 {strides = array<i32>} : memref<10x18x8xf32, #tpu.memory_space<vmem>>, vector<10x1x8xf32>,
    %c0_i32_68 = arith.constant 0 : i32
    %65 = arith.cmpi eq, %arg1, %c0_i32_68 : i32
    %66 = arith.extui %65 : i1 to i32
    %c0_i32_69 = arith.constant 0 : i32
    %67 = arith.cmpi ne, %66, %c0_i32_69 : i32
    scf.if %67 {
      %cst_121 = arith.constant 0.000000e+00 : f32
      %117 = vector.broadcast %cst_121 : f32 to vector<1x18x8xf32>
      %c0_122 = arith.constant 0 : index
      %c0_123 = arith.constant 0 : index
      %c0_124 = arith.constant 0 : index
      %118 = vector.load %arg9[%c0_122, %c0_123, %c0_124] : memref<10x18x8xf32, #tpu.memory_space<vmem>>, vector<1x18x8xf32>
      tpu.vector_store %arg9[%c0_122, %c0_123, %c0_124], %117 {strides = array<i32>} : memref<10x18x8xf32, #tpu.memory_space<vmem>>, vector<1x18x8xf32>,
    } else {
    }
    %c1_i32_70 = arith.constant 1 : i32
    %68 = arith.cmpi eq, %arg1, %c1_i32_70 : i32
    %69 = arith.extui %68 : i1 to i32
    %c0_i32_71 = arith.constant 0 : i32
    %70 = arith.cmpi ne, %69, %c0_i32_71 : i32
    scf.if %70 {
      %cst_121 = arith.constant 0.000000e+00 : f32
      %117 = vector.broadcast %cst_121 : f32 to vector<1x18x8xf32>
      %c9 = arith.constant 9 : index
      %c0_122 = arith.constant 0 : index
      %c0_123 = arith.constant 0 : index
      %118 = vector.load %arg9[%c9, %c0_122, %c0_123] : memref<10x18x8xf32, #tpu.memory_space<vmem>>, vector<1x18x8xf32>
      tpu.vector_store %arg9[%c9, %c0_122, %c0_123], %117 {strides = array<i32>} : memref<10x18x8xf32, #tpu.memory_space<vmem>>, vector<1x18x8xf32>,
    } else {
    }
    %c0_72 = arith.constant 0 : index
    %c0_73 = arith.constant 0 : index
    %c0_74 = arith.constant 0 : index
    %71 = vector.load %arg9[%c0_72, %c0_73, %c0_74] : memref<10x18x8xf32, #tpu.memory_space<vmem>>, vector<8x16x8xf32>
    %72 = vector.shape_cast %71 : vector<8x16x8xf32> to vector<128x8xf32>
    %c0_75 = arith.constant 0 : index
    %c1_76 = arith.constant 1 : index
    %c0_77 = arith.constant 0 : index
    %73 = vector.load %arg9[%c0_75, %c1_76, %c0_77] : memref<10x18x8xf32, #tpu.memory_space<vmem>>, vector<8x16x8xf32>
    %74 = vector.shape_cast %73 : vector<8x16x8xf32> to vector<128x8xf32>
    %c0_78 = arith.constant 0 : index
    %c2_79 = arith.constant 2 : index
    %c0_80 = arith.constant 0 : index
    %75 = vector.load %arg9[%c0_78, %c2_79, %c0_80] : memref<10x18x8xf32, #tpu.memory_space<vmem>>, vector<8x16x8xf32>
    %76 = vector.shape_cast %75 : vector<8x16x8xf32> to vector<128x8xf32>
    %77 = tpu.concatenate %72, %74, %76 in 1 : vector<128x8xf32>, vector<128x8xf32>, vector<128x8xf32> -> vector<128x24xf32>
    %c0_81 = arith.constant 0 : index
    %c0_82 = arith.constant 0 : index
    %c0_83 = arith.constant 0 : index
    %78 = vector.load %arg5[%c0_81, %c0_82, %c0_83] : memref<3x24x8xf32, #tpu.memory_space<vmem>>, vector<1x24x8xf32>
    %79 = vector.shape_cast %78 : vector<1x24x8xf32> to vector<24x8xf32>
    %cst_84 = arith.constant dense<0.000000e+00> : vector<128x8xf32>
    %80 = tpu.matmul %77, %79, %cst_84 {dimension_numbers = #tpu.dot_dimension_numbers<[1], [0], [0], [1], [0, 0, 1, 1], [], []>} : vector<128x24xf32>, vector<24x8xf32>, vector<128x8xf32> -> vector<128x8xf32>
    %c1_85 = arith.constant 1 : index
    %c0_86 = arith.constant 0 : index
    %c0_87 = arith.constant 0 : index
    %81 = vector.load %arg9[%c1_85, %c0_86, %c0_87] : memref<10x18x8xf32, #tpu.memory_space<vmem>>, vector<8x16x8xf32>
    %82 = vector.shape_cast %81 : vector<8x16x8xf32> to vector<128x8xf32>
    %c1_88 = arith.constant 1 : index
    %c1_89 = arith.constant 1 : index
    %c0_90 = arith.constant 0 : index
    %83 = vector.load %arg9[%c1_88, %c1_89, %c0_90] : memref<10x18x8xf32, #tpu.memory_space<vmem>>, vector<8x16x8xf32>
    %84 = vector.shape_cast %83 : vector<8x16x8xf32> to vector<128x8xf32>
    %c1_91 = arith.constant 1 : index
    %c2_92 = arith.constant 2 : index
    %c0_93 = arith.constant 0 : index
    %85 = vector.load %arg9[%c1_91, %c2_92, %c0_93] : memref<10x18x8xf32, #tpu.memory_space<vmem>>, vector<8x16x8xf32>
    %86 = vector.shape_cast %85 : vector<8x16x8xf32> to vector<128x8xf32>
    %87 = tpu.concatenate %82, %84, %86 in 1 : vector<128x8xf32>, vector<128x8xf32>, vector<128x8xf32> -> vector<128x24xf32>
    %c1_94 = arith.constant 1 : index
    %c0_95 = arith.constant 0 : index
    %c0_96 = arith.constant 0 : index
    %88 = vector.load %arg5[%c1_94, %c0_95, %c0_96] : memref<3x24x8xf32, #tpu.memory_space<vmem>>, vector<1x24x8xf32>
    %89 = vector.shape_cast %88 : vector<1x24x8xf32> to vector<24x8xf32>
    %cst_97 = arith.constant dense<0.000000e+00> : vector<128x8xf32>
    %90 = tpu.matmul %87, %89, %cst_97 {dimension_numbers = #tpu.dot_dimension_numbers<[1], [0], [0], [1], [0, 0, 1, 1], [], []>} : vector<128x24xf32>, vector<24x8xf32>, vector<128x8xf32> -> vector<128x8xf32>
    %91 = arith.addf %80, %90 : vector<128x8xf32>
    %c2_98 = arith.constant 2 : index
    %c0_99 = arith.constant 0 : index
    %c0_100 = arith.constant 0 : index
    %92 = vector.load %arg9[%c2_98, %c0_99, %c0_100] : memref<10x18x8xf32, #tpu.memory_space<vmem>>, vector<8x16x8xf32>
    %93 = vector.shape_cast %92 : vector<8x16x8xf32> to vector<128x8xf32>
    %c2_101 = arith.constant 2 : index
    %c1_102 = arith.constant 1 : index
    %c0_103 = arith.constant 0 : index
    %94 = vector.load %arg9[%c2_101, %c1_102, %c0_103] : memref<10x18x8xf32, #tpu.memory_space<vmem>>, vector<8x16x8xf32>
    %95 = vector.shape_cast %94 : vector<8x16x8xf32> to vector<128x8xf32>
    %c2_104 = arith.constant 2 : index
    %c2_105 = arith.constant 2 : index
    %c0_106 = arith.constant 0 : index
    %96 = vector.load %arg9[%c2_104, %c2_105, %c0_106] : memref<10x18x8xf32, #tpu.memory_space<vmem>>, vector<8x16x8xf32>
    %97 = vector.shape_cast %96 : vector<8x16x8xf32> to vector<128x8xf32>
    %98 = tpu.concatenate %93, %95, %97 in 1 : vector<128x8xf32>, vector<128x8xf32>, vector<128x8xf32> -> vector<128x24xf32>
    %c2_107 = arith.constant 2 : index
    %c0_108 = arith.constant 0 : index
    %c0_109 = arith.constant 0 : index
    %99 = vector.load %arg5[%c2_107, %c0_108, %c0_109] : memref<3x24x8xf32, #tpu.memory_space<vmem>>, vector<1x24x8xf32>
    %100 = vector.shape_cast %99 : vector<1x24x8xf32> to vector<24x8xf32>
    %cst_110 = arith.constant dense<0.000000e+00> : vector<128x8xf32>
    %101 = tpu.matmul %98, %100, %cst_110 {dimension_numbers = #tpu.dot_dimension_numbers<[1], [0], [0], [1], [0, 0, 1, 1], [], []>} : vector<128x24xf32>, vector<24x8xf32>, vector<128x8xf32> -> vector<128x8xf32>
    %102 = arith.addf %91, %101 : vector<128x8xf32>
    %c0_111 = arith.constant 0 : index
    %103 = arith.index_cast %1 : i32 to index
    %c0_112 = arith.constant 0 : index
    %c0_113 = arith.constant 0 : index
    %104 = vector.load %arg2[%c0_111, %103, %c0_112, %c0_113] : memref<1x16x16x8xf32, #tpu.memory_space<vmem>>, vector<1x8x16x8xf32>
    %105 = vector.shape_cast %104 : vector<1x8x16x8xf32> to vector<8x16x8xf32>
    %106 = vector.shape_cast %105 : vector<8x16x8xf32> to vector<128x8xf32>
    %c0_114 = arith.constant 0 : index
    %c0_115 = arith.constant 0 : index
    %107 = vector.load %arg6[%c0_114, %c0_115] : memref<1x8xf32, #tpu.memory_space<vmem>>, vector<1x8xf32>
    %108 = vector.broadcast %107 : vector<1x8xf32> to vector<128x8xf32>
    %109 = arith.addf %102, %108 : vector<128x8xf32>
    %110 = arith.addf %109, %106 : vector<128x8xf32>
    %cst_116 = arith.constant 0.000000e+00 : f32
    %111 = vector.broadcast %cst_116 : f32 to vector<128x8xf32>
    %112 = arith.maximumf %110, %111 : vector<128x8xf32>
    %113 = vector.shape_cast %112 : vector<128x8xf32> to vector<8x16x8xf32>
    %c0_117 = arith.constant 0 : index
    %c0_118 = arith.constant 0 : index
    %c0_119 = arith.constant 0 : index
    %c0_120 = arith.constant 0 : index
    %114 = vector.load %arg7[%c0_117, %c0_118, %c0_119, %c0_120] : memref<1x8x16x8xf32, #tpu.memory_space<vmem>>, vector<1x8x16x8xf32>
    %115 = vector.shape_cast %114 : vector<1x8x16x8xf32> to vector<8x16x8xf32>
    %116 = vector.shape_cast %113 : vector<8x16x8xf32> to vector<1x8x16x8xf32>
    tpu.vector_store %arg7[%c0_117, %c0_118, %c0_119, %c0_120], %116 {strides = array<i32>} : memref<1x8x16x8xf32, #tpu.memory_space<vmem>>, vector<1x8x16x8xf32>,
    return
  }
  func.func @transform_0(%arg0: i32, %arg1: i32) -> (i32, i32, i32, i32) {
    %c0_i32 = arith.constant 0 : i32
    %c0_i32_0 = arith.constant 0 : i32
    %c0_i32_1 = arith.constant 0 : i32
    %c0_i32_2 = arith.constant 0 : i32
    return %arg0, %c0_i32, %c0_i32_0, %c0_i32_1 : i32, i32, i32, i32
  }
  func.func @transform_1(%arg0: i32, %arg1: i32) -> (i32, i32, i32) {
    %c0_i32 = arith.constant 0 : i32
    %c0_i32_0 = arith.constant 0 : i32
    %c0_i32_1 = arith.constant 0 : i32
    %c0_i32_2 = arith.constant 0 : i32
    return %c0_i32, %c0_i32_0, %c0_i32_1 : i32, i32, i32
  }
  func.func @transform_2(%arg0: i32, %arg1: i32) -> (i32, i32) {
    %c0_i32 = arith.constant 0 : i32
    %c0_i32_0 = arith.constant 0 : i32
    %c0_i32_1 = arith.constant 0 : i32
    return %c0_i32, %c0_i32_0 : i32, i32
  }
  func.func @transform_3(%arg0: i32, %arg1: i32) -> (i32, i32, i32) {
    %c0_i32 = arith.constant 0 : i32
    %c0_i32_0 = arith.constant 0 : i32
    %c0_i32_1 = arith.constant 0 : i32
    %c0_i32_2 = arith.constant 0 : i32
    return %c0_i32, %c0_i32_0, %c0_i32_1 : i32, i32, i32
  }
  func.func @transform_4(%arg0: i32, %arg1: i32) -> (i32, i32) {
    %c0_i32 = arith.constant 0 : i32
    %c0_i32_0 = arith.constant 0 : i32
    %c0_i32_1 = arith.constant 0 : i32
    return %c0_i32, %c0_i32_0 : i32, i32
  }
  func.func @transform_5(%arg0: i32, %arg1: i32) -> (i32, i32, i32, i32) {
    %c0_i32 = arith.constant 0 : i32
    %c0_i32_0 = arith.constant 0 : i32
    %c0_i32_1 = arith.constant 0 : i32
    return %arg0, %arg1, %c0_i32, %c0_i32_0 : i32, i32, i32, i32
  }
}

</mosaic_0001>

<llo_original>
// kernel: tpu_custom_call.1
$region0: #{tpu_custom_call.1}
  #allocation0 [shape = 'u32[]', space=smem, size = 0x4, offset = 0x4, fixed_abs, tag = 'smem constant byte address 0x4 - core index']
  #allocation1 [shape = 'u32[72,128]{1,0:T(1,128)}', space=vmem, size = 0x9000, scoped, tag = 'internal scratch']
  %s0 = inlined_call_operand.hbm [shape: f32[8,128], index: 0, kind: input, shape index: {}]
  %s1 = inlined_call_operand.hbm [shape: f32[8,128], index: 1, kind: output, shape index: {}]
  %s2 = sld [smem:[#allocation0]]
  $region41: #{tpu_custom_call.1} parent=0
    _
  %s4 = ssub.s32 1, %s2
  %s5 = scalar_select 0, %s4, %s2
  $region1: #{tpu_custom_call.1} parent=0
    #allocation2 [shape = 'u8[4096]{0}', space=vmem, size = 0x1000, scoped, tag = 'input window, operand 0, single buffered']
    #allocation3 [shape = 's32[2]{0}', space=sflag, size = 0x8, scoped, tag = 'scoped memory for tpu_custom_call.1']
    #allocation4 [shape = 's32[2]{0}', space=sflag, size = 0x8, scoped, tag = 'scoped memory for tpu_custom_call.1']
    #allocation5 [shape = 'u8[4096]{0}', space=vmem, size = 0x1000, scoped, tag = 'output window, operand 0, single buffered']
    %6 = vsyncpa [#allocation3], 0
    %7 = vsyncpa [#allocation4], 0
    loop: start=0, step=1, limit=4
    $region2: #{tpu_custom_call.1} parent=1 // loop_pre_header
      _
    $region3: #{tpu_custom_call.1} parent=1 // loop_header
      %s9 = sphi 0, %s13
      %p10 = scmp.ge.s32.totalorder %s9, 4
      %s17 = sphi 0, %s17
      %s19 = sphi 0, %s17
      %s20 = sphi 0, %s19
      %s34 = sphi 0, %s20
      %s38 = sphi 0, %s38
      %s40 = sphi 0, %s38
      %s41 = sphi 0, %s40
      %s55 = sphi 0, %s41
    $region4: #{tpu_custom_call.1} parent=1 // loop_header_branch
      %12 = sbr.rel (%p10) target = $region8
    $region5: #{tpu_custom_call.1} parent=1 // loop_body
      %s14 = ssub.s32 %s9, 1
      %s15 = ssub.s32 %s9, 2
      %s16 = sadd.s32 %s9, 1
      %s18 = sadd.s32 %s17, 1
      %p21 = scmp.eq.s32.totalorder %s9, 1
      %p22 = scmp.ne.s32.totalorder %s17, %s19
      %p23 = scmp.eq.s32.totalorder %s9, 0
      %p24 = por %p22, %p23
      %p25 = scmp.ne.s32.totalorder %s17, %s19
      %p26 = scmp.eq.s32.totalorder %s14, 1
      %p27 = por %p25, %p26
      %p28 = scmp.ne.s32.totalorder %s19, %s20
      %p29 = scmp.eq.s32.totalorder %s14, 0
      %p30 = por %p28, %p29
      %p31 = scmp.ne.s32.totalorder %s19, %s20
      %p32 = scmp.eq.s32.totalorder %s15, 1
      %p33 = por %p31, %p32
      %p35 = scmp.ne.s32.totalorder %s20, %s34
      %p36 = scmp.eq.s32.totalorder %s15, 0
      %p37 = por %p35, %p36
      %s39 = sadd.s32 %s38, 1
      %p42 = scmp.eq.s32.totalorder %s9, 1
      %p43 = scmp.ne.s32.totalorder %s38, %s40
      %p44 = scmp.eq.s32.totalorder %s9, 0
      %p45 = por %p43, %p44
      %p46 = scmp.ne.s32.totalorder %s38, %s40
      %p47 = scmp.eq.s32.totalorder %s14, 1
      %p48 = por %p46, %p47
      %p49 = scmp.ne.s32.totalorder %s40, %s41
      %p50 = scmp.eq.s32.totalorder %s14, 0
      %p51 = por %p49, %p50
      %p52 = scmp.ne.s32.totalorder %s40, %s41
      %p53 = scmp.eq.s32.totalorder %s15, 1
      %p54 = por %p52, %p53
      %p56 = scmp.ne.s32.totalorder %s41, %s55
      %p57 = scmp.eq.s32.totalorder %s15, 0
      %p58 = por %p56, %p57
      %p59 = scmp.le.s32.totalorder 1, %s9
      %p60 = scmp.lt.s32.totalorder %s9, 3
      %p61 = pnand %p59, %p60
      %p62 = pneg %p61
      // Predicated region
      $region9: #{tpu_custom_call.1} parent=5 // pred_check
        _
      $region10: #{tpu_custom_call.1} parent=5 // pred_check_branch
        %64 = sbr.rel (%p61) target = $region12
      $region11: #{tpu_custom_call.1} parent=5 // pred_region
        %s65 = ssub.s32 %s9, 1
        // Predicated region
        $region13: #{tpu_custom_call.1} parent=11 // pred_check
          %p66 = pneg %p30
        $region14: #{tpu_custom_call.1} parent=11 // pred_check_branch
          %68 = sbr.rel (%p66) target = $region16
        $region15: #{tpu_custom_call.1} parent=11 // pred_region
          %70 = vsyncadd [#allocation3], 0
          %s72 = sshll.u32 %s0, 4
          %s73 = int_to_ptr.hbm [resolvable:$true] %s72
          %s74 = sshll.u32 [#allocation2], 4
          %s75 = int_to_ptr.vmem [resolvable:$true] %s74
          %77 = dma.hbm_to_vmem [thread:$0]  %s73, 128, %s75, [#allocation3]
        $region16: #{tpu_custom_call.1} parent=11 // pred_fallthru
          _
      $region12: #{tpu_custom_call.1} parent=5 // pred_fallthru
        _
      %p78 = scmp.lt.s32.totalorder %s9, 2
      // Predicated region
      $region17: #{tpu_custom_call.1} parent=5 // pred_check
        %p79 = pneg %p78
      $region18: #{tpu_custom_call.1} parent=5 // pred_check_branch
        %81 = sbr.rel (%p79) target = $region20
      $region19: #{tpu_custom_call.1} parent=5 // pred_region
        _
      $region20: #{tpu_custom_call.1} parent=5 // pred_fallthru
        _
      %p82 = scmp.le.s32.totalorder 1, %s9
      %p83 = scmp.lt.s32.totalorder %s9, 3
      %p84 = pnand %p82, %p83
      %p85 = pneg %p84
      // Predicated region
      $region21: #{tpu_custom_call.1} parent=5 // pred_check
        _
      $region22: #{tpu_custom_call.1} parent=5 // pred_check_branch
        %87 = sbr.rel (%p84) target = $region24
      $region23: #{tpu_custom_call.1} parent=5 // pred_region
        %s88 = ssub.s32 %s9, 1
        // Predicated region
        $region25: #{tpu_custom_call.1} parent=23 // pred_check
          %p89 = pneg %p30
        $region26: #{tpu_custom_call.1} parent=23 // pred_check_branch
          %91 = sbr.rel (%p89) target = $region28
        $region27: #{tpu_custom_call.1} parent=23 // pred_region
          %93 = dma.done [#allocation3], 128
        $region28: #{tpu_custom_call.1} parent=23 // pred_fallthru
          _
        %p94 = pneg %p30
        %p95 = pneg %p27
        %p96 = pneg %p51
        %p97 = pneg %p48
        %v98 = vld [vmem:[#allocation2] sm:$0xff]
        %99 = vst [vmem:[#allocation5] sm:$0xff] %v98
        // Predicated region
        $region29: #{tpu_custom_call.1} parent=23 // pred_check
          %p100 = pneg %p48
        $region30: #{tpu_custom_call.1} parent=23 // pred_check_branch
          %102 = sbr.rel (%p100) target = $region32
        $region31: #{tpu_custom_call.1} parent=23 // pred_region
          %104 = vsyncadd [#allocation4], 0
          %s106 = sshll.u32 [#allocation5], 4
          %s107 = int_to_ptr.vmem [resolvable:$true] %s106
          %s108 = sshll.u32 %s1, 4
          %s109 = int_to_ptr.hbm [resolvable:$true] %s108
          %111 = dma.vmem_to_hbm [thread:$0]  %s107, 128, %s109, [#allocation4]
        $region32: #{tpu_custom_call.1} parent=23 // pred_fallthru
          _
        // Predicated region
        $region33: #{tpu_custom_call.1} parent=23 // pred_check
          %p112 = pneg %p48
        $region34: #{tpu_custom_call.1} parent=23 // pred_check_branch
          %114 = sbr.rel (%p112) target = $region36
        $region35: #{tpu_custom_call.1} parent=23 // pred_region
          %116 = dma.done [#allocation4], 128
        $region36: #{tpu_custom_call.1} parent=23 // pred_fallthru
          _
      $region24: #{tpu_custom_call.1} parent=5 // pred_fallthru
        _
      %p117 = scmp.le.s32.totalorder 2, %s9
      // Predicated region
      $region37: #{tpu_custom_call.1} parent=5 // pred_check
        %p118 = pneg %p117
      $region38: #{tpu_custom_call.1} parent=5 // pred_check_branch
        %120 = sbr.rel (%p118) target = $region40
      $region39: #{tpu_custom_call.1} parent=5 // pred_region
        %s121 = ssub.s32 %s9, 2
      $region40: #{tpu_custom_call.1} parent=5 // pred_fallthru
        _
    $region6: #{tpu_custom_call.1} parent=1 // loop_footer
      %s13 = sadd.s32 1, %s9
    $region7: #{tpu_custom_call.1} parent=1 // loop_footer_branch
      %8 = sbr.rel target = $region3
    $region8: #{tpu_custom_call.1} parent=1 // loop_exit
      _
    %122 = vsyncpa [#allocation3], 1
    %s123 = scalar_lea.sflag [#allocation3], 1
    %124 = vsyncpa %s123, 1
    %125 = vsyncpa [#allocation4], 1
    %s126 = scalar_lea.sflag [#allocation4], 1
    %127 = vsyncpa %s126, 1

// kernel: tpu_custom_call.1
$region0: #{tpu_custom_call.1}
  #allocation0 [shape = 'u32[]', space=smem, size = 0x4, offset = 0x4, fixed_abs, tag = 'smem constant byte address 0x4 - core index']
  #allocation1 [shape = 'u32[72,128]{1,0:T(1,128)}', space=vmem, size = 0x9000, scoped, tag = 'internal scratch']
  #allocation2 [shape = 'f32[12,18,8]{2,1,0:T(8,128)}', space=vmem, size = 0x24000, scoped, tag = 'scratch operand']
  #allocation3 [shape = 'f32[10,18,8]{2,1,0:T(8,128)}', space=vmem, size = 0x1e000, scoped, tag = 'scratch operand']
  %s0 = inlined_call_operand.vmem [shape: f32[2,16,16,8], index: 0, kind: input, shape index: {}]
  %s1 = inlined_call_operand.vmem [shape: f32[3,24,8], index: 1, kind: input, shape index: {}]
  %s2 = inlined_call_operand.vmem [shape: f32[1,8], index: 2, kind: input, shape index: {}]
  %s3 = inlined_call_operand.vmem [shape: f32[3,24,8], index: 3, kind: input, shape index: {}]
  %s4 = inlined_call_operand.vmem [shape: f32[1,8], index: 4, kind: input, shape index: {}]
  %s5 = inlined_call_operand.vmem [shape: f32[2,16,16,8], index: 5, kind: output, shape index: {}]
  %s6 = sld [smem:[#allocation0]]
  $region77: #{tpu_custom_call.1} parent=0
    _
  %s8 = ssub.s32 1, %s6
  %s9 = scalar_select 0, %s8, %s6
  loop: start=0, step=1, limit=6
  $region2: #{tpu_custom_call.1} parent=0 // loop_pre_header
    _
  $region3: #{tpu_custom_call.1} parent=0 // loop_header
    %s11 = sphi 0, %s15
    %p12 = scmp.ge.s32.totalorder %s11, 6
    %s18 = sphi 0, %s30
    %s19 = sphi 0, %s26
    %s20 = sphi 0, %s18
    %s21 = sphi 0, %s19
    %s22 = sphi 0, %s20
    %s23 = sphi 0, %s21
    %s33 = sphi 0, %s35
    %s36 = sphi 0, %s33
    %s37 = sphi 0, %s36
    %s53 = sphi 0, %s37
    %s57 = sphi 0, %s57
    %s59 = sphi 0, %s57
    %s60 = sphi 0, %s59
    %s74 = sphi 0, %s60
    %s78 = sphi 0, %s78
    %s80 = sphi 0, %s78
    %s81 = sphi 0, %s80
    %s95 = sphi 0, %s81
    %s99 = sphi 0, %s99
    %s101 = sphi 0, %s99
    %s102 = sphi 0, %s101
    %s116 = sphi 0, %s102
    %s120 = sphi 0, %s120
    %s122 = sphi 0, %s120
    %s123 = sphi 0, %s122
    %s137 = sphi 0, %s123
    %s145 = sphi 0, %s147
    %s148 = sphi 0, %s145
    %s149 = sphi 0, %s148
    %s165 = sphi 0, %s149
  $region4: #{tpu_custom_call.1} parent=0 // loop_header_branch
    %14 = sbr.rel (%p12) target = $region8
  $region5: #{tpu_custom_call.1} parent=0 // loop_body
    %s16 = ssub.s32 %s11, 1
    %s17 = ssub.s32 %s11, 2
    %s24 = sadd.s32 1, %s19
    %p25 = scmp.ge.s32.totalorder %s24, 2
    %s26 = scalar_select %p25, 0, %s24
    %s27 = sadd.s32 1, %s18
    %s28 = scalar_select %p25, %s27, %s18
    %p29 = scmp.ge.s32.totalorder %s28, 2
    %s30 = scalar_select %p29, 0, %s28
    %s31 = ssub.s32 %s18, %s30
    %p32 = scmp.eq.s32.totalorder %s31, 0
    %s34 = sadd.s32 %s33, 1
    %s35 = scalar_select %p32, %s33, %s34
    %p38 = pneg %p32
    %p39 = scmp.eq.s32.totalorder %s11, 3
    %p40 = por %p38, %p39
    %p41 = scmp.ne.s32.totalorder %s33, %s36
    %p42 = scmp.eq.s32.totalorder %s11, 0
    %p43 = por %p41, %p42
    %p44 = scmp.ne.s32.totalorder %s33, %s36
    %p45 = scmp.eq.s32.totalorder %s16, 3
    %p46 = por %p44, %p45
    %p47 = scmp.ne.s32.totalorder %s36, %s37
    %p48 = scmp.eq.s32.totalorder %s16, 0
    %p49 = por %p47, %p48
    %p50 = scmp.ne.s32.totalorder %s36, %s37
    %p51 = scmp.eq.s32.totalorder %s17, 3
    %p52 = por %p50, %p51
    %p54 = scmp.ne.s32.totalorder %s37, %s53
    %p55 = scmp.eq.s32.totalorder %s17, 0
    %p56 = por %p54, %p55
    %s58 = sadd.s32 %s57, 1
    %p61 = scmp.eq.s32.totalorder %s11, 3
    %p62 = scmp.ne.s32.totalorder %s57, %s59
    %p63 = scmp.eq.s32.totalorder %s11, 0
    %p64 = por %p62, %p63
    %p65 = scmp.ne.s32.totalorder %s57, %s59
    %p66 = scmp.eq.s32.totalorder %s16, 3
    %p67 = por %p65, %p66
    %p68 = scmp.ne.s32.totalorder %s59, %s60
    %p69 = scmp.eq.s32.totalorder %s16, 0
    %p70 = por %p68, %p69
    %p71 = scmp.ne.s32.totalorder %s59, %s60
    %p72 = scmp.eq.s32.totalorder %s17, 3
    %p73 = por %p71, %p72
    %p75 = scmp.ne.s32.totalorder %s60, %s74
    %p76 = scmp.eq.s32.totalorder %s17, 0
    %p77 = por %p75, %p76
    %s79 = sadd.s32 %s78, 1
    %p82 = scmp.eq.s32.totalorder %s11, 3
    %p83 = scmp.ne.s32.totalorder %s78, %s80
    %p84 = scmp.eq.s32.totalorder %s11, 0
    %p85 = por %p83, %p84
    %p86 = scmp.ne.s32.totalorder %s78, %s80
    %p87 = scmp.eq.s32.totalorder %s16, 3
    %p88 = por %p86, %p87
    %p89 = scmp.ne.s32.totalorder %s80, %s81
    %p90 = scmp.eq.s32.totalorder %s16, 0
    %p91 = por %p89, %p90
    %p92 = scmp.ne.s32.totalorder %s80, %s81
    %p93 = scmp.eq.s32.totalorder %s17, 3
    %p94 = por %p92, %p93
    %p96 = scmp.ne.s32.totalorder %s81, %s95
    %p97 = scmp.eq.s32.totalorder %s17, 0
    %p98 = por %p96, %p97
    %s100 = sadd.s32 %s99, 1
    %p103 = scmp.eq.s32.totalorder %s11, 3
    %p104 = scmp.ne.s32.totalorder %s99, %s101
    %p105 = scmp.eq.s32.totalorder %s11, 0
    %p106 = por %p104, %p105
    %p107 = scmp.ne.s32.totalorder %s99, %s101
    %p108 = scmp.eq.s32.totalorder %s16, 3
    %p109 = por %p107, %p108
    %p110 = scmp.ne.s32.totalorder %s101, %s102
    %p111 = scmp.eq.s32.totalorder %s16, 0
    %p112 = por %p110, %p111
    %p113 = scmp.ne.s32.totalorder %s101, %s102
    %p114 = scmp.eq.s32.totalorder %s17, 3
    %p115 = por %p113, %p114
    %p117 = scmp.ne.s32.totalorder %s102, %s116
    %p118 = scmp.eq.s32.totalorder %s17, 0
    %p119 = por %p117, %p118
    %s121 = sadd.s32 %s120, 1
    %p124 = scmp.eq.s32.totalorder %s11, 3
    %p125 = scmp.ne.s32.totalorder %s120, %s122
    %p126 = scmp.eq.s32.totalorder %s11, 0
    %p127 = por %p125, %p126
    %p128 = scmp.ne.s32.totalorder %s120, %s122
    %p129 = scmp.eq.s32.totalorder %s16, 3
    %p130 = por %p128, %p129
    %p131 = scmp.ne.s32.totalorder %s122, %s123
    %p132 = scmp.eq.s32.totalorder %s16, 0
    %p133 = por %p131, %p132
    %p134 = scmp.ne.s32.totalorder %s122, %s123
    %p135 = scmp.eq.s32.totalorder %s17, 3
    %p136 = por %p134, %p135
    %p138 = scmp.ne.s32.totalorder %s123, %s137
    %p139 = scmp.eq.s32.totalorder %s17, 0
    %p140 = por %p138, %p139
    %s141 = ssub.s32 %s18, %s30
    %s142 = ssub.s32 %s19, %s26
    %s143 = sor.u32 %s141, %s142
    %p144 = scmp.eq.s32.totalorder %s143, 0
    %s146 = sadd.s32 %s145, 1
    %s147 = scalar_select %p144, %s145, %s146
    %p150 = pneg %p144
    %p151 = scmp.eq.s32.totalorder %s11, 3
    %p152 = por %p150, %p151
    %p153 = scmp.ne.s32.totalorder %s145, %s148
    %p154 = scmp.eq.s32.totalorder %s11, 0
    %p155 = por %p153, %p154
    %p156 = scmp.ne.s32.totalorder %s145, %s148
    %p157 = scmp.eq.s32.totalorder %s16, 3
    %p158 = por %p156, %p157
    %p159 = scmp.ne.s32.totalorder %s148, %s149
    %p160 = scmp.eq.s32.totalorder %s16, 0
    %p161 = por %p159, %p160
    %p162 = scmp.ne.s32.totalorder %s148, %s149
    %p163 = scmp.eq.s32.totalorder %s17, 3
    %p164 = por %p162, %p163
    %p166 = scmp.ne.s32.totalorder %s149, %s165
    %p167 = scmp.eq.s32.totalorder %s17, 0
    %p168 = por %p166, %p167
    %p169 = scmp.le.s32.totalorder 1, %s11
    %p170 = scmp.lt.s32.totalorder %s11, 5
    %p171 = pnand %p169, %p170
    %p172 = pneg %p171
    // Predicated region
    $region9: #{tpu_custom_call.1} parent=5 // pred_check
      _
    $region10: #{tpu_custom_call.1} parent=5 // pred_check_branch
      %174 = sbr.rel (%p171) target = $region12
    $region11: #{tpu_custom_call.1} parent=5 // pred_region
      %s175 = ssub.s32 %s11, 1
      // Predicated region
      $region13: #{tpu_custom_call.1} parent=11 // pred_check
        %p176 = pneg %p70
      $region14: #{tpu_custom_call.1} parent=11 // pred_check_branch
        %178 = sbr.rel (%p176) target = $region16
      $region15: #{tpu_custom_call.1} parent=11 // pred_region
        _
      $region16: #{tpu_custom_call.1} parent=11 // pred_fallthru
        _
      // Predicated region
      $region17: #{tpu_custom_call.1} parent=11 // pred_check
        %p179 = pneg %p91
      $region18: #{tpu_custom_call.1} parent=11 // pred_check_branch
        %181 = sbr.rel (%p179) target = $region20
      $region19: #{tpu_custom_call.1} parent=11 // pred_region
        _
      $region20: #{tpu_custom_call.1} parent=11 // pred_fallthru
        _
      // Predicated region
      $region21: #{tpu_custom_call.1} parent=11 // pred_check
        %p182 = pneg %p112
      $region22: #{tpu_custom_call.1} parent=11 // pred_check_branch
        %184 = sbr.rel (%p182) target = $region24
      $region23: #{tpu_custom_call.1} parent=11 // pred_region
        _
      $region24: #{tpu_custom_call.1} parent=11 // pred_fallthru
        _
      // Predicated region
      $region25: #{tpu_custom_call.1} parent=11 // pred_check
        %p185 = pneg %p133
      $region26: #{tpu_custom_call.1} parent=11 // pred_check_branch
        %187 = sbr.rel (%p185) target = $region28
      $region27: #{tpu_custom_call.1} parent=11 // pred_region
        _
      $region28: #{tpu_custom_call.1} parent=11 // pred_fallthru
        _
    $region12: #{tpu_custom_call.1} parent=5 // pred_fallthru
      _
    %p188 = scmp.lt.s32.totalorder %s11, 4
    // Predicated region
    $region29: #{tpu_custom_call.1} parent=5 // pred_check
      %p189 = pneg %p188
    $region30: #{tpu_custom_call.1} parent=5 // pred_check_branch
      %191 = sbr.rel (%p189) target = $region32
    $region31: #{tpu_custom_call.1} parent=5 // pred_region
      // Predicated region
      $region33: #{tpu_custom_call.1} parent=31 // pred_check
        %p192 = pneg %p43
      $region34: #{tpu_custom_call.1} parent=31 // pred_check_branch
        %194 = sbr.rel (%p192) target = $region36
      $region35: #{tpu_custom_call.1} parent=31 // pred_region
        %p195 = scmp.lt.s32.totalorder %s18, 1
        %s196 = scalar_select %p195, %s18, 1
        %s197 = smul.addr %s196, 32
        %s198 = smul.addr %s197, 8
        %s199 = scalar_lea.vmem %s0, %s198
      $region36: #{tpu_custom_call.1} parent=31 // pred_fallthru
        _
    $region32: #{tpu_custom_call.1} parent=5 // pred_fallthru
      _
    %p200 = scmp.le.s32.totalorder 1, %s11
    %p201 = scmp.lt.s32.totalorder %s11, 5
    %p202 = pnand %p200, %p201
    %p203 = pneg %p202
    // Predicated region
    $region37: #{tpu_custom_call.1} parent=5 // pred_check
      _
    $region38: #{tpu_custom_call.1} parent=5 // pred_check_branch
      %205 = sbr.rel (%p202) target = $region40
    $region39: #{tpu_custom_call.1} parent=5 // pred_region
      %s206 = ssub.s32 %s11, 1
      %p207 = scmp.lt.s32.totalorder %s20, 1
      %s208 = scalar_select %p207, %s20, 1
      %s209 = smul.addr %s208, 32
      %s210 = smul.addr %s209, 8
      %s211 = scalar_lea.vmem %s0, %s210
      %p212 = pneg %p49
      %p213 = pneg %p46
      %p214 = pneg %p70
      %p215 = pneg %p67
      %p216 = pneg %p91
      %p217 = pneg %p88
      %p218 = pneg %p112
      %p219 = pneg %p109
      %p220 = pneg %p133
      %p221 = pneg %p130
      %p222 = pneg %p161
      %p223 = pneg %p158
      %s224 = smul.u32 8, %s21
      %p225 = scmp.lt.s32.totalorder %s20, 1
      %s226 = scalar_select %p225, %s20, 1
      %p227 = scmp.lt.s32.totalorder %s224, 15
      %s228 = scalar_select %p227, %s224, 15
      %s229 = smul.addr %s228, 2
      %s230 = smul.addr %s226, 32
      %s231 = sadd.s32 %s229, %s230
      %s232 = smul.addr %s231, 8
      %s233 = scalar_lea.vmem %s5, %s232
      %p234 = scmp.lt.s32.totalorder %s20, 1
      %s235 = scalar_select %p234, %s20, 1
      %s236 = smul.addr %s235, 32
      %s237 = smul.addr %s236, 8
      %s238 = scalar_lea.vmem %s0, %s237
      %s239 = smul.u32 8, %s21
      %p240 = scmp.lt.s32.totalorder %s20, 1
      %s241 = scalar_select %p240, %s20, 1
      %p242 = scmp.lt.s32.totalorder %s239, 15
      %s243 = scalar_select %p242, %s239, 15
      %s244 = smul.addr %s243, 2
      %s245 = smul.addr %s241, 32
      %s246 = sadd.s32 %s244, %s245
      %s247 = smul.addr %s246, 8
      %s248 = scalar_lea.vmem %s5, %s247
      %s249 = smul.u32 8, %s21
      %s250 = smul.u32 %s21, 8
      %vm251 = vcmask 57344
      %252 = vst.msk [vmem:[#allocation2] sm:$0x1] %vm251, 0.0
      %253 = vst.msk [vmem:[#allocation2 + $0x18] sm:$0x1] %vm251, 0.0
      %254 = vst.msk [vmem:[#allocation2 + $0x30] sm:$0x1] %vm251, 0.0
      %255 = vst.msk [vmem:[#allocation2 + $0x48] sm:$0x1] %vm251, 0.0
      %256 = vst.msk [vmem:[#allocation2 + $0x60] sm:$0x1] %vm251, 0.0
      %257 = vst.msk [vmem:[#allocation2 + $0x78] sm:$0x1] %vm251, 0.0
      %258 = vst.msk [vmem:[#allocation2 + $0x90] sm:$0x1] %vm251, 0.0
      %259 = vst.msk [vmem:[#allocation2 + $0xa8] sm:$0x1] %vm251, 0.0
      %260 = vst.msk [vmem:[#allocation2 + $0xc0] sm:$0x1] %vm251, 0.0
      %261 = vst.msk [vmem:[#allocation2 + $0xd8] sm:$0x1] %vm251, 0.0
      %262 = vst.msk [vmem:[#allocation2 + $0xf0] sm:$0x1] %vm251, 0.0
      %263 = vst.msk [vmem:[#allocation2 + $0x108] sm:$0x1] %vm251, 0.0
      %264 = vst.msk [vmem:[#allocation2 + $0x11] sm:$0x1] %vm251, 0.0
      %265 = vst.msk [vmem:[#allocation2 + $0x29] sm:$0x1] %vm251, 0.0
      %266 = vst.msk [vmem:[#allocation2 + $0x41] sm:$0x1] %vm251, 0.0
      %267 = vst.msk [vmem:[#allocation2 + $0x59] sm:$0x1] %vm251, 0.0
      %268 = vst.msk [vmem:[#allocation2 + $0x71] sm:$0x1] %vm251, 0.0
      %269 = vst.msk [vmem:[#allocation2 + $0x89] sm:$0x1] %vm251, 0.0
      %270 = vst.msk [vmem:[#allocation2 + $0xa1] sm:$0x1] %vm251, 0.0
      %271 = vst.msk [vmem:[#allocation2 + $0xb9] sm:$0x1] %vm251, 0.0
      %272 = vst.msk [vmem:[#allocation2 + $0xd1] sm:$0x1] %vm251, 0.0
      %273 = vst.msk [vmem:[#allocation2 + $0xe9] sm:$0x1] %vm251, 0.0
      %274 = vst.msk [vmem:[#allocation2 + $0x101] sm:$0x1] %vm251, 0.0
      %275 = vst.msk [vmem:[#allocation2 + $0x119] sm:$0x1] %vm251, 0.0
      %s276 = smul.u32 %s250, 16
      %s277 = scalar_lea.vmem %s238, %s276
      %v278 = vld [vmem:[%s277] sm:$0xff]
      %v279 = vld [vmem:[%s277 + $0x8] sm:$0xff]
      %v280 = vld [vmem:[%s277 + $0x10] sm:$0xff]
      %v281 = vld [vmem:[%s277 + $0x18] sm:$0xff]
      %v282 = vld [vmem:[%s277 + $0x20] sm:$0xff]
      %v283 = vld [vmem:[%s277 + $0x28] sm:$0xff]
      %v284 = vld [vmem:[%s277 + $0x30] sm:$0xff]
      %v285 = vld [vmem:[%s277 + $0x38] sm:$0xff]
      %v286 = vld [vmem:[%s277 + $0x40] sm:$0xff]
      %v287 = vld [vmem:[%s277 + $0x48] sm:$0xff]
      %v288 = vld [vmem:[%s277 + $0x50] sm:$0xff]
      %v289 = vld [vmem:[%s277 + $0x58] sm:$0xff]
      %v290 = vld [vmem:[%s277 + $0x60] sm:$0xff]
      %v291 = vld [vmem:[%s277 + $0x68] sm:$0xff]
      %v292 = vld [vmem:[%s277 + $0x70] sm:$0xff]
      %v293 = vld [vmem:[%s277 + $0x78] sm:$0xff]
      %s294 = scalar_lea.vmem [#allocation2], 48
      %vm295 = vcmask 64512
      %296 = vst.msk [vmem:[%s294 + $0x1] sm:$0xff] %vm295, %v278
      %297 = vst.msk [vmem:[%s294 + $0x9] sm:$0xff] %vm295, %v279
      %298 = vst.msk [vmem:[%s294 + $0x19] sm:$0xff] %vm295, %v280
      %299 = vst.msk [vmem:[%s294 + $0x21] sm:$0xff] %vm295, %v281
      %300 = vst.msk [vmem:[%s294 + $0x31] sm:$0xff] %vm295, %v282
      %301 = vst.msk [vmem:[%s294 + $0x39] sm:$0xff] %vm295, %v283
      %302 = vst.msk [vmem:[%s294 + $0x49] sm:$0xff] %vm295, %v284
      %303 = vst.msk [vmem:[%s294 + $0x51] sm:$0xff] %vm295, %v285
      %304 = vst.msk [vmem:[%s294 + $0x61] sm:$0xff] %vm295, %v286
      %305 = vst.msk [vmem:[%s294 + $0x69] sm:$0xff] %vm295, %v287
      %306 = vst.msk [vmem:[%s294 + $0x79] sm:$0xff] %vm295, %v288
      %307 = vst.msk [vmem:[%s294 + $0x81] sm:$0xff] %vm295, %v289
      %308 = vst.msk [vmem:[%s294 + $0x91] sm:$0xff] %vm295, %v290
      %309 = vst.msk [vmem:[%s294 + $0x99] sm:$0xff] %vm295, %v291
      %310 = vst.msk [vmem:[%s294 + $0xa9] sm:$0xff] %vm295, %v292
      %311 = vst.msk [vmem:[%s294 + $0xb1] sm:$0xff] %vm295, %v293
      %p312 = scmp.gt.s32.totalorder %s21, 0
      // Predicated region
      $region41: #{tpu_custom_call.1} parent=39 // pred_check
        %p313 = pneg %p312
      $region42: #{tpu_custom_call.1} parent=39 // pred_check_branch
        %315 = sbr.rel (%p313) target = $region44
      $region43: #{tpu_custom_call.1} parent=39 // pred_region
        %s316 = ssub.s32 %s250, 2
        %s317 = smul.u32 %s316, 16
        %s318 = scalar_lea.vmem %s238, %s317
        %v319 = vld [vmem:[%s318] sm:$0xff]
        %v320 = vld [vmem:[%s318 + $0x8] sm:$0xff]
        %v321 = vld [vmem:[%s318 + $0x10] sm:$0xff]
        %v322 = vld [vmem:[%s318 + $0x18] sm:$0xff]
        %323 = vst.msk [vmem:[#allocation2 + $0x1] sm:$0xff] %vm295, %v319
        %324 = vst.msk [vmem:[#allocation2 + $0x9] sm:$0xff] %vm295, %v320
        %325 = vst.msk [vmem:[#allocation2 + $0x19] sm:$0xff] %vm295, %v321
        %326 = vst.msk [vmem:[#allocation2 + $0x21] sm:$0xff] %vm295, %v322
      $region44: #{tpu_custom_call.1} parent=39 // pred_fallthru
        _
      %p327 = scmp.eq.s32.totalorder %s21, 0
      // Predicated region
      $region45: #{tpu_custom_call.1} parent=39 // pred_check
        %p328 = pneg %p327
      $region46: #{tpu_custom_call.1} parent=39 // pred_check_branch
        %330 = sbr.rel (%p328) target = $region48
      $region47: #{tpu_custom_call.1} parent=39 // pred_region
        %331 = vst.msk [vmem:[#allocation2] sm:$0xff] %vm295, 0.0
        %332 = vst.msk [vmem:[#allocation2 + $0x8] sm:$0xff] %vm295, 0.0
        %vm333 = vcmask 58368
        %334 = vst.msk [vmem:[#allocation2 + $0x10] sm:$0x3] %vm333, 0.0
        %335 = vst.msk [vmem:[#allocation2 + $0x18] sm:$0xff] %vm295, 0.0
        %336 = vst.msk [vmem:[#allocation2 + $0x20] sm:$0xff] %vm295, 0.0
        %337 = vst.msk [vmem:[#allocation2 + $0x28] sm:$0x3] %vm333, 0.0
      $region48: #{tpu_custom_call.1} parent=39 // pred_fallthru
        _
      %p338 = scmp.lt.s32.totalorder %s21, 1
      // Predicated region
      $region49: #{tpu_custom_call.1} parent=39 // pred_check
        %p339 = pneg %p338
      $region50: #{tpu_custom_call.1} parent=39 // pred_check_branch
        %341 = sbr.rel (%p339) target = $region52
      $region51: #{tpu_custom_call.1} parent=39 // pred_region
        %s342 = sadd.s32 %s250, 8
        %s343 = smul.u32 %s342, 16
        %s344 = scalar_lea.vmem %s238, %s343
        %v345 = vld [vmem:[%s344] sm:$0xff]
        %v346 = vld [vmem:[%s344 + $0x8] sm:$0xff]
        %v347 = vld [vmem:[%s344 + $0x10] sm:$0xff]
        %v348 = vld [vmem:[%s344 + $0x18] sm:$0xff]
        %s349 = scalar_lea.vmem [#allocation2], 240
        %350 = vst.msk [vmem:[%s349 + $0x1] sm:$0xff] %vm295, %v345
        %351 = vst.msk [vmem:[%s349 + $0x9] sm:$0xff] %vm295, %v346
        %352 = vst.msk [vmem:[%s349 + $0x19] sm:$0xff] %vm295, %v347
        %353 = vst.msk [vmem:[%s349 + $0x21] sm:$0xff] %vm295, %v348
      $region52: #{tpu_custom_call.1} parent=39 // pred_fallthru
        _
      %p354 = scmp.eq.s32.totalorder %s21, 1
      // Predicated region
      $region53: #{tpu_custom_call.1} parent=39 // pred_check
        %p355 = pneg %p354
      $region54: #{tpu_custom_call.1} parent=39 // pred_check_branch
        %357 = sbr.rel (%p355) target = $region56
      $region55: #{tpu_custom_call.1} parent=39 // pred_region
        %s358 = scalar_lea.vmem [#allocation2], 240
        %359 = vst.msk [vmem:[%s358] sm:$0xff] %vm295, 0.0
        %360 = vst.msk [vmem:[%s358 + $0x8] sm:$0xff] %vm295, 0.0
        %vm361 = vcmask 58368
        %362 = vst.msk [vmem:[%s358 + $0x10] sm:$0x3] %vm361, 0.0
        %363 = vst.msk [vmem:[%s358 + $0x18] sm:$0xff] %vm295, 0.0
        %364 = vst.msk [vmem:[%s358 + $0x20] sm:$0xff] %vm295, 0.0
        %365 = vst.msk [vmem:[%s358 + $0x28] sm:$0x3] %vm361, 0.0
      $region56: #{tpu_custom_call.1} parent=39 // pred_fallthru
        _
      %v366 = vld [vmem:[#allocation2] sm:$0xff]
      %v367 = vld [vmem:[#allocation2 + $0x8] sm:$0xff]
      %v368 = vld [vmem:[#allocation2 + $0x18] sm:$0xff]
      %v369 = vld [vmem:[#allocation2 + $0x20] sm:$0xff]
      %v370 = vld [vmem:[#allocation2 + $0x30] sm:$0xff]
      %v371 = vld [vmem:[#allocation2 + $0x38] sm:$0xff]
      %v372 = vld [vmem:[#allocation2 + $0x48] sm:$0xff]
      %v373 = vld [vmem:[#allocation2 + $0x50] sm:$0xff]
      %v374 = vld [vmem:[#allocation2 + $0x60] sm:$0xff]
      %v375 = vld [vmem:[#allocation2 + $0x68] sm:$0xff]
      %v376 = vld [vmem:[#allocation2 + $0x78] sm:$0xff]
      %v377 = vld [vmem:[#allocation2 + $0x80] sm:$0xff]
      %v378 = vld [vmem:[#allocation2 + $0x90] sm:$0xff]
      %v379 = vld [vmem:[#allocation2 + $0x98] sm:$0xff]
      %v380 = vld [vmem:[#allocation2 + $0xa8] sm:$0xff]
      %v381 = vld [vmem:[#allocation2 + $0xb0] sm:$0xff]
      %v382 = vld [vmem:[#allocation2 + $0xc0] sm:$0xff]
      %v383 = vld [vmem:[#allocation2 + $0xc8] sm:$0xff]
      %v384 = vld [vmem:[#allocation2 + $0xd8] sm:$0xff]
      %v385 = vld [vmem:[#allocation2 + $0xe0] sm:$0xff]
      %v386 = vld [vmem:[#allocation2 + $0x1] sm:$0xff]
      %v387 = vld [vmem:[#allocation2 + $0x9] sm:$0xff]
      %v388 = vld [vmem:[#allocation2 + $0x19] sm:$0xff]
      %v389 = vld [vmem:[#allocation2 + $0x21] sm:$0xff]
      %v390 = vld [vmem:[#allocation2 + $0x31] sm:$0xff]
      %v391 = vld [vmem:[#allocation2 + $0x39] sm:$0xff]
      %v392 = vld [vmem:[#allocation2 + $0x49] sm:$0xff]
      %v393 = vld [vmem:[#allocation2 + $0x51] sm:$0xff]
      %v394 = vld [vmem:[#allocation2 + $0x61] sm:$0xff]
      %v395 = vld [vmem:[#allocation2 + $0x69] sm:$0xff]
      %v396 = vld [vmem:[#allocation2 + $0x79] sm:$0xff]
      %v397 = vld [vmem:[#allocation2 + $0x81] sm:$0xff]
      %v398 = vld [vmem:[#allocation2 + $0x91] sm:$0xff]
      %v399 = vld [vmem:[#allocation2 + $0x99] sm:$0xff]
      %v400 = vld [vmem:[#allocation2 + $0xa9] sm:$0xff]
      %v401 = vld [vmem:[#allocation2 + $0xb1] sm:$0xff]
      %v402 = vld [vmem:[#allocation2 + $0xc1] sm:$0xff]
      %v403 = vld [vmem:[#allocation2 + $0xc9] sm:$0xff]
      %v404 = vld [vmem:[#allocation2 + $0xd9] sm:$0xff]
      %v405 = vld [vmem:[#allocation2 + $0xe1] sm:$0xff]
      %v406 = vld [vmem:[#allocation2 + $0x2] sm:$0xff]
      %v407 = vld [vmem:[#allocation2 + $0xa] sm:$0xff]
      %v408 = vld [vmem:[#allocation2 + $0x1a] sm:$0xff]
      %v409 = vld [vmem:[#allocation2 + $0x22] sm:$0xff]
      %v410 = vld [vmem:[#allocation2 + $0x32] sm:$0xff]
      %v411 = vld [vmem:[#allocation2 + $0x3a] sm:$0xff]
      %v412 = vld [vmem:[#allocation2 + $0x4a] sm:$0xff]
      %v413 = vld [vmem:[#allocation2 + $0x52] sm:$0xff]
      %v414 = vld [vmem:[#allocation2 + $0x62] sm:$0xff]
      %v415 = vld [vmem:[#allocation2 + $0x6a] sm:$0xff]
      %v416 = vld [vmem:[#allocation2 + $0x7a] sm:$0xff]
      %v417 = vld [vmem:[#allocation2 + $0x82] sm:$0xff]
      %v418 = vld [vmem:[#allocation2 + $0x92] sm:$0xff]
      %v419 = vld [vmem:[#allocation2 + $0x9a] sm:$0xff]
      %v420 = vld [vmem:[#allocation2 + $0xaa] sm:$0xff]
      %v421 = vld [vmem:[#allocation2 + $0xb2] sm:$0xff]
      %v422 = vld [vmem:[#allocation2 + $0xc2] sm:$0xff]
      %v423 = vld [vmem:[#allocation2 + $0xca] sm:$0xff]
      %v424 = vld [vmem:[#allocation2 + $0xda] sm:$0xff]
      %v425 = vld [vmem:[#allocation2 + $0xe2] sm:$0xff]
      %446 = vrot.lane.b32.xlu0 %v386, 8
      %v447 = vpop.permute.xlu0 %446
      %448 = vrot.lane.b32.xlu0 %v387, 8
      %v449 = vpop.permute.xlu0 %448
      %450 = vrot.lane.b32.xlu0 %v388, 8
      %v451 = vpop.permute.xlu0 %450
      %452 = vrot.lane.b32.xlu0 %v389, 8
      %v453 = vpop.permute.xlu0 %452
      %454 = vrot.lane.b32.xlu0 %v390, 8
      %v455 = vpop.permute.xlu0 %454
      %456 = vrot.lane.b32.xlu0 %v391, 8
      %v457 = vpop.permute.xlu0 %456
      %458 = vrot.lane.b32.xlu0 %v392, 8
      %v459 = vpop.permute.xlu0 %458
      %460 = vrot.lane.b32.xlu0 %v393, 8
      %v461 = vpop.permute.xlu0 %460
      %462 = vrot.lane.b32.xlu0 %v394, 8
      %v463 = vpop.permute.xlu0 %462
      %464 = vrot.lane.b32.xlu0 %v395, 8
      %v465 = vpop.permute.xlu0 %464
      %466 = vrot.lane.b32.xlu0 %v396, 8
      %v467 = vpop.permute.xlu0 %466
      %468 = vrot.lane.b32.xlu0 %v397, 8
      %v469 = vpop.permute.xlu0 %468
      %470 = vrot.lane.b32.xlu0 %v398, 8
      %v471 = vpop.permute.xlu0 %470
      %472 = vrot.lane.b32.xlu0 %v399, 8
      %v473 = vpop.permute.xlu0 %472
      %474 = vrot.lane.b32.xlu0 %v400, 8
      %v475 = vpop.permute.xlu0 %474
      %476 = vrot.lane.b32.xlu0 %v401, 8
      %v477 = vpop.permute.xlu0 %476
      %478 = vrot.lane.b32.xlu0 %v402, 8
      %v479 = vpop.permute.xlu0 %478
      %480 = vrot.lane.b32.xlu0 %v403, 8
      %v481 = vpop.permute.xlu0 %480
      %482 = vrot.lane.b32.xlu0 %v404, 8
      %v483 = vpop.permute.xlu0 %482
      %484 = vrot.lane.b32.xlu0 %v405, 8
      %v485 = vpop.permute.xlu0 %484
      %526 = vrot.lane.b32.xlu0 %v406, 16
      %v527 = vpop.permute.xlu0 %526
      %528 = vrot.lane.b32.xlu0 %v407, 16
      %v529 = vpop.permute.xlu0 %528
      %530 = vrot.lane.b32.xlu0 %v408, 16
      %v531 = vpop.permute.xlu0 %530
      %532 = vrot.lane.b32.xlu0 %v409, 16
      %v533 = vpop.permute.xlu0 %532
      %534 = vrot.lane.b32.xlu0 %v410, 16
      %v535 = vpop.permute.xlu0 %534
      %536 = vrot.lane.b32.xlu0 %v411, 16
      %v537 = vpop.permute.xlu0 %536
      %538 = vrot.lane.b32.xlu0 %v412, 16
      %v539 = vpop.permute.xlu0 %538
      %540 = vrot.lane.b32.xlu0 %v413, 16
      %v541 = vpop.permute.xlu0 %540
      %542 = vrot.lane.b32.xlu0 %v414, 16
      %v543 = vpop.permute.xlu0 %542
      %544 = vrot.lane.b32.xlu0 %v415, 16
      %v545 = vpop.permute.xlu0 %544
      %546 = vrot.lane.b32.xlu0 %v416, 16
      %v547 = vpop.permute.xlu0 %546
      %548 = vrot.lane.b32.xlu0 %v417, 16
      %v549 = vpop.permute.xlu0 %548
      %550 = vrot.lane.b32.xlu0 %v418, 16
      %v551 = vpop.permute.xlu0 %550
      %552 = vrot.lane.b32.xlu0 %v419, 16
      %v553 = vpop.permute.xlu0 %552
      %554 = vrot.lane.b32.xlu0 %v420, 16
      %v555 = vpop.permute.xlu0 %554
      %556 = vrot.lane.b32.xlu0 %v421, 16
      %v557 = vpop.permute.xlu0 %556
      %558 = vrot.lane.b32.xlu0 %v422, 16
      %v559 = vpop.permute.xlu0 %558
      %560 = vrot.lane.b32.xlu0 %v423, 16
      %v561 = vpop.permute.xlu0 %560
      %562 = vrot.lane.b32.xlu0 %v424, 16
      %v563 = vpop.permute.xlu0 %562
      %564 = vrot.lane.b32.xlu0 %v425, 16
      %v565 = vpop.permute.xlu0 %564
      %v586 = vsel %vm295, %v366, %v447
      %v587 = vsel %vm295, %v367, %v449
      %v588 = vsel %vm295, %v368, %v451
      %v589 = vsel %vm295, %v369, %v453
      %v590 = vsel %vm295, %v370, %v455
      %v591 = vsel %vm295, %v371, %v457
      %v592 = vsel %vm295, %v372, %v459
      %v593 = vsel %vm295, %v373, %v461
      %v594 = vsel %vm295, %v374, %v463
      %v595 = vsel %vm295, %v375, %v465
      %v596 = vsel %vm295, %v376, %v467
      %v597 = vsel %vm295, %v377, %v469
      %v598 = vsel %vm295, %v378, %v471
      %v599 = vsel %vm295, %v379, %v473
      %v600 = vsel %vm295, %v380, %v475
      %v601 = vsel %vm295, %v381, %v477
      %v602 = vsel %vm295, %v382, %v479
      %v603 = vsel %vm295, %v383, %v481
      %v604 = vsel %vm295, %v384, %v483
      %v605 = vsel %vm295, %v385, %v485
      %vm606 = vcmask 130048
      %v607 = vsel %vm606, %v586, %v527
      %v608 = vsel %vm606, %v587, %v529
      %v609 = vsel %vm606, %v588, %v531
      %v610 = vsel %vm606, %v589, %v533
      %v611 = vsel %vm606, %v590, %v535
      %v612 = vsel %vm606, %v591, %v537
      %v613 = vsel %vm606, %v592, %v539
      %v614 = vsel %vm606, %v593, %v541
      %v615 = vsel %vm606, %v594, %v543
      %v616 = vsel %vm606, %v595, %v545
      %v617 = vsel %vm606, %v596, %v547
      %v618 = vsel %vm606, %v597, %v549
      %v619 = vsel %vm606, %v598, %v551
      %v620 = vsel %vm606, %v599, %v553
      %v621 = vsel %vm606, %v600, %v555
      %v622 = vsel %vm606, %v601, %v557
      %v623 = vsel %vm606, %v602, %v559
      %v624 = vsel %vm606, %v603, %v561
      %v625 = vsel %vm606, %v604, %v563
      %v626 = vsel %vm606, %v605, %v565
      %v627 = vld [vmem:[%s1] sm:$0xff]
      %v628 = vld [vmem:[%s1 + $0x8] sm:$0xff]
      %v629 = vld [vmem:[%s1 + $0x10] sm:$0xff]
      %s630 = scalar_lea.vmem [#allocation2], 24
      %v631 = vld [vmem:[%s630] sm:$0xff]
      %v632 = vld [vmem:[%s630 + $0x8] sm:$0xff]
      %v633 = vld [vmem:[%s630 + $0x18] sm:$0xff]
      %v634 = vld [vmem:[%s630 + $0x20] sm:$0xff]
      %v635 = vld [vmem:[%s630 + $0x30] sm:$0xff]
      %v636 = vld [vmem:[%s630 + $0x38] sm:$0xff]
      %v637 = vld [vmem:[%s630 + $0x48] sm:$0xff]
      %v638 = vld [vmem:[%s630 + $0x50] sm:$0xff]
      %v639 = vld [vmem:[%s630 + $0x60] sm:$0xff]
      %v640 = vld [vmem:[%s630 + $0x68] sm:$0xff]
      %v641 = vld [vmem:[%s630 + $0x78] sm:$0xff]
      %v642 = vld [vmem:[%s630 + $0x80] sm:$0xff]
      %v643 = vld [vmem:[%s630 + $0x90] sm:$0xff]
      %v644 = vld [vmem:[%s630 + $0x98] sm:$0xff]
      %v645 = vld [vmem:[%s630 + $0xa8] sm:$0xff]
      %v646 = vld [vmem:[%s630 + $0xb0] sm:$0xff]
      %v647 = vld [vmem:[%s630 + $0xc0] sm:$0xff]
      %v648 = vld [vmem:[%s630 + $0xc8] sm:$0xff]
      %v649 = vld [vmem:[%s630 + $0xd8] sm:$0xff]
      %v650 = vld [vmem:[%s630 + $0xe0] sm:$0xff]
      %v651 = vld [vmem:[%s630 + $0x1] sm:$0xff]
      %v652 = vld [vmem:[%s630 + $0x9] sm:$0xff]
      %v653 = vld [vmem:[%s630 + $0x19] sm:$0xff]
      %v654 = vld [vmem:[%s630 + $0x21] sm:$0xff]
      %v655 = vld [vmem:[%s630 + $0x31] sm:$0xff]
      %v656 = vld [vmem:[%s630 + $0x39] sm:$0xff]
      %v657 = vld [vmem:[%s630 + $0x49] sm:$0xff]
      %v658 = vld [vmem:[%s630 + $0x51] sm:$0xff]
      %v659 = vld [vmem:[%s630 + $0x61] sm:$0xff]
      %v660 = vld [vmem:[%s630 + $0x69] sm:$0xff]
      %v661 = vld [vmem:[%s630 + $0x79] sm:$0xff]
      %v662 = vld [vmem:[%s630 + $0x81] sm:$0xff]
      %v663 = vld [vmem:[%s630 + $0x91] sm:$0xff]
      %v664 = vld [vmem:[%s630 + $0x99] sm:$0xff]
      %v665 = vld [vmem:[%s630 + $0xa9] sm:$0xff]
      %v666 = vld [vmem:[%s630 + $0xb1] sm:$0xff]
      %v667 = vld [vmem:[%s630 + $0xc1] sm:$0xff]
      %v668 = vld [vmem:[%s630 + $0xc9] sm:$0xff]
      %v669 = vld [vmem:[%s630 + $0xd9] sm:$0xff]
      %v670 = vld [vmem:[%s630 + $0xe1] sm:$0xff]
      %v671 = vld [vmem:[%s630 + $0x2] sm:$0xff]
      %v672 = vld [vmem:[%s630 + $0xa] sm:$0xff]
      %v673 = vld [vmem:[%s630 + $0x1a] sm:$0xff]
      %v674 = vld [vmem:[%s630 + $0x22] sm:$0xff]
      %v675 = vld [vmem:[%s630 + $0x32] sm:$0xff]
      %v676 = vld [vmem:[%s630 + $0x3a] sm:$0xff]
      %v677 = vld [vmem:[%s630 + $0x4a] sm:$0xff]
      %v678 = vld [vmem:[%s630 + $0x52] sm:$0xff]
      %v679 = vld [vmem:[%s630 + $0x62] sm:$0xff]
      %v680 = vld [vmem:[%s630 + $0x6a] sm:$0xff]
      %v681 = vld [vmem:[%s630 + $0x7a] sm:$0xff]
      %v682 = vld [vmem:[%s630 + $0x82] sm:$0xff]
      %v683 = vld [vmem:[%s630 + $0x92] sm:$0xff]
      %v684 = vld [vmem:[%s630 + $0x9a] sm:$0xff]
      %v685 = vld [vmem:[%s630 + $0xaa] sm:$0xff]
      %v686 = vld [vmem:[%s630 + $0xb2] sm:$0xff]
      %v687 = vld [vmem:[%s630 + $0xc2] sm:$0xff]
      %v688 = vld [vmem:[%s630 + $0xca] sm:$0xff]
      %v689 = vld [vmem:[%s630 + $0xda] sm:$0xff]
      %v690 = vld [vmem:[%s630 + $0xe2] sm:$0xff]
      %711 = vrot.lane.b32.xlu0 %v651, 8
      %v712 = vpop.permute.xlu0 %711
      %713 = vrot.lane.b32.xlu0 %v652, 8
      %v714 = vpop.permute.xlu0 %713
      %715 = vrot.lane.b32.xlu0 %v653, 8
      %v716 = vpop.permute.xlu0 %715
      %717 = vrot.lane.b32.xlu0 %v654, 8
      %v718 = vpop.permute.xlu0 %717
      %719 = vrot.lane.b32.xlu0 %v655, 8
      %v720 = vpop.permute.xlu0 %719
      %721 = vrot.lane.b32.xlu0 %v656, 8
      %v722 = vpop.permute.xlu0 %721
      %723 = vrot.lane.b32.xlu0 %v657, 8
      %v724 = vpop.permute.xlu0 %723
      %725 = vrot.lane.b32.xlu0 %v658, 8
      %v726 = vpop.permute.xlu0 %725
      %727 = vrot.lane.b32.xlu0 %v659, 8
      %v728 = vpop.permute.xlu0 %727
      %729 = vrot.lane.b32.xlu0 %v660, 8
      %v730 = vpop.permute.xlu0 %729
      %731 = vrot.lane.b32.xlu0 %v661, 8
      %v732 = vpop.permute.xlu0 %731
      %733 = vrot.lane.b32.xlu0 %v662, 8
      %v734 = vpop.permute.xlu0 %733
      %735 = vrot.lane.b32.xlu0 %v663, 8
      %v736 = vpop.permute.xlu0 %735
      %737 = vrot.lane.b32.xlu0 %v664, 8
      %v738 = vpop.permute.xlu0 %737
      %739 = vrot.lane.b32.xlu0 %v665, 8
      %v740 = vpop.permute.xlu0 %739
      %741 = vrot.lane.b32.xlu0 %v666, 8
      %v742 = vpop.permute.xlu0 %741
      %743 = vrot.lane.b32.xlu0 %v667, 8
      %v744 = vpop.permute.xlu0 %743
      %745 = vrot.lane.b32.xlu0 %v668, 8
      %v746 = vpop.permute.xlu0 %745
      %747 = vrot.lane.b32.xlu0 %v669, 8
      %v748 = vpop.permute.xlu0 %747
      %749 = vrot.lane.b32.xlu0 %v670, 8
      %v750 = vpop.permute.xlu0 %749
      %791 = vrot.lane.b32.xlu0 %v671, 16
      %v792 = vpop.permute.xlu0 %791
      %793 = vrot.lane.b32.xlu0 %v672, 16
      %v794 = vpop.permute.xlu0 %793
      %795 = vrot.lane.b32.xlu0 %v673, 16
      %v796 = vpop.permute.xlu0 %795
      %797 = vrot.lane.b32.xlu0 %v674, 16
      %v798 = vpop.permute.xlu0 %797
      %799 = vrot.lane.b32.xlu0 %v675, 16
      %v800 = vpop.permute.xlu0 %799
      %801 = vrot.lane.b32.xlu0 %v676, 16
      %v802 = vpop.permute.xlu0 %801
      %803 = vrot.lane.b32.xlu0 %v677, 16
      %v804 = vpop.permute.xlu0 %803
      %805 = vrot.lane.b32.xlu0 %v678, 16
      %v806 = vpop.permute.xlu0 %805
      %807 = vrot.lane.b32.xlu0 %v679, 16
      %v808 = vpop.permute.xlu0 %807
      %809 = vrot.lane.b32.xlu0 %v680, 16
      %v810 = vpop.permute.xlu0 %809
      %811 = vrot.lane.b32.xlu0 %v681, 16
      %v812 = vpop.permute.xlu0 %811
      %813 = vrot.lane.b32.xlu0 %v682, 16
      %v814 = vpop.permute.xlu0 %813
      %815 = vrot.lane.b32.xlu0 %v683, 16
      %v816 = vpop.permute.xlu0 %815
      %817 = vrot.lane.b32.xlu0 %v684, 16
      %v818 = vpop.permute.xlu0 %817
      %819 = vrot.lane.b32.xlu0 %v685, 16
      %v820 = vpop.permute.xlu0 %819
      %821 = vrot.lane.b32.xlu0 %v686, 16
      %v822 = vpop.permute.xlu0 %821
      %823 = vrot.lane.b32.xlu0 %v687, 16
      %v824 = vpop.permute.xlu0 %823
      %825 = vrot.lane.b32.xlu0 %v688, 16
      %v826 = vpop.permute.xlu0 %825
      %827 = vrot.lane.b32.xlu0 %v689, 16
      %v828 = vpop.permute.xlu0 %827
      %829 = vrot.lane.b32.xlu0 %v690, 16
      %v830 = vpop.permute.xlu0 %829
      %v851 = vsel %vm295, %v631, %v712
      %v852 = vsel %vm295, %v632, %v714
      %v853 = vsel %vm295, %v633, %v716
      %v854 = vsel %vm295, %v634, %v718
      %v855 = vsel %vm295, %v635, %v720
      %v856 = vsel %vm295, %v636, %v722
      %v857 = vsel %vm295, %v637, %v724
      %v858 = vsel %vm295, %v638, %v726
      %v859 = vsel %vm295, %v639, %v728
      %v860 = vsel %vm295, %v640, %v730
      %v861 = vsel %vm295, %v641, %v732
      %v862 = vsel %vm295, %v642, %v734
      %v863 = vsel %vm295, %v643, %v736
      %v864 = vsel %vm295, %v644, %v738
      %v865 = vsel %vm295, %v645, %v740
      %v866 = vsel %vm295, %v646, %v742
      %v867 = vsel %vm295, %v647, %v744
      %v868 = vsel %vm295, %v648, %v746
      %v869 = vsel %vm295, %v649, %v748
      %v870 = vsel %vm295, %v650, %v750
      %v871 = vsel %vm606, %v851, %v792
      %v872 = vsel %vm606, %v852, %v794
      %v873 = vsel %vm606, %v853, %v796
      %v874 = vsel %vm606, %v854, %v798
      %v875 = vsel %vm606, %v855, %v800
      %v876 = vsel %vm606, %v856, %v802
      %v877 = vsel %vm606, %v857, %v804
      %v878 = vsel %vm606, %v858, %v806
      %v879 = vsel %vm606, %v859, %v808
      %v880 = vsel %vm606, %v860, %v810
      %v881 = vsel %vm606, %v861, %v812
      %v882 = vsel %vm606, %v862, %v814
      %v883 = vsel %vm606, %v863, %v816
      %v884 = vsel %vm606, %v864, %v818
      %v885 = vsel %vm606, %v865, %v820
      %v886 = vsel %vm606, %v866, %v822
      %v887 = vsel %vm606, %v867, %v824
      %v888 = vsel %vm606, %v868, %v826
      %v889 = vsel %vm606, %v869, %v828
      %v890 = vsel %vm606, %v870, %v830
      %s891 = scalar_lea.vmem %s1, 24
      %v892 = vld [vmem:[%s891] sm:$0xff]
      %v893 = vld [vmem:[%s891 + $0x8] sm:$0xff]
      %v894 = vld [vmem:[%s891 + $0x10] sm:$0xff]
      %vm895 = vcmask 195584
      %v897 = vsel %vm895, %v871, 0
      %v900 = vsel %vm895, %v872, 0
      %v903 = vsel %vm895, %v873, 0
      %v906 = vsel %vm895, %v874, 0
      %v909 = vsel %vm895, %v875, 0
      %v912 = vsel %vm895, %v876, 0
      %v915 = vsel %vm895, %v877, 0
      %v918 = vsel %vm895, %v878, 0
      %v921 = vsel %vm895, %v879, 0
      %v924 = vsel %vm895, %v880, 0
      %v927 = vsel %vm895, %v881, 0
      %v930 = vsel %vm895, %v882, 0
      %v933 = vsel %vm895, %v883, 0
      %v936 = vsel %vm895, %v884, 0
      %v939 = vsel %vm895, %v885, 0
      %v942 = vsel %vm895, %v886, 0
      %v945 = vsel %vm895, %v887, 0
      %v948 = vsel %vm895, %v888, 0
      %v951 = vsel %vm895, %v889, 0
      %v954 = vsel %vm895, %v890, 0
      %956 = vmatpush.msra.mxu0 0.0
      %957 = vmatpush.msra.mxu0 0.0
      %958 = vmatpush.msra.mxu0 0.0
      %959 = vmatpush.msra.mxu0 0.0
      %960 = vmatpush.msra.mxu0 0.0
      %961 = vmatpush.msra.mxu0 0.0
      %962 = vmatpush.msra.mxu0 0.0
      %963 = vmatpush.msra.mxu0 0.0
      %964 = vmatpush.msra.mxu0 0.0
      %965 = vmatpush.msra.mxu0 0.0
      %966 = vmatpush.msra.mxu0 0.0
      %967 = vmatpush.msra.mxu0 0.0
      %968 = vmatpush.msra.mxu0 0.0
      %969 = vmatpush.msra.mxu0 %v894
      %970 = vmatpush.msra.mxu0 %v893
      %971 = vmatpush.msra.mxu0 %v892
      %972 = vmatmul.f32.gmra.mxu0 %v897
      %v973 = vpop.f32.mrf.mxu0
      %v974 = vadd.f32 0.0, %v973
      %975 = vmatmul.f32.gmra.mxu0 %v900
      %v976 = vpop.f32.mrf.mxu0
      %v977 = vadd.f32 0.0, %v976
      %978 = vmatmul.f32.gmra.mxu0 %v903
      %v979 = vpop.f32.mrf.mxu0
      %v980 = vadd.f32 0.0, %v979
      %981 = vmatmul.f32.gmra.mxu0 %v906
      %v982 = vpop.f32.mrf.mxu0
      %v983 = vadd.f32 0.0, %v982
      %984 = vmatmul.f32.gmra.mxu0 %v909
      %v985 = vpop.f32.mrf.mxu0
      %v986 = vadd.f32 0.0, %v985
      %987 = vmatmul.f32.gmra.mxu0 %v912
      %v988 = vpop.f32.mrf.mxu0
      %v989 = vadd.f32 0.0, %v988
      %990 = vmatmul.f32.gmra.mxu0 %v915
      %v991 = vpop.f32.mrf.mxu0
      %v992 = vadd.f32 0.0, %v991
      %993 = vmatmul.f32.gmra.mxu0 %v918
      %v994 = vpop.f32.mrf.mxu0
      %v995 = vadd.f32 0.0, %v994
      %996 = vmatmul.f32.gmra.mxu0 %v921
      %v997 = vpop.f32.mrf.mxu0
      %v998 = vadd.f32 0.0, %v997
      %999 = vmatmul.f32.gmra.mxu0 %v924
      %v1000 = vpop.f32.mrf.mxu0
      %v1001 = vadd.f32 0.0, %v1000
      %1002 = vmatmul.f32.gmra.mxu0 %v927
      %v1003 = vpop.f32.mrf.mxu0
      %v1004 = vadd.f32 0.0, %v1003
      %1005 = vmatmul.f32.gmra.mxu0 %v930
      %v1006 = vpop.f32.mrf.mxu0
      %v1007 = vadd.f32 0.0, %v1006
      %1008 = vmatmul.f32.gmra.mxu0 %v933
      %v1009 = vpop.f32.mrf.mxu0
      %v1010 = vadd.f32 0.0, %v1009
      %1011 = vmatmul.f32.gmra.mxu0 %v936
      %v1012 = vpop.f32.mrf.mxu0
      %v1013 = vadd.f32 0.0, %v1012
      %1014 = vmatmul.f32.gmra.mxu0 %v939
      %v1015 = vpop.f32.mrf.mxu0
      %v1016 = vadd.f32 0.0, %v1015
      %1017 = vmatmul.f32.gmra.mxu0 %v942
      %v1018 = vpop.f32.mrf.mxu0
      %v1019 = vadd.f32 0.0, %v1018
      %1020 = vmatmul.f32.gmra.mxu0 %v945
      %v1021 = vpop.f32.mrf.mxu0
      %v1022 = vadd.f32 0.0, %v1021
      %1023 = vmatmul.f32.gmra.mxu0 %v948
      %v1024 = vpop.f32.mrf.mxu0
      %v1025 = vadd.f32 0.0, %v1024
      %1026 = vmatmul.f32.gmra.mxu0 %v951
      %v1027 = vpop.f32.mrf.mxu0
      %v1028 = vadd.f32 0.0, %v1027
      %1029 = vmatmul.f32.gmra.mxu0 %v954
      %v1030 = vpop.f32.mrf.mxu0
      %v1031 = vadd.f32 0.0, %v1030
      %1032 = vdwg.mxu0
      %v1034 = vsel %vm895, %v607, 0
      %v1037 = vsel %vm895, %v608, 0
      %v1040 = vsel %vm895, %v609, 0
      %v1043 = vsel %vm895, %v610, 0
      %v1046 = vsel %vm895, %v611, 0
      %v1049 = vsel %vm895, %v612, 0
      %v1052 = vsel %vm895, %v613, 0
      %v1055 = vsel %vm895, %v614, 0
      %v1058 = vsel %vm895, %v615, 0
      %v1061 = vsel %vm895, %v616, 0
      %v1064 = vsel %vm895, %v617, 0
      %v1067 = vsel %vm895, %v618, 0
      %v1070 = vsel %vm895, %v619, 0
      %v1073 = vsel %vm895, %v620, 0
      %v1076 = vsel %vm895, %v621, 0
      %v1079 = vsel %vm895, %v622, 0
      %v1082 = vsel %vm895, %v623, 0
      %v1085 = vsel %vm895, %v624, 0
      %v1088 = vsel %vm895, %v625, 0
      %v1091 = vsel %vm895, %v626, 0
      %1093 = vmatpush.msra.mxu0 0.0
      %1094 = vmatpush.msra.mxu0 0.0
      %1095 = vmatpush.msra.mxu0 0.0
      %1096 = vmatpush.msra.mxu0 0.0
      %1097 = vmatpush.msra.mxu0 0.0
      %1098 = vmatpush.msra.mxu0 0.0
      %1099 = vmatpush.msra.mxu0 0.0
      %1100 = vmatpush.msra.mxu0 0.0
      %1101 = vmatpush.msra.mxu0 0.0
      %1102 = vmatpush.msra.mxu0 0.0
      %1103 = vmatpush.msra.mxu0 0.0
      %1104 = vmatpush.msra.mxu0 0.0
      %1105 = vmatpush.msra.mxu0 0.0
      %1106 = vmatpush.msra.mxu0 %v629
      %1107 = vmatpush.msra.mxu0 %v628
      %1108 = vmatpush.msra.mxu0 %v627
      %1109 = vmatmul.f32.gmra.mxu0 %v1034
      %v1110 = vpop.f32.mrf.mxu0
      %v1111 = vadd.f32 %v974, %v1110
      %1112 = vmatmul.f32.gmra.mxu0 %v1037
      %v1113 = vpop.f32.mrf.mxu0
      %v1114 = vadd.f32 %v977, %v1113
      %1115 = vmatmul.f32.gmra.mxu0 %v1040
      %v1116 = vpop.f32.mrf.mxu0
      %v1117 = vadd.f32 %v980, %v1116
      %1118 = vmatmul.f32.gmra.mxu0 %v1043
      %v1119 = vpop.f32.mrf.mxu0
      %v1120 = vadd.f32 %v983, %v1119
      %1121 = vmatmul.f32.gmra.mxu0 %v1046
      %v1122 = vpop.f32.mrf.mxu0
      %v1123 = vadd.f32 %v986, %v1122
      %1124 = vmatmul.f32.gmra.mxu0 %v1049
      %v1125 = vpop.f32.mrf.mxu0
      %v1126 = vadd.f32 %v989, %v1125
      %1127 = vmatmul.f32.gmra.mxu0 %v1052
      %v1128 = vpop.f32.mrf.mxu0
      %v1129 = vadd.f32 %v992, %v1128
      %1130 = vmatmul.f32.gmra.mxu0 %v1055
      %v1131 = vpop.f32.mrf.mxu0
      %v1132 = vadd.f32 %v995, %v1131
      %1133 = vmatmul.f32.gmra.mxu0 %v1058
      %v1134 = vpop.f32.mrf.mxu0
      %v1135 = vadd.f32 %v998, %v1134
      %1136 = vmatmul.f32.gmra.mxu0 %v1061
      %v1137 = vpop.f32.mrf.mxu0
      %v1138 = vadd.f32 %v1001, %v1137
      %1139 = vmatmul.f32.gmra.mxu0 %v1064
      %v1140 = vpop.f32.mrf.mxu0
      %v1141 = vadd.f32 %v1004, %v1140
      %1142 = vmatmul.f32.gmra.mxu0 %v1067
      %v1143 = vpop.f32.mrf.mxu0
      %v1144 = vadd.f32 %v1007, %v1143
      %1145 = vmatmul.f32.gmra.mxu0 %v1070
      %v1146 = vpop.f32.mrf.mxu0
      %v1147 = vadd.f32 %v1010, %v1146
      %1148 = vmatmul.f32.gmra.mxu0 %v1073
      %v1149 = vpop.f32.mrf.mxu0
      %v1150 = vadd.f32 %v1013, %v1149
      %1151 = vmatmul.f32.gmra.mxu0 %v1076
      %v1152 = vpop.f32.mrf.mxu0
      %v1153 = vadd.f32 %v1016, %v1152
      %1154 = vmatmul.f32.gmra.mxu0 %v1079
      %v1155 = vpop.f32.mrf.mxu0
      %v1156 = vadd.f32 %v1019, %v1155
      %1157 = vmatmul.f32.gmra.mxu0 %v1082
      %v1158 = vpop.f32.mrf.mxu0
      %v1159 = vadd.f32 %v1022, %v1158
      %1160 = vmatmul.f32.gmra.mxu0 %v1085
      %v1161 = vpop.f32.mrf.mxu0
      %v1162 = vadd.f32 %v1025, %v1161
      %1163 = vmatmul.f32.gmra.mxu0 %v1088
      %v1164 = vpop.f32.mrf.mxu0
      %v1165 = vadd.f32 %v1028, %v1164
      %1166 = vmatmul.f32.gmra.mxu0 %v1091
      %v1167 = vpop.f32.mrf.mxu0
      %v1168 = vadd.f32 %v1031, %v1167
      %1169 = vdwg.mxu0
      %v1170 = vld [vmem:[%s294] sm:$0xff]
      %v1171 = vld [vmem:[%s294 + $0x8] sm:$0xff]
      %v1172 = vld [vmem:[%s294 + $0x18] sm:$0xff]
      %v1173 = vld [vmem:[%s294 + $0x20] sm:$0xff]
      %v1174 = vld [vmem:[%s294 + $0x30] sm:$0xff]
      %v1175 = vld [vmem:[%s294 + $0x38] sm:$0xff]
      %v1176 = vld [vmem:[%s294 + $0x48] sm:$0xff]
      %v1177 = vld [vmem:[%s294 + $0x50] sm:$0xff]
      %v1178 = vld [vmem:[%s294 + $0x60] sm:$0xff]
      %v1179 = vld [vmem:[%s294 + $0x68] sm:$0xff]
      %v1180 = vld [vmem:[%s294 + $0x78] sm:$0xff]
      %v1181 = vld [vmem:[%s294 + $0x80] sm:$0xff]
      %v1182 = vld [vmem:[%s294 + $0x90] sm:$0xff]
      %v1183 = vld [vmem:[%s294 + $0x98] sm:$0xff]
      %v1184 = vld [vmem:[%s294 + $0xa8] sm:$0xff]
      %v1185 = vld [vmem:[%s294 + $0xb0] sm:$0xff]
      %v1186 = vld [vmem:[%s294 + $0xc0] sm:$0xff]
      %v1187 = vld [vmem:[%s294 + $0xc8] sm:$0xff]
      %v1188 = vld [vmem:[%s294 + $0xd8] sm:$0xff]
      %v1189 = vld [vmem:[%s294 + $0xe0] sm:$0xff]
      %v1190 = vld [vmem:[%s294 + $0x1] sm:$0xff]
      %v1191 = vld [vmem:[%s294 + $0x9] sm:$0xff]
      %v1192 = vld [vmem:[%s294 + $0x19] sm:$0xff]
      %v1193 = vld [vmem:[%s294 + $0x21] sm:$0xff]
      %v1194 = vld [vmem:[%s294 + $0x31] sm:$0xff]
      %v1195 = vld [vmem:[%s294 + $0x39] sm:$0xff]
      %v1196 = vld [vmem:[%s294 + $0x49] sm:$0xff]
      %v1197 = vld [vmem:[%s294 + $0x51] sm:$0xff]
      %v1198 = vld [vmem:[%s294 + $0x61] sm:$0xff]
      %v1199 = vld [vmem:[%s294 + $0x69] sm:$0xff]
      %v1200 = vld [vmem:[%s294 + $0x79] sm:$0xff]
      %v1201 = vld [vmem:[%s294 + $0x81] sm:$0xff]
      %v1202 = vld [vmem:[%s294 + $0x91] sm:$0xff]
      %v1203 = vld [vmem:[%s294 + $0x99] sm:$0xff]
      %v1204 = vld [vmem:[%s294 + $0xa9] sm:$0xff]
      %v1205 = vld [vmem:[%s294 + $0xb1] sm:$0xff]
      %v1206 = vld [vmem:[%s294 + $0xc1] sm:$0xff]
      %v1207 = vld [vmem:[%s294 + $0xc9] sm:$0xff]
      %v1208 = vld [vmem:[%s294 + $0xd9] sm:$0xff]
      %v1209 = vld [vmem:[%s294 + $0xe1] sm:$0xff]
      %v1210 = vld [vmem:[%s294 + $0x2] sm:$0xff]
      %v1211 = vld [vmem:[%s294 + $0xa] sm:$0xff]
      %v1212 = vld [vmem:[%s294 + $0x1a] sm:$0xff]
      %v1213 = vld [vmem:[%s294 + $0x22] sm:$0xff]
      %v1214 = vld [vmem:[%s294 + $0x32] sm:$0xff]
      %v1215 = vld [vmem:[%s294 + $0x3a] sm:$0xff]
      %v1216 = vld [vmem:[%s294 + $0x4a] sm:$0xff]
      %v1217 = vld [vmem:[%s294 + $0x52] sm:$0xff]
      %v1218 = vld [vmem:[%s294 + $0x62] sm:$0xff]
      %v1219 = vld [vmem:[%s294 + $0x6a] sm:$0xff]
      %v1220 = vld [vmem:[%s294 + $0x7a] sm:$0xff]
      %v1221 = vld [vmem:[%s294 + $0x82] sm:$0xff]
      %v1222 = vld [vmem:[%s294 + $0x92] sm:$0xff]
      %v1223 = vld [vmem:[%s294 + $0x9a] sm:$0xff]
      %v1224 = vld [vmem:[%s294 + $0xaa] sm:$0xff]
      %v1225 = vld [vmem:[%s294 + $0xb2] sm:$0xff]
      %v1226 = vld [vmem:[%s294 + $0xc2] sm:$0xff]
      %v1227 = vld [vmem:[%s294 + $0xca] sm:$0xff]
      %v1228 = vld [vmem:[%s294 + $0xda] sm:$0xff]
      %v1229 = vld [vmem:[%s294 + $0xe2] sm:$0xff]
      %1250 = vrot.lane.b32.xlu0 %v1190, 8
      %v1251 = vpop.permute.xlu0 %1250
      %1252 = vrot.lane.b32.xlu0 %v1191, 8
      %v1253 = vpop.permute.xlu0 %1252
      %1254 = vrot.lane.b32.xlu0 %v1192, 8
      %v1255 = vpop.permute.xlu0 %1254
      %1256 = vrot.lane.b32.xlu0 %v1193, 8
      %v1257 = vpop.permute.xlu0 %1256
      %1258 = vrot.lane.b32.xlu0 %v1194, 8
      %v1259 = vpop.permute.xlu0 %1258
      %1260 = vrot.lane.b32.xlu0 %v1195, 8
      %v1261 = vpop.permute.xlu0 %1260
      %1262 = vrot.lane.b32.xlu0 %v1196, 8
      %v1263 = vpop.permute.xlu0 %1262
      %1264 = vrot.lane.b32.xlu0 %v1197, 8
      %v1265 = vpop.permute.xlu0 %1264
      %1266 = vrot.lane.b32.xlu0 %v1198, 8
      %v1267 = vpop.permute.xlu0 %1266
      %1268 = vrot.lane.b32.xlu0 %v1199, 8
      %v1269 = vpop.permute.xlu0 %1268
      %1270 = vrot.lane.b32.xlu0 %v1200, 8
      %v1271 = vpop.permute.xlu0 %1270
      %1272 = vrot.lane.b32.xlu0 %v1201, 8
      %v1273 = vpop.permute.xlu0 %1272
      %1274 = vrot.lane.b32.xlu0 %v1202, 8
      %v1275 = vpop.permute.xlu0 %1274
      %1276 = vrot.lane.b32.xlu0 %v1203, 8
      %v1277 = vpop.permute.xlu0 %1276
      %1278 = vrot.lane.b32.xlu0 %v1204, 8
      %v1279 = vpop.permute.xlu0 %1278
      %1280 = vrot.lane.b32.xlu0 %v1205, 8
      %v1281 = vpop.permute.xlu0 %1280
      %1282 = vrot.lane.b32.xlu0 %v1206, 8
      %v1283 = vpop.permute.xlu0 %1282
      %1284 = vrot.lane.b32.xlu0 %v1207, 8
      %v1285 = vpop.permute.xlu0 %1284
      %1286 = vrot.lane.b32.xlu0 %v1208, 8
      %v1287 = vpop.permute.xlu0 %1286
      %1288 = vrot.lane.b32.xlu0 %v1209, 8
      %v1289 = vpop.permute.xlu0 %1288
      %1330 = vrot.lane.b32.xlu0 %v1210, 16
      %v1331 = vpop.permute.xlu0 %1330
      %1332 = vrot.lane.b32.xlu0 %v1211, 16
      %v1333 = vpop.permute.xlu0 %1332
      %1334 = vrot.lane.b32.xlu0 %v1212, 16
      %v1335 = vpop.permute.xlu0 %1334
      %1336 = vrot.lane.b32.xlu0 %v1213, 16
      %v1337 = vpop.permute.xlu0 %1336
      %1338 = vrot.lane.b32.xlu0 %v1214, 16
      %v1339 = vpop.permute.xlu0 %1338
      %1340 = vrot.lane.b32.xlu0 %v1215, 16
      %v1341 = vpop.permute.xlu0 %1340
      %1342 = vrot.lane.b32.xlu0 %v1216, 16
      %v1343 = vpop.permute.xlu0 %1342
      %1344 = vrot.lane.b32.xlu0 %v1217, 16
      %v1345 = vpop.permute.xlu0 %1344
      %1346 = vrot.lane.b32.xlu0 %v1218, 16
      %v1347 = vpop.permute.xlu0 %1346
      %1348 = vrot.lane.b32.xlu0 %v1219, 16
      %v1349 = vpop.permute.xlu0 %1348
      %1350 = vrot.lane.b32.xlu0 %v1220, 16
      %v1351 = vpop.permute.xlu0 %1350
      %1352 = vrot.lane.b32.xlu0 %v1221, 16
      %v1353 = vpop.permute.xlu0 %1352
      %1354 = vrot.lane.b32.xlu0 %v1222, 16
      %v1355 = vpop.permute.xlu0 %1354
      %1356 = vrot.lane.b32.xlu0 %v1223, 16
      %v1357 = vpop.permute.xlu0 %1356
      %1358 = vrot.lane.b32.xlu0 %v1224, 16
      %v1359 = vpop.permute.xlu0 %1358
      %1360 = vrot.lane.b32.xlu0 %v1225, 16
      %v1361 = vpop.permute.xlu0 %1360
      %1362 = vrot.lane.b32.xlu0 %v1226, 16
      %v1363 = vpop.permute.xlu0 %1362
      %1364 = vrot.lane.b32.xlu0 %v1227, 16
      %v1365 = vpop.permute.xlu0 %1364
      %1366 = vrot.lane.b32.xlu0 %v1228, 16
      %v1367 = vpop.permute.xlu0 %1366
      %1368 = vrot.lane.b32.xlu0 %v1229, 16
      %v1369 = vpop.permute.xlu0 %1368
      %v1390 = vsel %vm295, %v1170, %v1251
      %v1391 = vsel %vm295, %v1171, %v1253
      %v1392 = vsel %vm295, %v1172, %v1255
      %v1393 = vsel %vm295, %v1173, %v1257
      %v1394 = vsel %vm295, %v1174, %v1259
      %v1395 = vsel %vm295, %v1175, %v1261
      %v1396 = vsel %vm295, %v1176, %v1263
      %v1397 = vsel %vm295, %v1177, %v1265
      %v1398 = vsel %vm295, %v1178, %v1267
      %v1399 = vsel %vm295, %v1179, %v1269
      %v1400 = vsel %vm295, %v1180, %v1271
      %v1401 = vsel %vm295, %v1181, %v1273
      %v1402 = vsel %vm295, %v1182, %v1275
      %v1403 = vsel %vm295, %v1183, %v1277
      %v1404 = vsel %vm295, %v1184, %v1279
      %v1405 = vsel %vm295, %v1185, %v1281
      %v1406 = vsel %vm295, %v1186, %v1283
      %v1407 = vsel %vm295, %v1187, %v1285
      %v1408 = vsel %vm295, %v1188, %v1287
      %v1409 = vsel %vm295, %v1189, %v1289
      %v1410 = vsel %vm606, %v1390, %v1331
      %v1411 = vsel %vm606, %v1391, %v1333
      %v1412 = vsel %vm606, %v1392, %v1335
      %v1413 = vsel %vm606, %v1393, %v1337
      %v1414 = vsel %vm606, %v1394, %v1339
      %v1415 = vsel %vm606, %v1395, %v1341
      %v1416 = vsel %vm606, %v1396, %v1343
      %v1417 = vsel %vm606, %v1397, %v1345
      %v1418 = vsel %vm606, %v1398, %v1347
      %v1419 = vsel %vm606, %v1399, %v1349
      %v1420 = vsel %vm606, %v1400, %v1351
      %v1421 = vsel %vm606, %v1401, %v1353
      %v1422 = vsel %vm606, %v1402, %v1355
      %v1423 = vsel %vm606, %v1403, %v1357
      %v1424 = vsel %vm606, %v1404, %v1359
      %v1425 = vsel %vm606, %v1405, %v1361
      %v1426 = vsel %vm606, %v1406, %v1363
      %v1427 = vsel %vm606, %v1407, %v1365
      %v1428 = vsel %vm606, %v1408, %v1367
      %v1429 = vsel %vm606, %v1409, %v1369
      %s1430 = scalar_lea.vmem %s1, 48
      %v1431 = vld [vmem:[%s1430] sm:$0xff]
      %v1432 = vld [vmem:[%s1430 + $0x8] sm:$0xff]
      %v1433 = vld [vmem:[%s1430 + $0x10] sm:$0xff]
      %v1435 = vsel %vm895, %v1410, 0
      %v1438 = vsel %vm895, %v1411, 0
      %v1441 = vsel %vm895, %v1412, 0
      %v1444 = vsel %vm895, %v1413, 0
      %v1447 = vsel %vm895, %v1414, 0
      %v1450 = vsel %vm895, %v1415, 0
      %v1453 = vsel %vm895, %v1416, 0
      %v1456 = vsel %vm895, %v1417, 0
      %v1459 = vsel %vm895, %v1418, 0
      %v1462 = vsel %vm895, %v1419, 0
      %v1465 = vsel %vm895, %v1420, 0
      %v1468 = vsel %vm895, %v1421, 0
      %v1471 = vsel %vm895, %v1422, 0
      %v1474 = vsel %vm895, %v1423, 0
      %v1477 = vsel %vm895, %v1424, 0
      %v1480 = vsel %vm895, %v1425, 0
      %v1483 = vsel %vm895, %v1426, 0
      %v1486 = vsel %vm895, %v1427, 0
      %v1489 = vsel %vm895, %v1428, 0
      %v1492 = vsel %vm895, %v1429, 0
      %1494 = vmatpush.msra.mxu0 0.0
      %1495 = vmatpush.msra.mxu0 0.0
      %1496 = vmatpush.msra.mxu0 0.0
      %1497 = vmatpush.msra.mxu0 0.0
      %1498 = vmatpush.msra.mxu0 0.0
      %1499 = vmatpush.msra.mxu0 0.0
      %1500 = vmatpush.msra.mxu0 0.0
      %1501 = vmatpush.msra.mxu0 0.0
      %1502 = vmatpush.msra.mxu0 0.0
      %1503 = vmatpush.msra.mxu0 0.0
      %1504 = vmatpush.msra.mxu0 0.0
      %1505 = vmatpush.msra.mxu0 0.0
      %1506 = vmatpush.msra.mxu0 0.0
      %1507 = vmatpush.msra.mxu0 %v1433
      %1508 = vmatpush.msra.mxu0 %v1432
      %1509 = vmatpush.msra.mxu0 %v1431
      %1510 = vmatmul.f32.gmra.mxu0 %v1435
      %v1511 = vpop.f32.mrf.mxu0
      %v1512 = vadd.f32 0.0, %v1511
      %1513 = vmatmul.f32.gmra.mxu0 %v1438
      %v1514 = vpop.f32.mrf.mxu0
      %v1515 = vadd.f32 0.0, %v1514
      %1516 = vmatmul.f32.gmra.mxu0 %v1441
      %v1517 = vpop.f32.mrf.mxu0
      %v1518 = vadd.f32 0.0, %v1517
      %1519 = vmatmul.f32.gmra.mxu0 %v1444
      %v1520 = vpop.f32.mrf.mxu0
      %v1521 = vadd.f32 0.0, %v1520
      %1522 = vmatmul.f32.gmra.mxu0 %v1447
      %v1523 = vpop.f32.mrf.mxu0
      %v1524 = vadd.f32 0.0, %v1523
      %1525 = vmatmul.f32.gmra.mxu0 %v1450
      %v1526 = vpop.f32.mrf.mxu0
      %v1527 = vadd.f32 0.0, %v1526
      %1528 = vmatmul.f32.gmra.mxu0 %v1453
      %v1529 = vpop.f32.mrf.mxu0
      %v1530 = vadd.f32 0.0, %v1529
      %1531 = vmatmul.f32.gmra.mxu0 %v1456
      %v1532 = vpop.f32.mrf.mxu0
      %v1533 = vadd.f32 0.0, %v1532
      %1534 = vmatmul.f32.gmra.mxu0 %v1459
      %v1535 = vpop.f32.mrf.mxu0
      %v1536 = vadd.f32 0.0, %v1535
      %1537 = vmatmul.f32.gmra.mxu0 %v1462
      %v1538 = vpop.f32.mrf.mxu0
      %v1539 = vadd.f32 0.0, %v1538
      %1540 = vmatmul.f32.gmra.mxu0 %v1465
      %v1541 = vpop.f32.mrf.mxu0
      %v1542 = vadd.f32 0.0, %v1541
      %1543 = vmatmul.f32.gmra.mxu0 %v1468
      %v1544 = vpop.f32.mrf.mxu0
      %v1545 = vadd.f32 0.0, %v1544
      %1546 = vmatmul.f32.gmra.mxu0 %v1471
      %v1547 = vpop.f32.mrf.mxu0
      %v1548 = vadd.f32 0.0, %v1547
      %1549 = vmatmul.f32.gmra.mxu0 %v1474
      %v1550 = vpop.f32.mrf.mxu0
      %v1551 = vadd.f32 0.0, %v1550
      %1552 = vmatmul.f32.gmra.mxu0 %v1477
      %v1553 = vpop.f32.mrf.mxu0
      %v1554 = vadd.f32 0.0, %v1553
      %1555 = vmatmul.f32.gmra.mxu0 %v1480
      %v1556 = vpop.f32.mrf.mxu0
      %v1557 = vadd.f32 0.0, %v1556
      %1558 = vmatmul.f32.gmra.mxu0 %v1483
      %v1559 = vpop.f32.mrf.mxu0
      %v1560 = vadd.f32 0.0, %v1559
      %1561 = vmatmul.f32.gmra.mxu0 %v1486
      %v1562 = vpop.f32.mrf.mxu0
      %v1563 = vadd.f32 0.0, %v1562
      %1564 = vmatmul.f32.gmra.mxu0 %v1489
      %v1565 = vpop.f32.mrf.mxu0
      %v1566 = vadd.f32 0.0, %v1565
      %1567 = vmatmul.f32.gmra.mxu0 %v1492
      %v1568 = vpop.f32.mrf.mxu0
      %v1569 = vadd.f32 0.0, %v1568
      %1570 = vdwg.mxu0
      %v1571 = vadd.f32 %v1111, %v1512
      %v1572 = vadd.f32 %v1114, %v1515
      %v1573 = vadd.f32 %v1117, %v1518
      %v1574 = vadd.f32 %v1120, %v1521
      %v1575 = vadd.f32 %v1123, %v1524
      %v1576 = vadd.f32 %v1126, %v1527
      %v1577 = vadd.f32 %v1129, %v1530
      %v1578 = vadd.f32 %v1132, %v1533
      %v1579 = vadd.f32 %v1135, %v1536
      %v1580 = vadd.f32 %v1138, %v1539
      %v1581 = vadd.f32 %v1141, %v1542
      %v1582 = vadd.f32 %v1144, %v1545
      %v1583 = vadd.f32 %v1147, %v1548
      %v1584 = vadd.f32 %v1150, %v1551
      %v1585 = vadd.f32 %v1153, %v1554
      %v1586 = vadd.f32 %v1156, %v1557
      %v1587 = vadd.f32 %v1159, %v1560
      %v1588 = vadd.f32 %v1162, %v1563
      %v1589 = vadd.f32 %v1165, %v1566
      %v1590 = vadd.f32 %v1168, %v1569
      %v1591 = vld [vmem:[%s2] sm:$0x1]
      %v1593 = vperm.slane %v1591, 0
      %v1595 = vadd.f32 %v1571, %v1593
      %v1596 = vadd.f32 %v1572, %v1593
      %v1597 = vadd.f32 %v1573, %v1593
      %v1598 = vadd.f32 %v1574, %v1593
      %v1599 = vadd.f32 %v1575, %v1593
      %v1600 = vadd.f32 %v1576, %v1593
      %v1601 = vadd.f32 %v1577, %v1593
      %v1602 = vadd.f32 %v1578, %v1593
      %v1603 = vadd.f32 %v1579, %v1593
      %v1604 = vadd.f32 %v1580, %v1593
      %v1605 = vadd.f32 %v1581, %v1593
      %v1606 = vadd.f32 %v1582, %v1593
      %v1607 = vadd.f32 %v1583, %v1593
      %v1608 = vadd.f32 %v1584, %v1593
      %v1609 = vadd.f32 %v1585, %v1593
      %v1610 = vadd.f32 %v1586, %v1593
      %v1611 = vadd.f32 %v1587, %v1593
      %v1612 = vadd.f32 %v1588, %v1593
      %v1613 = vadd.f32 %v1589, %v1593
      %v1614 = vadd.f32 %v1590, %v1593
      %v1615 = vmax.f32 %v1595, 0.0
      %v1616 = vmax.f32 %v1596, 0.0
      %v1617 = vmax.f32 %v1597, 0.0
      %v1618 = vmax.f32 %v1598, 0.0
      %v1619 = vmax.f32 %v1599, 0.0
      %v1620 = vmax.f32 %v1600, 0.0
      %v1621 = vmax.f32 %v1601, 0.0
      %v1622 = vmax.f32 %v1602, 0.0
      %v1623 = vmax.f32 %v1603, 0.0
      %v1624 = vmax.f32 %v1604, 0.0
      %v1625 = vmax.f32 %v1605, 0.0
      %v1626 = vmax.f32 %v1606, 0.0
      %v1627 = vmax.f32 %v1607, 0.0
      %v1628 = vmax.f32 %v1608, 0.0
      %v1629 = vmax.f32 %v1609, 0.0
      %v1630 = vmax.f32 %v1610, 0.0
      %v1631 = vmax.f32 %v1611, 0.0
      %v1632 = vmax.f32 %v1612, 0.0
      %v1633 = vmax.f32 %v1613, 0.0
      %v1634 = vmax.f32 %v1614, 0.0
      %1635 = vst.msk [vmem:[#allocation3 + $0x1] sm:$0xff] %vm295, %v1615
      %1636 = vst.msk [vmem:[#allocation3 + $0x9] sm:$0xff] %vm295, %v1616
      %1637 = vst.msk [vmem:[#allocation3 + $0x19] sm:$0xff] %vm295, %v1617
      %1638 = vst.msk [vmem:[#allocation3 + $0x21] sm:$0xff] %vm295, %v1618
      %1639 = vst.msk [vmem:[#allocation3 + $0x31] sm:$0xff] %vm295, %v1619
      %1640 = vst.msk [vmem:[#allocation3 + $0x39] sm:$0xff] %vm295, %v1620
      %1641 = vst.msk [vmem:[#allocation3 + $0x49] sm:$0xff] %vm295, %v1621
      %1642 = vst.msk [vmem:[#allocation3 + $0x51] sm:$0xff] %vm295, %v1622
      %1643 = vst.msk [vmem:[#allocation3 + $0x61] sm:$0xff] %vm295, %v1623
      %1644 = vst.msk [vmem:[#allocation3 + $0x69] sm:$0xff] %vm295, %v1624
      %1645 = vst.msk [vmem:[#allocation3 + $0x79] sm:$0xff] %vm295, %v1625
      %1646 = vst.msk [vmem:[#allocation3 + $0x81] sm:$0xff] %vm295, %v1626
      %1647 = vst.msk [vmem:[#allocation3 + $0x91] sm:$0xff] %vm295, %v1627
      %1648 = vst.msk [vmem:[#allocation3 + $0x99] sm:$0xff] %vm295, %v1628
      %1649 = vst.msk [vmem:[#allocation3 + $0xa9] sm:$0xff] %vm295, %v1629
      %1650 = vst.msk [vmem:[#allocation3 + $0xb1] sm:$0xff] %vm295, %v1630
      %1651 = vst.msk [vmem:[#allocation3 + $0xc1] sm:$0xff] %vm295, %v1631
      %1652 = vst.msk [vmem:[#allocation3 + $0xc9] sm:$0xff] %vm295, %v1632
      %1653 = vst.msk [vmem:[#allocation3 + $0xd9] sm:$0xff] %vm295, %v1633
      %1654 = vst.msk [vmem:[#allocation3 + $0xe1] sm:$0xff] %vm295, %v1634
      %1655 = vst.msk [vmem:[#allocation3] sm:$0x1] %vm251, 0.0
      %1656 = vst.msk [vmem:[#allocation3 + $0x18] sm:$0x1] %vm251, 0.0
      %1657 = vst.msk [vmem:[#allocation3 + $0x30] sm:$0x1] %vm251, 0.0
      %1658 = vst.msk [vmem:[#allocation3 + $0x48] sm:$0x1] %vm251, 0.0
      %1659 = vst.msk [vmem:[#allocation3 + $0x60] sm:$0x1] %vm251, 0.0
      %1660 = vst.msk [vmem:[#allocation3 + $0x78] sm:$0x1] %vm251, 0.0
      %1661 = vst.msk [vmem:[#allocation3 + $0x90] sm:$0x1] %vm251, 0.0
      %1662 = vst.msk [vmem:[#allocation3 + $0xa8] sm:$0x1] %vm251, 0.0
      %1663 = vst.msk [vmem:[#allocation3 + $0xc0] sm:$0x1] %vm251, 0.0
      %1664 = vst.msk [vmem:[#allocation3 + $0xd8] sm:$0x1] %vm251, 0.0
      %1665 = vst.msk [vmem:[#allocation3 + $0x11] sm:$0x1] %vm251, 0.0
      %1666 = vst.msk [vmem:[#allocation3 + $0x29] sm:$0x1] %vm251, 0.0
      %1667 = vst.msk [vmem:[#allocation3 + $0x41] sm:$0x1] %vm251, 0.0
      %1668 = vst.msk [vmem:[#allocation3 + $0x59] sm:$0x1] %vm251, 0.0
      %1669 = vst.msk [vmem:[#allocation3 + $0x71] sm:$0x1] %vm251, 0.0
      %1670 = vst.msk [vmem:[#allocation3 + $0x89] sm:$0x1] %vm251, 0.0
      %1671 = vst.msk [vmem:[#allocation3 + $0xa1] sm:$0x1] %vm251, 0.0
      %1672 = vst.msk [vmem:[#allocation3 + $0xb9] sm:$0x1] %vm251, 0.0
      %1673 = vst.msk [vmem:[#allocation3 + $0xd1] sm:$0x1] %vm251, 0.0
      %1674 = vst.msk [vmem:[#allocation3 + $0xe9] sm:$0x1] %vm251, 0.0
      // Predicated region
      $region57: #{tpu_custom_call.1} parent=39 // pred_check
        %p1675 = pneg %p327
      $region58: #{tpu_custom_call.1} parent=39 // pred_check_branch
        %1677 = sbr.rel (%p1675) target = $region60
      $region59: #{tpu_custom_call.1} parent=39 // pred_region
        %1678 = vst.msk [vmem:[#allocation3] sm:$0xff] %vm295, 0.0
        %1679 = vst.msk [vmem:[#allocation3 + $0x8] sm:$0xff] %vm295, 0.0
        %vm1680 = vcmask 58368
        %1681 = vst.msk [vmem:[#allocation3 + $0x10] sm:$0x3] %vm1680, 0.0
      $region60: #{tpu_custom_call.1} parent=39 // pred_fallthru
        _
      // Predicated region
      $region61: #{tpu_custom_call.1} parent=39 // pred_check
        %p1682 = pneg %p354
      $region62: #{tpu_custom_call.1} parent=39 // pred_check_branch
        %1684 = sbr.rel (%p1682) target = $region64
      $region63: #{tpu_custom_call.1} parent=39 // pred_region
        %s1685 = scalar_lea.vmem [#allocation3], 216
        %1686 = vst.msk [vmem:[%s1685] sm:$0xff] %vm295, 0.0
        %1687 = vst.msk [vmem:[%s1685 + $0x8] sm:$0xff] %vm295, 0.0
        %vm1688 = vcmask 58368
        %1689 = vst.msk [vmem:[%s1685 + $0x10] sm:$0x3] %vm1688, 0.0
      $region64: #{tpu_custom_call.1} parent=39 // pred_fallthru
        _
      %v1690 = vld [vmem:[#allocation3] sm:$0xff]
      %v1691 = vld [vmem:[#allocation3 + $0x8] sm:$0xff]
      %v1692 = vld [vmem:[#allocation3 + $0x18] sm:$0xff]
      %v1693 = vld [vmem:[#allocation3 + $0x20] sm:$0xff]
      %v1694 = vld [vmem:[#allocation3 + $0x30] sm:$0xff]
      %v1695 = vld [vmem:[#allocation3 + $0x38] sm:$0xff]
      %v1696 = vld [vmem:[#allocation3 + $0x48] sm:$0xff]
      %v1697 = vld [vmem:[#allocation3 + $0x50] sm:$0xff]
      %v1698 = vld [vmem:[#allocation3 + $0x60] sm:$0xff]
      %v1699 = vld [vmem:[#allocation3 + $0x68] sm:$0xff]
      %v1700 = vld [vmem:[#allocation3 + $0x78] sm:$0xff]
      %v1701 = vld [vmem:[#allocation3 + $0x80] sm:$0xff]
      %v1702 = vld [vmem:[#allocation3 + $0x90] sm:$0xff]
      %v1703 = vld [vmem:[#allocation3 + $0x98] sm:$0xff]
      %v1704 = vld [vmem:[#allocation3 + $0xa8] sm:$0xff]
      %v1705 = vld [vmem:[#allocation3 + $0xb0] sm:$0xff]
      %v1706 = vld [vmem:[#allocation3 + $0x1] sm:$0xff]
      %v1707 = vld [vmem:[#allocation3 + $0x9] sm:$0xff]
      %v1708 = vld [vmem:[#allocation3 + $0x19] sm:$0xff]
      %v1709 = vld [vmem:[#allocation3 + $0x21] sm:$0xff]
      %v1710 = vld [vmem:[#allocation3 + $0x31] sm:$0xff]
      %v1711 = vld [vmem:[#allocation3 + $0x39] sm:$0xff]
      %v1712 = vld [vmem:[#allocation3 + $0x49] sm:$0xff]
      %v1713 = vld [vmem:[#allocation3 + $0x51] sm:$0xff]
      %v1714 = vld [vmem:[#allocation3 + $0x61] sm:$0xff]
      %v1715 = vld [vmem:[#allocation3 + $0x69] sm:$0xff]
      %v1716 = vld [vmem:[#allocation3 + $0x79] sm:$0xff]
      %v1717 = vld [vmem:[#allocation3 + $0x81] sm:$0xff]
      %v1718 = vld [vmem:[#allocation3 + $0x91] sm:$0xff]
      %v1719 = vld [vmem:[#allocation3 + $0x99] sm:$0xff]
      %v1720 = vld [vmem:[#allocation3 + $0xa9] sm:$0xff]
      %v1721 = vld [vmem:[#allocation3 + $0xb1] sm:$0xff]
      %v1722 = vld [vmem:[#allocation3 + $0x2] sm:$0xff]
      %v1723 = vld [vmem:[#allocation3 + $0xa] sm:$0xff]
      %v1724 = vld [vmem:[#allocation3 + $0x1a] sm:$0xff]
      %v1725 = vld [vmem:[#allocation3 + $0x22] sm:$0xff]
      %v1726 = vld [vmem:[#allocation3 + $0x32] sm:$0xff]
      %v1727 = vld [vmem:[#allocation3 + $0x3a] sm:$0xff]
      %v1728 = vld [vmem:[#allocation3 + $0x4a] sm:$0xff]
      %v1729 = vld [vmem:[#allocation3 + $0x52] sm:$0xff]
      %v1730 = vld [vmem:[#allocation3 + $0x62] sm:$0xff]
      %v1731 = vld [vmem:[#allocation3 + $0x6a] sm:$0xff]
      %v1732 = vld [vmem:[#allocation3 + $0x7a] sm:$0xff]
      %v1733 = vld [vmem:[#allocation3 + $0x82] sm:$0xff]
      %v1734 = vld [vmem:[#allocation3 + $0x92] sm:$0xff]
      %v1735 = vld [vmem:[#allocation3 + $0x9a] sm:$0xff]
      %v1736 = vld [vmem:[#allocation3 + $0xaa] sm:$0xff]
      %v1737 = vld [vmem:[#allocation3 + $0xb2] sm:$0xff]
      %1754 = vrot.lane.b32.xlu0 %v1706, 8
      %v1755 = vpop.permute.xlu0 %1754
      %1756 = vrot.lane.b32.xlu0 %v1707, 8
      %v1757 = vpop.permute.xlu0 %1756
      %1758 = vrot.lane.b32.xlu0 %v1708, 8
      %v1759 = vpop.permute.xlu0 %1758
      %1760 = vrot.lane.b32.xlu0 %v1709, 8
      %v1761 = vpop.permute.xlu0 %1760
      %1762 = vrot.lane.b32.xlu0 %v1710, 8
      %v1763 = vpop.permute.xlu0 %1762
      %1764 = vrot.lane.b32.xlu0 %v1711, 8
      %v1765 = vpop.permute.xlu0 %1764
      %1766 = vrot.lane.b32.xlu0 %v1712, 8
      %v1767 = vpop.permute.xlu0 %1766
      %1768 = vrot.lane.b32.xlu0 %v1713, 8
      %v1769 = vpop.permute.xlu0 %1768
      %1770 = vrot.lane.b32.xlu0 %v1714, 8
      %v1771 = vpop.permute.xlu0 %1770
      %1772 = vrot.lane.b32.xlu0 %v1715, 8
      %v1773 = vpop.permute.xlu0 %1772
      %1774 = vrot.lane.b32.xlu0 %v1716, 8
      %v1775 = vpop.permute.xlu0 %1774
      %1776 = vrot.lane.b32.xlu0 %v1717, 8
      %v1777 = vpop.permute.xlu0 %1776
      %1778 = vrot.lane.b32.xlu0 %v1718, 8
      %v1779 = vpop.permute.xlu0 %1778
      %1780 = vrot.lane.b32.xlu0 %v1719, 8
      %v1781 = vpop.permute.xlu0 %1780
      %1782 = vrot.lane.b32.xlu0 %v1720, 8
      %v1783 = vpop.permute.xlu0 %1782
      %1784 = vrot.lane.b32.xlu0 %v1721, 8
      %v1785 = vpop.permute.xlu0 %1784
      %1818 = vrot.lane.b32.xlu0 %v1722, 16
      %v1819 = vpop.permute.xlu0 %1818
      %1820 = vrot.lane.b32.xlu0 %v1723, 16
      %v1821 = vpop.permute.xlu0 %1820
      %1822 = vrot.lane.b32.xlu0 %v1724, 16
      %v1823 = vpop.permute.xlu0 %1822
      %1824 = vrot.lane.b32.xlu0 %v1725, 16
      %v1825 = vpop.permute.xlu0 %1824
      %1826 = vrot.lane.b32.xlu0 %v1726, 16
      %v1827 = vpop.permute.xlu0 %1826
      %1828 = vrot.lane.b32.xlu0 %v1727, 16
      %v1829 = vpop.permute.xlu0 %1828
      %1830 = vrot.lane.b32.xlu0 %v1728, 16
      %v1831 = vpop.permute.xlu0 %1830
      %1832 = vrot.lane.b32.xlu0 %v1729, 16
      %v1833 = vpop.permute.xlu0 %1832
      %1834 = vrot.lane.b32.xlu0 %v1730, 16
      %v1835 = vpop.permute.xlu0 %1834
      %1836 = vrot.lane.b32.xlu0 %v1731, 16
      %v1837 = vpop.permute.xlu0 %1836
      %1838 = vrot.lane.b32.xlu0 %v1732, 16
      %v1839 = vpop.permute.xlu0 %1838
      %1840 = vrot.lane.b32.xlu0 %v1733, 16
      %v1841 = vpop.permute.xlu0 %1840
      %1842 = vrot.lane.b32.xlu0 %v1734, 16
      %v1843 = vpop.permute.xlu0 %1842
      %1844 = vrot.lane.b32.xlu0 %v1735, 16
      %v1845 = vpop.permute.xlu0 %1844
      %1846 = vrot.lane.b32.xlu0 %v1736, 16
      %v1847 = vpop.permute.xlu0 %1846
      %1848 = vrot.lane.b32.xlu0 %v1737, 16
      %v1849 = vpop.permute.xlu0 %1848
      %v1866 = vsel %vm295, %v1690, %v1755
      %v1867 = vsel %vm295, %v1691, %v1757
      %v1868 = vsel %vm295, %v1692, %v1759
      %v1869 = vsel %vm295, %v1693, %v1761
      %v1870 = vsel %vm295, %v1694, %v1763
      %v1871 = vsel %vm295, %v1695, %v1765
      %v1872 = vsel %vm295, %v1696, %v1767
      %v1873 = vsel %vm295, %v1697, %v1769
      %v1874 = vsel %vm295, %v1698, %v1771
      %v1875 = vsel %vm295, %v1699, %v1773
      %v1876 = vsel %vm295, %v1700, %v1775
      %v1877 = vsel %vm295, %v1701, %v1777
      %v1878 = vsel %vm295, %v1702, %v1779
      %v1879 = vsel %vm295, %v1703, %v1781
      %v1880 = vsel %vm295, %v1704, %v1783
      %v1881 = vsel %vm295, %v1705, %v1785
      %v1882 = vsel %vm606, %v1866, %v1819
      %v1883 = vsel %vm606, %v1867, %v1821
      %v1884 = vsel %vm606, %v1868, %v1823
      %v1885 = vsel %vm606, %v1869, %v1825
      %v1886 = vsel %vm606, %v1870, %v1827
      %v1887 = vsel %vm606, %v1871, %v1829
      %v1888 = vsel %vm606, %v1872, %v1831
      %v1889 = vsel %vm606, %v1873, %v1833
      %v1890 = vsel %vm606, %v1874, %v1835
      %v1891 = vsel %vm606, %v1875, %v1837
      %v1892 = vsel %vm606, %v1876, %v1839
      %v1893 = vsel %vm606, %v1877, %v1841
      %v1894 = vsel %vm606, %v1878, %v1843
      %v1895 = vsel %vm606, %v1879, %v1845
      %v1896 = vsel %vm606, %v1880, %v1847
      %v1897 = vsel %vm606, %v1881, %v1849
      %v1898 = vld [vmem:[%s3] sm:$0xff]
      %v1899 = vld [vmem:[%s3 + $0x8] sm:$0xff]
      %v1900 = vld [vmem:[%s3 + $0x10] sm:$0xff]
      %s1901 = scalar_lea.vmem [#allocation3], 24
      %v1902 = vld [vmem:[%s1901] sm:$0xff]
      %v1903 = vld [vmem:[%s1901 + $0x8] sm:$0xff]
      %v1904 = vld [vmem:[%s1901 + $0x18] sm:$0xff]
      %v1905 = vld [vmem:[%s1901 + $0x20] sm:$0xff]
      %v1906 = vld [vmem:[%s1901 + $0x30] sm:$0xff]
      %v1907 = vld [vmem:[%s1901 + $0x38] sm:$0xff]
      %v1908 = vld [vmem:[%s1901 + $0x48] sm:$0xff]
      %v1909 = vld [vmem:[%s1901 + $0x50] sm:$0xff]
      %v1910 = vld [vmem:[%s1901 + $0x60] sm:$0xff]
      %v1911 = vld [vmem:[%s1901 + $0x68] sm:$0xff]
      %v1912 = vld [vmem:[%s1901 + $0x78] sm:$0xff]
      %v1913 = vld [vmem:[%s1901 + $0x80] sm:$0xff]
      %v1914 = vld [vmem:[%s1901 + $0x90] sm:$0xff]
      %v1915 = vld [vmem:[%s1901 + $0x98] sm:$0xff]
      %v1916 = vld [vmem:[%s1901 + $0xa8] sm:$0xff]
      %v1917 = vld [vmem:[%s1901 + $0xb0] sm:$0xff]
      %v1918 = vld [vmem:[%s1901 + $0x1] sm:$0xff]
      %v1919 = vld [vmem:[%s1901 + $0x9] sm:$0xff]
      %v1920 = vld [vmem:[%s1901 + $0x19] sm:$0xff]
      %v1921 = vld [vmem:[%s1901 + $0x21] sm:$0xff]
      %v1922 = vld [vmem:[%s1901 + $0x31] sm:$0xff]
      %v1923 = vld [vmem:[%s1901 + $0x39] sm:$0xff]
      %v1924 = vld [vmem:[%s1901 + $0x49] sm:$0xff]
      %v1925 = vld [vmem:[%s1901 + $0x51] sm:$0xff]
      %v1926 = vld [vmem:[%s1901 + $0x61] sm:$0xff]
      %v1927 = vld [vmem:[%s1901 + $0x69] sm:$0xff]
      %v1928 = vld [vmem:[%s1901 + $0x79] sm:$0xff]
      %v1929 = vld [vmem:[%s1901 + $0x81] sm:$0xff]
      %v1930 = vld [vmem:[%s1901 + $0x91] sm:$0xff]
      %v1931 = vld [vmem:[%s1901 + $0x99] sm:$0xff]
      %v1932 = vld [vmem:[%s1901 + $0xa9] sm:$0xff]
      %v1933 = vld [vmem:[%s1901 + $0xb1] sm:$0xff]
      %v1934 = vld [vmem:[%s1901 + $0x2] sm:$0xff]
      %v1935 = vld [vmem:[%s1901 + $0xa] sm:$0xff]
      %v1936 = vld [vmem:[%s1901 + $0x1a] sm:$0xff]
      %v1937 = vld [vmem:[%s1901 + $0x22] sm:$0xff]
      %v1938 = vld [vmem:[%s1901 + $0x32] sm:$0xff]
      %v1939 = vld [vmem:[%s1901 + $0x3a] sm:$0xff]
      %v1940 = vld [vmem:[%s1901 + $0x4a] sm:$0xff]
      %v1941 = vld [vmem:[%s1901 + $0x52] sm:$0xff]
      %v1942 = vld [vmem:[%s1901 + $0x62] sm:$0xff]
      %v1943 = vld [vmem:[%s1901 + $0x6a] sm:$0xff]
      %v1944 = vld [vmem:[%s1901 + $0x7a] sm:$0xff]
      %v1945 = vld [vmem:[%s1901 + $0x82] sm:$0xff]
      %v1946 = vld [vmem:[%s1901 + $0x92] sm:$0xff]
      %v1947 = vld [vmem:[%s1901 + $0x9a] sm:$0xff]
      %v1948 = vld [vmem:[%s1901 + $0xaa] sm:$0xff]
      %v1949 = vld [vmem:[%s1901 + $0xb2] sm:$0xff]
      %1966 = vrot.lane.b32.xlu0 %v1918, 8
      %v1967 = vpop.permute.xlu0 %1966
      %1968 = vrot.lane.b32.xlu0 %v1919, 8
      %v1969 = vpop.permute.xlu0 %1968
      %1970 = vrot.lane.b32.xlu0 %v1920, 8
      %v1971 = vpop.permute.xlu0 %1970
      %1972 = vrot.lane.b32.xlu0 %v1921, 8
      %v1973 = vpop.permute.xlu0 %1972
      %1974 = vrot.lane.b32.xlu0 %v1922, 8
      %v1975 = vpop.permute.xlu0 %1974
      %1976 = vrot.lane.b32.xlu0 %v1923, 8
      %v1977 = vpop.permute.xlu0 %1976
      %1978 = vrot.lane.b32.xlu0 %v1924, 8
      %v1979 = vpop.permute.xlu0 %1978
      %1980 = vrot.lane.b32.xlu0 %v1925, 8
      %v1981 = vpop.permute.xlu0 %1980
      %1982 = vrot.lane.b32.xlu0 %v1926, 8
      %v1983 = vpop.permute.xlu0 %1982
      %1984 = vrot.lane.b32.xlu0 %v1927, 8
      %v1985 = vpop.permute.xlu0 %1984
      %1986 = vrot.lane.b32.xlu0 %v1928, 8
      %v1987 = vpop.permute.xlu0 %1986
      %1988 = vrot.lane.b32.xlu0 %v1929, 8
      %v1989 = vpop.permute.xlu0 %1988
      %1990 = vrot.lane.b32.xlu0 %v1930, 8
      %v1991 = vpop.permute.xlu0 %1990
      %1992 = vrot.lane.b32.xlu0 %v1931, 8
      %v1993 = vpop.permute.xlu0 %1992
      %1994 = vrot.lane.b32.xlu0 %v1932, 8
      %v1995 = vpop.permute.xlu0 %1994
      %1996 = vrot.lane.b32.xlu0 %v1933, 8
      %v1997 = vpop.permute.xlu0 %1996
      %2030 = vrot.lane.b32.xlu0 %v1934, 16
      %v2031 = vpop.permute.xlu0 %2030
      %2032 = vrot.lane.b32.xlu0 %v1935, 16
      %v2033 = vpop.permute.xlu0 %2032
      %2034 = vrot.lane.b32.xlu0 %v1936, 16
      %v2035 = vpop.permute.xlu0 %2034
      %2036 = vrot.lane.b32.xlu0 %v1937, 16
      %v2037 = vpop.permute.xlu0 %2036
      %2038 = vrot.lane.b32.xlu0 %v1938, 16
      %v2039 = vpop.permute.xlu0 %2038
      %2040 = vrot.lane.b32.xlu0 %v1939, 16
      %v2041 = vpop.permute.xlu0 %2040
      %2042 = vrot.lane.b32.xlu0 %v1940, 16
      %v2043 = vpop.permute.xlu0 %2042
      %2044 = vrot.lane.b32.xlu0 %v1941, 16
      %v2045 = vpop.permute.xlu0 %2044
      %2046 = vrot.lane.b32.xlu0 %v1942, 16
      %v2047 = vpop.permute.xlu0 %2046
      %2048 = vrot.lane.b32.xlu0 %v1943, 16
      %v2049 = vpop.permute.xlu0 %2048
      %2050 = vrot.lane.b32.xlu0 %v1944, 16
      %v2051 = vpop.permute.xlu0 %2050
      %2052 = vrot.lane.b32.xlu0 %v1945, 16
      %v2053 = vpop.permute.xlu0 %2052
      %2054 = vrot.lane.b32.xlu0 %v1946, 16
      %v2055 = vpop.permute.xlu0 %2054
      %2056 = vrot.lane.b32.xlu0 %v1947, 16
      %v2057 = vpop.permute.xlu0 %2056
      %2058 = vrot.lane.b32.xlu0 %v1948, 16
      %v2059 = vpop.permute.xlu0 %2058
      %2060 = vrot.lane.b32.xlu0 %v1949, 16
      %v2061 = vpop.permute.xlu0 %2060
      %v2078 = vsel %vm295, %v1902, %v1967
      %v2079 = vsel %vm295, %v1903, %v1969
      %v2080 = vsel %vm295, %v1904, %v1971
      %v2081 = vsel %vm295, %v1905, %v1973
      %v2082 = vsel %vm295, %v1906, %v1975
      %v2083 = vsel %vm295, %v1907, %v1977
      %v2084 = vsel %vm295, %v1908, %v1979
      %v2085 = vsel %vm295, %v1909, %v1981
      %v2086 = vsel %vm295, %v1910, %v1983
      %v2087 = vsel %vm295, %v1911, %v1985
      %v2088 = vsel %vm295, %v1912, %v1987
      %v2089 = vsel %vm295, %v1913, %v1989
      %v2090 = vsel %vm295, %v1914, %v1991
      %v2091 = vsel %vm295, %v1915, %v1993
      %v2092 = vsel %vm295, %v1916, %v1995
      %v2093 = vsel %vm295, %v1917, %v1997
      %v2094 = vsel %vm606, %v2078, %v2031
      %v2095 = vsel %vm606, %v2079, %v2033
      %v2096 = vsel %vm606, %v2080, %v2035
      %v2097 = vsel %vm606, %v2081, %v2037
      %v2098 = vsel %vm606, %v2082, %v2039
      %v2099 = vsel %vm606, %v2083, %v2041
      %v2100 = vsel %vm606, %v2084, %v2043
      %v2101 = vsel %vm606, %v2085, %v2045
      %v2102 = vsel %vm606, %v2086, %v2047
      %v2103 = vsel %vm606, %v2087, %v2049
      %v2104 = vsel %vm606, %v2088, %v2051
      %v2105 = vsel %vm606, %v2089, %v2053
      %v2106 = vsel %vm606, %v2090, %v2055
      %v2107 = vsel %vm606, %v2091, %v2057
      %v2108 = vsel %vm606, %v2092, %v2059
      %v2109 = vsel %vm606, %v2093, %v2061
      %s2110 = scalar_lea.vmem %s3, 24
      %v2111 = vld [vmem:[%s2110] sm:$0xff]
      %v2112 = vld [vmem:[%s2110 + $0x8] sm:$0xff]
      %v2113 = vld [vmem:[%s2110 + $0x10] sm:$0xff]
      %v2115 = vsel %vm895, %v2094, 0
      %v2118 = vsel %vm895, %v2095, 0
      %v2121 = vsel %vm895, %v2096, 0
      %v2124 = vsel %vm895, %v2097, 0
      %v2127 = vsel %vm895, %v2098, 0
      %v2130 = vsel %vm895, %v2099, 0
      %v2133 = vsel %vm895, %v2100, 0
      %v2136 = vsel %vm895, %v2101, 0
      %v2139 = vsel %vm895, %v2102, 0
      %v2142 = vsel %vm895, %v2103, 0
      %v2145 = vsel %vm895, %v2104, 0
      %v2148 = vsel %vm895, %v2105, 0
      %v2151 = vsel %vm895, %v2106, 0
      %v2154 = vsel %vm895, %v2107, 0
      %v2157 = vsel %vm895, %v2108, 0
      %v2160 = vsel %vm895, %v2109, 0
      %2162 = vmatpush.msra.mxu0 0.0
      %2163 = vmatpush.msra.mxu0 0.0
      %2164 = vmatpush.msra.mxu0 0.0
      %2165 = vmatpush.msra.mxu0 0.0
      %2166 = vmatpush.msra.mxu0 0.0
      %2167 = vmatpush.msra.mxu0 0.0
      %2168 = vmatpush.msra.mxu0 0.0
      %2169 = vmatpush.msra.mxu0 0.0
      %2170 = vmatpush.msra.mxu0 0.0
      %2171 = vmatpush.msra.mxu0 0.0
      %2172 = vmatpush.msra.mxu0 0.0
      %2173 = vmatpush.msra.mxu0 0.0
      %2174 = vmatpush.msra.mxu0 0.0
      %2175 = vmatpush.msra.mxu0 %v2113
      %2176 = vmatpush.msra.mxu0 %v2112
      %2177 = vmatpush.msra.mxu0 %v2111
      %2178 = vmatmul.f32.gmra.mxu0 %v2115
      %v2179 = vpop.f32.mrf.mxu0
      %v2180 = vadd.f32 0.0, %v2179
      %2181 = vmatmul.f32.gmra.mxu0 %v2118
      %v2182 = vpop.f32.mrf.mxu0
      %v2183 = vadd.f32 0.0, %v2182
      %2184 = vmatmul.f32.gmra.mxu0 %v2121
      %v2185 = vpop.f32.mrf.mxu0
      %v2186 = vadd.f32 0.0, %v2185
      %2187 = vmatmul.f32.gmra.mxu0 %v2124
      %v2188 = vpop.f32.mrf.mxu0
      %v2189 = vadd.f32 0.0, %v2188
      %2190 = vmatmul.f32.gmra.mxu0 %v2127
      %v2191 = vpop.f32.mrf.mxu0
      %v2192 = vadd.f32 0.0, %v2191
      %2193 = vmatmul.f32.gmra.mxu0 %v2130
      %v2194 = vpop.f32.mrf.mxu0
      %v2195 = vadd.f32 0.0, %v2194
      %2196 = vmatmul.f32.gmra.mxu0 %v2133
      %v2197 = vpop.f32.mrf.mxu0
      %v2198 = vadd.f32 0.0, %v2197
      %2199 = vmatmul.f32.gmra.mxu0 %v2136
      %v2200 = vpop.f32.mrf.mxu0
      %v2201 = vadd.f32 0.0, %v2200
      %2202 = vmatmul.f32.gmra.mxu0 %v2139
      %v2203 = vpop.f32.mrf.mxu0
      %v2204 = vadd.f32 0.0, %v2203
      %2205 = vmatmul.f32.gmra.mxu0 %v2142
      %v2206 = vpop.f32.mrf.mxu0
      %v2207 = vadd.f32 0.0, %v2206
      %2208 = vmatmul.f32.gmra.mxu0 %v2145
      %v2209 = vpop.f32.mrf.mxu0
      %v2210 = vadd.f32 0.0, %v2209
      %2211 = vmatmul.f32.gmra.mxu0 %v2148
      %v2212 = vpop.f32.mrf.mxu0
      %v2213 = vadd.f32 0.0, %v2212
      %2214 = vmatmul.f32.gmra.mxu0 %v2151
      %v2215 = vpop.f32.mrf.mxu0
      %v2216 = vadd.f32 0.0, %v2215
      %2217 = vmatmul.f32.gmra.mxu0 %v2154
      %v2218 = vpop.f32.mrf.mxu0
      %v2219 = vadd.f32 0.0, %v2218
      %2220 = vmatmul.f32.gmra.mxu0 %v2157
      %v2221 = vpop.f32.mrf.mxu0
      %v2222 = vadd.f32 0.0, %v2221
      %2223 = vmatmul.f32.gmra.mxu0 %v2160
      %v2224 = vpop.f32.mrf.mxu0
      %v2225 = vadd.f32 0.0, %v2224
      %2226 = vdwg.mxu0
      %v2228 = vsel %vm895, %v1882, 0
      %v2231 = vsel %vm895, %v1883, 0
      %v2234 = vsel %vm895, %v1884, 0
      %v2237 = vsel %vm895, %v1885, 0
      %v2240 = vsel %vm895, %v1886, 0
      %v2243 = vsel %vm895, %v1887, 0
      %v2246 = vsel %vm895, %v1888, 0
      %v2249 = vsel %vm895, %v1889, 0
      %v2252 = vsel %vm895, %v1890, 0
      %v2255 = vsel %vm895, %v1891, 0
      %v2258 = vsel %vm895, %v1892, 0
      %v2261 = vsel %vm895, %v1893, 0
      %v2264 = vsel %vm895, %v1894, 0
      %v2267 = vsel %vm895, %v1895, 0
      %v2270 = vsel %vm895, %v1896, 0
      %v2273 = vsel %vm895, %v1897, 0
      %2275 = vmatpush.msra.mxu0 0.0
      %2276 = vmatpush.msra.mxu0 0.0
      %2277 = vmatpush.msra.mxu0 0.0
      %2278 = vmatpush.msra.mxu0 0.0
      %2279 = vmatpush.msra.mxu0 0.0
      %2280 = vmatpush.msra.mxu0 0.0
      %2281 = vmatpush.msra.mxu0 0.0
      %2282 = vmatpush.msra.mxu0 0.0
      %2283 = vmatpush.msra.mxu0 0.0
      %2284 = vmatpush.msra.mxu0 0.0
      %2285 = vmatpush.msra.mxu0 0.0
      %2286 = vmatpush.msra.mxu0 0.0
      %2287 = vmatpush.msra.mxu0 0.0
      %2288 = vmatpush.msra.mxu0 %v1900
      %2289 = vmatpush.msra.mxu0 %v1899
      %2290 = vmatpush.msra.mxu0 %v1898
      %2291 = vmatmul.f32.gmra.mxu0 %v2228
      %v2292 = vpop.f32.mrf.mxu0
      %v2293 = vadd.f32 %v2180, %v2292
      %2294 = vmatmul.f32.gmra.mxu0 %v2231
      %v2295 = vpop.f32.mrf.mxu0
      %v2296 = vadd.f32 %v2183, %v2295
      %2297 = vmatmul.f32.gmra.mxu0 %v2234
      %v2298 = vpop.f32.mrf.mxu0
      %v2299 = vadd.f32 %v2186, %v2298
      %2300 = vmatmul.f32.gmra.mxu0 %v2237
      %v2301 = vpop.f32.mrf.mxu0
      %v2302 = vadd.f32 %v2189, %v2301
      %2303 = vmatmul.f32.gmra.mxu0 %v2240
      %v2304 = vpop.f32.mrf.mxu0
      %v2305 = vadd.f32 %v2192, %v2304
      %2306 = vmatmul.f32.gmra.mxu0 %v2243
      %v2307 = vpop.f32.mrf.mxu0
      %v2308 = vadd.f32 %v2195, %v2307
      %2309 = vmatmul.f32.gmra.mxu0 %v2246
      %v2310 = vpop.f32.mrf.mxu0
      %v2311 = vadd.f32 %v2198, %v2310
      %2312 = vmatmul.f32.gmra.mxu0 %v2249
      %v2313 = vpop.f32.mrf.mxu0
      %v2314 = vadd.f32 %v2201, %v2313
      %2315 = vmatmul.f32.gmra.mxu0 %v2252
      %v2316 = vpop.f32.mrf.mxu0
      %v2317 = vadd.f32 %v2204, %v2316
      %2318 = vmatmul.f32.gmra.mxu0 %v2255
      %v2319 = vpop.f32.mrf.mxu0
      %v2320 = vadd.f32 %v2207, %v2319
      %2321 = vmatmul.f32.gmra.mxu0 %v2258
      %v2322 = vpop.f32.mrf.mxu0
      %v2323 = vadd.f32 %v2210, %v2322
      %2324 = vmatmul.f32.gmra.mxu0 %v2261
      %v2325 = vpop.f32.mrf.mxu0
      %v2326 = vadd.f32 %v2213, %v2325
      %2327 = vmatmul.f32.gmra.mxu0 %v2264
      %v2328 = vpop.f32.mrf.mxu0
      %v2329 = vadd.f32 %v2216, %v2328
      %2330 = vmatmul.f32.gmra.mxu0 %v2267
      %v2331 = vpop.f32.mrf.mxu0
      %v2332 = vadd.f32 %v2219, %v2331
      %2333 = vmatmul.f32.gmra.mxu0 %v2270
      %v2334 = vpop.f32.mrf.mxu0
      %v2335 = vadd.f32 %v2222, %v2334
      %2336 = vmatmul.f32.gmra.mxu0 %v2273
      %v2337 = vpop.f32.mrf.mxu0
      %v2338 = vadd.f32 %v2225, %v2337
      %2339 = vdwg.mxu0
      %s2340 = scalar_lea.vmem [#allocation3], 48
      %v2341 = vld [vmem:[%s2340] sm:$0xff]
      %v2342 = vld [vmem:[%s2340 + $0x8] sm:$0xff]
      %v2343 = vld [vmem:[%s2340 + $0x18] sm:$0xff]
      %v2344 = vld [vmem:[%s2340 + $0x20] sm:$0xff]
      %v2345 = vld [vmem:[%s2340 + $0x30] sm:$0xff]
      %v2346 = vld [vmem:[%s2340 + $0x38] sm:$0xff]
      %v2347 = vld [vmem:[%s2340 + $0x48] sm:$0xff]
      %v2348 = vld [vmem:[%s2340 + $0x50] sm:$0xff]
      %v2349 = vld [vmem:[%s2340 + $0x60] sm:$0xff]
      %v2350 = vld [vmem:[%s2340 + $0x68] sm:$0xff]
      %v2351 = vld [vmem:[%s2340 + $0x78] sm:$0xff]
      %v2352 = vld [vmem:[%s2340 + $0x80] sm:$0xff]
      %v2353 = vld [vmem:[%s2340 + $0x90] sm:$0xff]
      %v2354 = vld [vmem:[%s2340 + $0x98] sm:$0xff]
      %v2355 = vld [vmem:[%s2340 + $0xa8] sm:$0xff]
      %v2356 = vld [vmem:[%s2340 + $0xb0] sm:$0xff]
      %v2357 = vld [vmem:[%s2340 + $0x1] sm:$0xff]
      %v2358 = vld [vmem:[%s2340 + $0x9] sm:$0xff]
      %v2359 = vld [vmem:[%s2340 + $0x19] sm:$0xff]
      %v2360 = vld [vmem:[%s2340 + $0x21] sm:$0xff]
      %v2361 = vld [vmem:[%s2340 + $0x31] sm:$0xff]
      %v2362 = vld [vmem:[%s2340 + $0x39] sm:$0xff]
      %v2363 = vld [vmem:[%s2340 + $0x49] sm:$0xff]
      %v2364 = vld [vmem:[%s2340 + $0x51] sm:$0xff]
      %v2365 = vld [vmem:[%s2340 + $0x61] sm:$0xff]
      %v2366 = vld [vmem:[%s2340 + $0x69] sm:$0xff]
      %v2367 = vld [vmem:[%s2340 + $0x79] sm:$0xff]
      %v2368 = vld [vmem:[%s2340 + $0x81] sm:$0xff]
      %v2369 = vld [vmem:[%s2340 + $0x91] sm:$0xff]
      %v2370 = vld [vmem:[%s2340 + $0x99] sm:$0xff]
      %v2371 = vld [vmem:[%s2340 + $0xa9] sm:$0xff]
      %v2372 = vld [vmem:[%s2340 + $0xb1] sm:$0xff]
      %v2373 = vld [vmem:[%s2340 + $0x2] sm:$0xff]
      %v2374 = vld [vmem:[%s2340 + $0xa] sm:$0xff]
      %v2375 = vld [vmem:[%s2340 + $0x1a] sm:$0xff]
      %v2376 = vld [vmem:[%s2340 + $0x22] sm:$0xff]
      %v2377 = vld [vmem:[%s2340 + $0x32] sm:$0xff]
      %v2378 = vld [vmem:[%s2340 + $0x3a] sm:$0xff]
      %v2379 = vld [vmem:[%s2340 + $0x4a] sm:$0xff]
      %v2380 = vld [vmem:[%s2340 + $0x52] sm:$0xff]
      %v2381 = vld [vmem:[%s2340 + $0x62] sm:$0xff]
      %v2382 = vld [vmem:[%s2340 + $0x6a] sm:$0xff]
      %v2383 = vld [vmem:[%s2340 + $0x7a] sm:$0xff]
      %v2384 = vld [vmem:[%s2340 + $0x82] sm:$0xff]
      %v2385 = vld [vmem:[%s2340 + $0x92] sm:$0xff]
      %v2386 = vld [vmem:[%s2340 + $0x9a] sm:$0xff]
      %v2387 = vld [vmem:[%s2340 + $0xaa] sm:$0xff]
      %v2388 = vld [vmem:[%s2340 + $0xb2] sm:$0xff]
      %2405 = vrot.lane.b32.xlu0 %v2357, 8
      %v2406 = vpop.permute.xlu0 %2405
      %2407 = vrot.lane.b32.xlu0 %v2358, 8
      %v2408 = vpop.permute.xlu0 %2407
      %2409 = vrot.lane.b32.xlu0 %v2359, 8
      %v2410 = vpop.permute.xlu0 %2409
      %2411 = vrot.lane.b32.xlu0 %v2360, 8
      %v2412 = vpop.permute.xlu0 %2411
      %2413 = vrot.lane.b32.xlu0 %v2361, 8
      %v2414 = vpop.permute.xlu0 %2413
      %2415 = vrot.lane.b32.xlu0 %v2362, 8
      %v2416 = vpop.permute.xlu0 %2415
      %2417 = vrot.lane.b32.xlu0 %v2363, 8
      %v2418 = vpop.permute.xlu0 %2417
      %2419 = vrot.lane.b32.xlu0 %v2364, 8
      %v2420 = vpop.permute.xlu0 %2419
      %2421 = vrot.lane.b32.xlu0 %v2365, 8
      %v2422 = vpop.permute.xlu0 %2421
      %2423 = vrot.lane.b32.xlu0 %v2366, 8
      %v2424 = vpop.permute.xlu0 %2423
      %2425 = vrot.lane.b32.xlu0 %v2367, 8
      %v2426 = vpop.permute.xlu0 %2425
      %2427 = vrot.lane.b32.xlu0 %v2368, 8
      %v2428 = vpop.permute.xlu0 %2427
      %2429 = vrot.lane.b32.xlu0 %v2369, 8
      %v2430 = vpop.permute.xlu0 %2429
      %2431 = vrot.lane.b32.xlu0 %v2370, 8
      %v2432 = vpop.permute.xlu0 %2431
      %2433 = vrot.lane.b32.xlu0 %v2371, 8
      %v2434 = vpop.permute.xlu0 %2433
      %2435 = vrot.lane.b32.xlu0 %v2372, 8
      %v2436 = vpop.permute.xlu0 %2435
      %2469 = vrot.lane.b32.xlu0 %v2373, 16
      %v2470 = vpop.permute.xlu0 %2469
      %2471 = vrot.lane.b32.xlu0 %v2374, 16
      %v2472 = vpop.permute.xlu0 %2471
      %2473 = vrot.lane.b32.xlu0 %v2375, 16
      %v2474 = vpop.permute.xlu0 %2473
      %2475 = vrot.lane.b32.xlu0 %v2376, 16
      %v2476 = vpop.permute.xlu0 %2475
      %2477 = vrot.lane.b32.xlu0 %v2377, 16
      %v2478 = vpop.permute.xlu0 %2477
      %2479 = vrot.lane.b32.xlu0 %v2378, 16
      %v2480 = vpop.permute.xlu0 %2479
      %2481 = vrot.lane.b32.xlu0 %v2379, 16
      %v2482 = vpop.permute.xlu0 %2481
      %2483 = vrot.lane.b32.xlu0 %v2380, 16
      %v2484 = vpop.permute.xlu0 %2483
      %2485 = vrot.lane.b32.xlu0 %v2381, 16
      %v2486 = vpop.permute.xlu0 %2485
      %2487 = vrot.lane.b32.xlu0 %v2382, 16
      %v2488 = vpop.permute.xlu0 %2487
      %2489 = vrot.lane.b32.xlu0 %v2383, 16
      %v2490 = vpop.permute.xlu0 %2489
      %2491 = vrot.lane.b32.xlu0 %v2384, 16
      %v2492 = vpop.permute.xlu0 %2491
      %2493 = vrot.lane.b32.xlu0 %v2385, 16
      %v2494 = vpop.permute.xlu0 %2493
      %2495 = vrot.lane.b32.xlu0 %v2386, 16
      %v2496 = vpop.permute.xlu0 %2495
      %2497 = vrot.lane.b32.xlu0 %v2387, 16
      %v2498 = vpop.permute.xlu0 %2497
      %2499 = vrot.lane.b32.xlu0 %v2388, 16
      %v2500 = vpop.permute.xlu0 %2499
      %v2517 = vsel %vm295, %v2341, %v2406
      %v2518 = vsel %vm295, %v2342, %v2408
      %v2519 = vsel %vm295, %v2343, %v2410
      %v2520 = vsel %vm295, %v2344, %v2412
      %v2521 = vsel %vm295, %v2345, %v2414
      %v2522 = vsel %vm295, %v2346, %v2416
      %v2523 = vsel %vm295, %v2347, %v2418
      %v2524 = vsel %vm295, %v2348, %v2420
      %v2525 = vsel %vm295, %v2349, %v2422
      %v2526 = vsel %vm295, %v2350, %v2424
      %v2527 = vsel %vm295, %v2351, %v2426
      %v2528 = vsel %vm295, %v2352, %v2428
      %v2529 = vsel %vm295, %v2353, %v2430
      %v2530 = vsel %vm295, %v2354, %v2432
      %v2531 = vsel %vm295, %v2355, %v2434
      %v2532 = vsel %vm295, %v2356, %v2436
      %v2533 = vsel %vm606, %v2517, %v2470
      %v2534 = vsel %vm606, %v2518, %v2472
      %v2535 = vsel %vm606, %v2519, %v2474
      %v2536 = vsel %vm606, %v2520, %v2476
      %v2537 = vsel %vm606, %v2521, %v2478
      %v2538 = vsel %vm606, %v2522, %v2480
      %v2539 = vsel %vm606, %v2523, %v2482
      %v2540 = vsel %vm606, %v2524, %v2484
      %v2541 = vsel %vm606, %v2525, %v2486
      %v2542 = vsel %vm606, %v2526, %v2488
      %v2543 = vsel %vm606, %v2527, %v2490
      %v2544 = vsel %vm606, %v2528, %v2492
      %v2545 = vsel %vm606, %v2529, %v2494
      %v2546 = vsel %vm606, %v2530, %v2496
      %v2547 = vsel %vm606, %v2531, %v2498
      %v2548 = vsel %vm606, %v2532, %v2500
      %s2549 = scalar_lea.vmem %s3, 48
      %v2550 = vld [vmem:[%s2549] sm:$0xff]
      %v2551 = vld [vmem:[%s2549 + $0x8] sm:$0xff]
      %v2552 = vld [vmem:[%s2549 + $0x10] sm:$0xff]
      %v2554 = vsel %vm895, %v2533, 0
      %v2557 = vsel %vm895, %v2534, 0
      %v2560 = vsel %vm895, %v2535, 0
      %v2563 = vsel %vm895, %v2536, 0
      %v2566 = vsel %vm895, %v2537, 0
      %v2569 = vsel %vm895, %v2538, 0
      %v2572 = vsel %vm895, %v2539, 0
      %v2575 = vsel %vm895, %v2540, 0
      %v2578 = vsel %vm895, %v2541, 0
      %v2581 = vsel %vm895, %v2542, 0
      %v2584 = vsel %vm895, %v2543, 0
      %v2587 = vsel %vm895, %v2544, 0
      %v2590 = vsel %vm895, %v2545, 0
      %v2593 = vsel %vm895, %v2546, 0
      %v2596 = vsel %vm895, %v2547, 0
      %v2599 = vsel %vm895, %v2548, 0
      %2601 = vmatpush.msra.mxu0 0.0
      %2602 = vmatpush.msra.mxu0 0.0
      %2603 = vmatpush.msra.mxu0 0.0
      %2604 = vmatpush.msra.mxu0 0.0
      %2605 = vmatpush.msra.mxu0 0.0
      %2606 = vmatpush.msra.mxu0 0.0
      %2607 = vmatpush.msra.mxu0 0.0
      %2608 = vmatpush.msra.mxu0 0.0
      %2609 = vmatpush.msra.mxu0 0.0
      %2610 = vmatpush.msra.mxu0 0.0
      %2611 = vmatpush.msra.mxu0 0.0
      %2612 = vmatpush.msra.mxu0 0.0
      %2613 = vmatpush.msra.mxu0 0.0
      %2614 = vmatpush.msra.mxu0 %v2552
      %2615 = vmatpush.msra.mxu0 %v2551
      %2616 = vmatpush.msra.mxu0 %v2550
      %2617 = vmatmul.f32.gmra.mxu0 %v2554
      %v2618 = vpop.f32.mrf.mxu0
      %v2619 = vadd.f32 0.0, %v2618
      %2620 = vmatmul.f32.gmra.mxu0 %v2557
      %v2621 = vpop.f32.mrf.mxu0
      %v2622 = vadd.f32 0.0, %v2621
      %2623 = vmatmul.f32.gmra.mxu0 %v2560
      %v2624 = vpop.f32.mrf.mxu0
      %v2625 = vadd.f32 0.0, %v2624
      %2626 = vmatmul.f32.gmra.mxu0 %v2563
      %v2627 = vpop.f32.mrf.mxu0
      %v2628 = vadd.f32 0.0, %v2627
      %2629 = vmatmul.f32.gmra.mxu0 %v2566
      %v2630 = vpop.f32.mrf.mxu0
      %v2631 = vadd.f32 0.0, %v2630
      %2632 = vmatmul.f32.gmra.mxu0 %v2569
      %v2633 = vpop.f32.mrf.mxu0
      %v2634 = vadd.f32 0.0, %v2633
      %2635 = vmatmul.f32.gmra.mxu0 %v2572
      %v2636 = vpop.f32.mrf.mxu0
      %v2637 = vadd.f32 0.0, %v2636
      %2638 = vmatmul.f32.gmra.mxu0 %v2575
      %v2639 = vpop.f32.mrf.mxu0
      %v2640 = vadd.f32 0.0, %v2639
      %2641 = vmatmul.f32.gmra.mxu0 %v2578
      %v2642 = vpop.f32.mrf.mxu0
      %v2643 = vadd.f32 0.0, %v2642
      %2644 = vmatmul.f32.gmra.mxu0 %v2581
      %v2645 = vpop.f32.mrf.mxu0
      %v2646 = vadd.f32 0.0, %v2645
      %2647 = vmatmul.f32.gmra.mxu0 %v2584
      %v2648 = vpop.f32.mrf.mxu0
      %v2649 = vadd.f32 0.0, %v2648
      %2650 = vmatmul.f32.gmra.mxu0 %v2587
      %v2651 = vpop.f32.mrf.mxu0
      %v2652 = vadd.f32 0.0, %v2651
      %2653 = vmatmul.f32.gmra.mxu0 %v2590
      %v2654 = vpop.f32.mrf.mxu0
      %v2655 = vadd.f32 0.0, %v2654
      %2656 = vmatmul.f32.gmra.mxu0 %v2593
      %v2657 = vpop.f32.mrf.mxu0
      %v2658 = vadd.f32 0.0, %v2657
      %2659 = vmatmul.f32.gmra.mxu0 %v2596
      %v2660 = vpop.f32.mrf.mxu0
      %v2661 = vadd.f32 0.0, %v2660
      %2662 = vmatmul.f32.gmra.mxu0 %v2599
      %v2663 = vpop.f32.mrf.mxu0
      %v2664 = vadd.f32 0.0, %v2663
      %2665 = vdwg.mxu0
      %v2666 = vadd.f32 %v2293, %v2619
      %v2667 = vadd.f32 %v2296, %v2622
      %v2668 = vadd.f32 %v2299, %v2625
      %v2669 = vadd.f32 %v2302, %v2628
      %v2670 = vadd.f32 %v2305, %v2631
      %v2671 = vadd.f32 %v2308, %v2634
      %v2672 = vadd.f32 %v2311, %v2637
      %v2673 = vadd.f32 %v2314, %v2640
      %v2674 = vadd.f32 %v2317, %v2643
      %v2675 = vadd.f32 %v2320, %v2646
      %v2676 = vadd.f32 %v2323, %v2649
      %v2677 = vadd.f32 %v2326, %v2652
      %v2678 = vadd.f32 %v2329, %v2655
      %v2679 = vadd.f32 %v2332, %v2658
      %v2680 = vadd.f32 %v2335, %v2661
      %v2681 = vadd.f32 %v2338, %v2664
      %v2682 = vld [vmem:[%s277] sm:$0xff]
      %v2683 = vld [vmem:[%s277 + $0x8] sm:$0xff]
      %v2684 = vld [vmem:[%s277 + $0x10] sm:$0xff]
      %v2685 = vld [vmem:[%s277 + $0x18] sm:$0xff]
      %v2686 = vld [vmem:[%s277 + $0x20] sm:$0xff]
      %v2687 = vld [vmem:[%s277 + $0x28] sm:$0xff]
      %v2688 = vld [vmem:[%s277 + $0x30] sm:$0xff]
      %v2689 = vld [vmem:[%s277 + $0x38] sm:$0xff]
      %v2690 = vld [vmem:[%s277 + $0x40] sm:$0xff]
      %v2691 = vld [vmem:[%s277 + $0x48] sm:$0xff]
      %v2692 = vld [vmem:[%s277 + $0x50] sm:$0xff]
      %v2693 = vld [vmem:[%s277 + $0x58] sm:$0xff]
      %v2694 = vld [vmem:[%s277 + $0x60] sm:$0xff]
      %v2695 = vld [vmem:[%s277 + $0x68] sm:$0xff]
      %v2696 = vld [vmem:[%s277 + $0x70] sm:$0xff]
      %v2697 = vld [vmem:[%s277 + $0x78] sm:$0xff]
      %v2698 = vld [vmem:[%s4] sm:$0x1]
      %v2700 = vperm.slane %v2698, 0
      %v2702 = vadd.f32 %v2666, %v2700
      %v2703 = vadd.f32 %v2667, %v2700
      %v2704 = vadd.f32 %v2668, %v2700
      %v2705 = vadd.f32 %v2669, %v2700
      %v2706 = vadd.f32 %v2670, %v2700
      %v2707 = vadd.f32 %v2671, %v2700
      %v2708 = vadd.f32 %v2672, %v2700
      %v2709 = vadd.f32 %v2673, %v2700
      %v2710 = vadd.f32 %v2674, %v2700
      %v2711 = vadd.f32 %v2675, %v2700
      %v2712 = vadd.f32 %v2676, %v2700
      %v2713 = vadd.f32 %v2677, %v2700
      %v2714 = vadd.f32 %v2678, %v2700
      %v2715 = vadd.f32 %v2679, %v2700
      %v2716 = vadd.f32 %v2680, %v2700
      %v2717 = vadd.f32 %v2681, %v2700
      %v2718 = vadd.f32 %v2702, %v2682
      %v2719 = vadd.f32 %v2703, %v2683
      %v2720 = vadd.f32 %v2704, %v2684
      %v2721 = vadd.f32 %v2705, %v2685
      %v2722 = vadd.f32 %v2706, %v2686
      %v2723 = vadd.f32 %v2707, %v2687
      %v2724 = vadd.f32 %v2708, %v2688
      %v2725 = vadd.f32 %v2709, %v2689
      %v2726 = vadd.f32 %v2710, %v2690
      %v2727 = vadd.f32 %v2711, %v2691
      %v2728 = vadd.f32 %v2712, %v2692
      %v2729 = vadd.f32 %v2713, %v2693
      %v2730 = vadd.f32 %v2714, %v2694
      %v2731 = vadd.f32 %v2715, %v2695
      %v2732 = vadd.f32 %v2716, %v2696
      %v2733 = vadd.f32 %v2717, %v2697
      %v2734 = vmax.f32 %v2718, 0.0
      %v2735 = vmax.f32 %v2719, 0.0
      %v2736 = vmax.f32 %v2720, 0.0
      %v2737 = vmax.f32 %v2721, 0.0
      %v2738 = vmax.f32 %v2722, 0.0
      %v2739 = vmax.f32 %v2723, 0.0
      %v2740 = vmax.f32 %v2724, 0.0
      %v2741 = vmax.f32 %v2725, 0.0
      %v2742 = vmax.f32 %v2726, 0.0
      %v2743 = vmax.f32 %v2727, 0.0
      %v2744 = vmax.f32 %v2728, 0.0
      %v2745 = vmax.f32 %v2729, 0.0
      %v2746 = vmax.f32 %v2730, 0.0
      %v2747 = vmax.f32 %v2731, 0.0
      %v2748 = vmax.f32 %v2732, 0.0
      %v2749 = vmax.f32 %v2733, 0.0
      %2750 = vst.msk [vmem:[%s248] sm:$0xff] %vm295, %v2734
      %2751 = vst.msk [vmem:[%s248 + $0x8] sm:$0xff] %vm295, %v2735
      %2752 = vst.msk [vmem:[%s248 + $0x10] sm:$0xff] %vm295, %v2736
      %2753 = vst.msk [vmem:[%s248 + $0x18] sm:$0xff] %vm295, %v2737
      %2754 = vst.msk [vmem:[%s248 + $0x20] sm:$0xff] %vm295, %v2738
      %2755 = vst.msk [vmem:[%s248 + $0x28] sm:$0xff] %vm295, %v2739
      %2756 = vst.msk [vmem:[%s248 + $0x30] sm:$0xff] %vm295, %v2740
      %2757 = vst.msk [vmem:[%s248 + $0x38] sm:$0xff] %vm295, %v2741
      %2758 = vst.msk [vmem:[%s248 + $0x40] sm:$0xff] %vm295, %v2742
      %2759 = vst.msk [vmem:[%s248 + $0x48] sm:$0xff] %vm295, %v2743
      %2760 = vst.msk [vmem:[%s248 + $0x50] sm:$0xff] %vm295, %v2744
      %2761 = vst.msk [vmem:[%s248 + $0x58] sm:$0xff] %vm295, %v2745
      %2762 = vst.msk [vmem:[%s248 + $0x60] sm:$0xff] %vm295, %v2746
      %2763 = vst.msk [vmem:[%s248 + $0x68] sm:$0xff] %vm295, %v2747
      %2764 = vst.msk [vmem:[%s248 + $0x70] sm:$0xff] %vm295, %v2748
      %2765 = vst.msk [vmem:[%s248 + $0x78] sm:$0xff] %vm295, %v2749
      %s2766 = smul.u32 8, %s21
      %p2767 = scmp.lt.s32.totalorder %s20, 1
      %s2768 = scalar_select %p2767, %s20, 1
      %p2769 = scmp.lt.s32.totalorder %s2766, 15
      %s2770 = scalar_select %p2769, %s2766, 15
      %s2771 = smul.addr %s2770, 2
      %s2772 = smul.addr %s2768, 32
      %s2773 = sadd.s32 %s2771, %s2772
      %s2774 = smul.addr %s2773, 8
      %s2775 = scalar_lea.vmem %s5, %s2774
      // Predicated region
      $region65: #{tpu_custom_call.1} parent=39 // pred_check
        %p2776 = pneg %p158
      $region66: #{tpu_custom_call.1} parent=39 // pred_check_branch
        %2778 = sbr.rel (%p2776) target = $region68
      $region67: #{tpu_custom_call.1} parent=39 // pred_region
        %s2779 = smul.u32 8, %s21
      $region68: #{tpu_custom_call.1} parent=39 // pred_fallthru
        _
    $region40: #{tpu_custom_call.1} parent=5 // pred_fallthru
      _
    %p2780 = scmp.le.s32.totalorder 2, %s11
    // Predicated region
    $region69: #{tpu_custom_call.1} parent=5 // pred_check
      %p2781 = pneg %p2780
    $region70: #{tpu_custom_call.1} parent=5 // pred_check_branch
      %2783 = sbr.rel (%p2781) target = $region72
    $region71: #{tpu_custom_call.1} parent=5 // pred_region
      %s2784 = ssub.s32 %s11, 2
      // Predicated region
      $region73: #{tpu_custom_call.1} parent=71 // pred_check
        %p2785 = pneg %p164
      $region74: #{tpu_custom_call.1} parent=71 // pred_check_branch
        %2787 = sbr.rel (%p2785) target = $region76
      $region75: #{tpu_custom_call.1} parent=71 // pred_region
        %s2788 = smul.u32 8, %s23
        %p2789 = scmp.lt.s32.totalorder %s22, 1
        %s2790 = scalar_select %p2789, %s22, 1
        %p2791 = scmp.lt.s32.totalorder %s2788, 15
        %s2792 = scalar_select %p2791, %s2788, 15
        %s2793 = smul.addr %s2792, 2
        %s2794 = smul.addr %s2790, 32
        %s2795 = sadd.s32 %s2793, %s2794
        %s2796 = smul.addr %s2795, 8
        %s2797 = scalar_lea.vmem %s5, %s2796
      $region76: #{tpu_custom_call.1} parent=71 // pred_fallthru
        _
    $region72: #{tpu_custom_call.1} parent=5 // pred_fallthru
      _
  $region6: #{tpu_custom_call.1} parent=0 // loop_footer
    %s15 = sadd.s32 1, %s11
  $region7: #{tpu_custom_call.1} parent=0 // loop_footer_branch
    %10 = sbr.rel target = $region3
  $region8: #{tpu_custom_call.1} parent=0 // loop_exit
    _

</llo_original>
